<compile_context>
chip_gen: v7x
topology: tpu7x:2x2x1
jax: 0.10.0
libtpu: 0.0.40
codegen_flags: <defaults>
</compile_context>

<pallas_src>
import functools
import math

import jax
import jax.numpy as jnp
import numpy as np
from jax.experimental import pallas as pl
from jax.experimental.pallas import tpu as pltpu

LANE = 128
DEFAULT_W0 = 30.0


def _round_up(x, m):
    return ((x + m - 1) // m) * m


def _cdiv(a, b):
    return -(-a // b)


# -----------------------------------------------------------------------------
# Parameter construction (mirrors the PyTorch init).
# -----------------------------------------------------------------------------
def init_fieldnet_params(key, d_in, hidden, d_out, *, w0=DEFAULT_W0, is_residual=True):
    """Returns (layer_descs, params).

    layer_descs[i] is one of
        ("sine",)             -> params[i] = (W, b)           W: (in, out)
        ("residual", a1, a2)  -> params[i] = (W1, b1, W2, b2), all (f, f)
        ("linear",)           -> params[i] = (W, b)
    Weights are stored pre-transposed to (in_features, out_features).
    """
    dims = [d_in] + list(hidden) + [d_out]
    n_layers = len(dims) - 1
    layer_descs, params = [], []

    def linear_init(k, fan_in, fan_out, w_bound):
        kw, kb = jax.random.split(k)
        w = jax.random.uniform(kw, (fan_in, fan_out), jnp.float32, -w_bound, w_bound)
        b_bound = 1.0 / math.sqrt(fan_in)                 # nn.Linear default bias init
        b = jax.random.uniform(kb, (fan_out,), jnp.float32, -b_bound, b_bound)
        return w, b

    for ndx in range(n_layers):
        li, lo = dims[ndx], dims[ndx + 1]
        key, sub = jax.random.split(key)
        if ndx != n_layers - 1:
            if (not is_residual) or ndx == 0:
                bound = (1.0 / li) if ndx == 0 else (math.sqrt(6.0 / li) / w0)
                layer_descs.append(("sine",))
                params.append(linear_init(sub, li, lo, bound))
            else:
                assert li == lo, "residual blocks need equal in/out features"
                k1, k2 = jax.random.split(sub)
                bound = math.sqrt(6.0 / li) / w0
                w1, b1 = linear_init(k1, li, li, bound)
                w2, b2 = linear_init(k2, li, li, bound)
                a1 = 0.5 if ndx > 1 else 1.0              # ave_first
                a2 = 0.5 if ndx == n_layers - 2 else 1.0  # ave_second
                layer_descs.append(("residual", a1, a2))
                params.append((w1, b1, w2, b2))
        else:
            bound = math.sqrt(6.0 / li) / 30.0            # hard-coded 30 in FieldNet
            layer_descs.append(("linear",))
            params.append(linear_init(sub, li, lo, bound))   # <- bugfix: pass bound
    return tuple(layer_descs), params


# -----------------------------------------------------------------------------
# One-time parameter preparation: w0/a1/a2 folding + lane-packed block-diagonal
# weights (all folding done in float32 before the matmul-dtype cast).
# -----------------------------------------------------------------------------
def prepare_fieldnet_params(layer_descs, params, *, omega_0=DEFAULT_W0,
                            matmul_dtype=jnp.bfloat16):
    n = len(layer_descs)
    assert n >= 2 and layer_descs[0][0] == "sine" and layer_descs[-1][0] == "linear"
    d_in = params[0][0].shape[0]
    hidden = params[0][0].shape[1]
    d_out = params[-1][0].shape[1]
    for desc, p in zip(layer_descs[1:-1], params[1:-1]):
        ws = (p[0], p[2]) if desc[0] == "residual" else (p[0],)
        for w in ws:
            assert w.shape == (hidden, hidden), "lane packing needs a uniform hidden width"
    assert params[-1][0].shape[0] == hidden

    G = max(1, LANE // hidden)                 # row-groups packed per 128-lane vreg row
    Fp = _round_up(G * hidden, LANE)           # packed hidden width
    Kin_p = _round_up(G * d_in, LANE)          # padded first-layer contraction dim
    Nout_p = _round_up(G * d_out, LANE)        # padded final-layer output width

    def bdiag(w, rows_p, cols_p):              # G copies of w on the block diagonal
        w = np.asarray(w, np.float32)
        ki, ni = w.shape
        out = np.zeros((rows_p, cols_p), np.float32)
        for g in range(G):
            out[g * ki:(g + 1) * ki, g * ni:(g + 1) * ni] = w
        return out

    def bpack(b, cols_p):                      # G copies of b along the lanes
        b = np.asarray(b, np.float32)
        out = np.zeros((1, cols_p), np.float32)
        t = np.tile(b, G)
        out[0, :t.size] = t
        return out

    ops, wh_list, bh_list = [], [], []
    pending = 1.0                              # deferred scale from a folded a2

    # First SineLayer: fold w0 into W and b.
    w0_, b0_ = params[0]
    wf = bdiag(omega_0 * pending * np.asarray(w0_, np.float32), Kin_p, Fp)
    bf = bpack(omega_0 * np.asarray(b0_, np.float32), Fp)
    pending = 1.0

    for idx in range(1, n - 1):
        desc, p = layer_descs[idx], params[idx]
        if desc[0] == "sine":
            w, b = p
            wh_list.append(bdiag(omega_0 * pending * np.asarray(w, np.float32), Fp, Fp))
            bh_list.append(bpack(omega_0 * np.asarray(b, np.float32), Fp))
            ops.append(("sine",))
            pending = 1.0
        else:                                   # ("residual", a1, a2)
            _, a1, a2 = desc
            w1, b1, w2, b2 = p
            pre, pending = pending, 1.0         # deferred scale applied explicitly (pre==1 here)
            wh_list.append(bdiag(omega_0 * a1 * np.asarray(w1, np.float32), Fp, Fp))
            bh_list.append(bpack(omega_0 * np.asarray(b1, np.float32), Fp))
            wh_list.append(bdiag(omega_0 * np.asarray(w2, np.float32), Fp, Fp))
            bh_list.append(bpack(omega_0 * np.asarray(b2, np.float32), Fp))
            if a2 != 1.0 and layer_descs[idx + 1][0] in ("sine", "linear"):
                ops.append(("res", float(pre), 1.0))   # a2 folded into the next layer's W
                pending = float(a2)
            else:
                ops.append(("res", float(pre), float(a2)))

    # Final Linear: fold any pending a2 into its weight.
    wl_, bl_ = params[-1]
    wl = bdiag(pending * np.asarray(wl_, np.float32), Fp, Nout_p)
    bl = bpack(np.asarray(bl_, np.float32), Nout_p)

    if not wh_list:                             # degenerate net (no middle layers)
        wh_list = [np.zeros((Fp, Fp), np.float32)]
        bh_list = [np.zeros((1, Fp), np.float32)]

    packed = dict(
        wf=jnp.asarray(wf, matmul_dtype),
        bf=jnp.asarray(bf, jnp.float32),
        wh=jnp.asarray(np.stack(wh_list), matmul_dtype),
        bh=jnp.asarray(np.stack(bh_list), jnp.float32),
        wl=jnp.asarray(wl, matmul_dtype),
        bl=jnp.asarray(bl, jnp.float32),
        meta=dict(d_in=d_in, d_out=d_out, hidden=hidden, G=G, Fp=Fp,
                  Kin_p=Kin_p, Nout_p=Nout_p, gd_in=G * d_in, gd_out=G * d_out,
                  matmul_dtype=matmul_dtype, ops=tuple(ops)),
    )
    return packed


# -----------------------------------------------------------------------------
# Fused kernel: whole FieldNet on one packed row tile.
# -----------------------------------------------------------------------------
def _fieldnet_kernel(x_ref, wf_ref, bf_ref, wh_ref, bh_ref, wl_ref, bl_ref,
                     o_ref, xpad_ref, *, ops, gd_in, gd_out, mm_dtype):
    f32_mm = np.dtype(mm_dtype) == np.dtype(jnp.float32)
    prec = jax.lax.Precision.HIGHEST if f32_mm else None

    def mm(h, w, b):
        return jnp.dot(h.astype(mm_dtype), w, precision=prec,
                       preferred_element_type=jnp.float32) + b

    # Zero-padded first-layer input built in VMEM every tile (megacore-safe:
    # the scratch is per-core, so no pl.when(program_id==0) initialization).
    xpad_ref[...] = jnp.zeros_like(xpad_ref)
    xpad_ref[:, :gd_in] = x_ref[...].astype(xpad_ref.dtype)

    # First SineLayer (w0 already folded into wf/bf).
    h = jnp.sin(mm(xpad_ref[...], wf_ref[...], bf_ref[...]))

    j = 0
    for op in ops:                              # static unroll over the network
        if op[0] == "sine":
            h = jnp.sin(mm(h, wh_ref[j], bh_ref[j]))
            j += 1
        else:                                   # ("res", pre, a2); w0, a1 folded
            pre, a2 = op[1], op[2]
            r = h if pre == 1.0 else pre * h
            s1 = jnp.sin(mm(r, wh_ref[j], bh_ref[j]))
            s2 = jnp.sin(mm(s1, wh_ref[j + 1], bh_ref[j + 1]))
            h = r + s2
            if a2 != 1.0:
                h = a2 * h
            j += 2

    z = mm(h, wl_ref[...], bl_ref[...])         # final Linear (no sin)
    o_ref[...] = z[:, :gd_out].astype(o_ref.dtype)   # narrow, unpadded HBM store


# -----------------------------------------------------------------------------
# Wrapper.
# -----------------------------------------------------------------------------
def _detect_vmem_cap():
    try:
        cap = int(pltpu.get_tpu_info().vmem_capacity_bytes)
        if cap > 0:
            return cap
    except Exception:
        pass
    return 64 * 2 ** 20                          # safe for v7x; fine elsewhere


def _vmem_estimate(tm, meta, packed, x_itemsize):
    param_bytes = sum(int(np.prod(v.shape)) * v.dtype.itemsize
                      for k, v in packed.items() if k != "meta")
    return int(2 * tm * meta["gd_in"] * x_itemsize    # double-buffered x tile
               + 2 * tm * meta["gd_out"] * 4          # double-buffered out tile
               + tm * meta["Kin_p"] * 4               # xpad scratch (f32)
               + 2 * param_bytes                      # resident params
               + 6 * tm * meta["Fp"] * 4)             # live f32 activation slabs


def fieldnet_forward(x, packed, *, tm_rows=4096, vmem_cap_bytes=None):
    """x: (M, d_in) float; returns (M, d_out) float32."""
    meta = packed["meta"]
    G, gd_in, gd_out = meta["G"], meta["gd_in"], meta["gd_out"]
    d_in, d_out = meta["d_in"], meta["d_out"]
    M = x.shape[0]
    assert x.shape[1] == d_in, "x feature dim does not match the parameters"

    # Pack G rows into one lane-dense row (contiguous reshape -> free in HBM).
    Mg = _round_up(M, G)
    if Mg != M:
        x = jnp.concatenate([x, jnp.zeros((Mg - M, d_in), x.dtype)], axis=0)
    rows = Mg // G
    xp = x.reshape(rows, gd_in)

    # Row tile: big (MXU/HBM friendly), shrunk to fit VMEM and to keep a
    # multi-step grid for 2-TensorCore chips.
    tm = max(8, min(max(tm_rows // G, 8), _round_up(rows, 8)))
    tm = _round_up(tm, 8)
    cap = int(vmem_cap_bytes) if vmem_cap_bytes else _detect_vmem_cap()
    x_isz = np.dtype(x.dtype).itemsize
    while tm > 256 and _vmem_estimate(tm, meta, packed, x_isz) > (cap * 3) // 4:
        tm = _round_up(tm // 2, 8)
    while tm > 256 and _cdiv(rows, tm) < 8:
        tm = _round_up(tm // 2, 8)
    grid = (_cdiv(rows, tm),)                     # partial edge block is fine (rows independent)
    vmem_limit = int(min(cap, max(32 * 2 ** 20,
                                  2 * _vmem_estimate(tm, meta, packed, x_isz))))

    kernel = functools.partial(_fieldnet_kernel, ops=meta["ops"], gd_in=gd_in,
                               gd_out=gd_out, mm_dtype=meta["matmul_dtype"])

    out_p = pl.pallas_call(
        kernel,
        out_shape=jax.ShapeDtypeStruct((rows, gd_out), jnp.float32),
        grid_spec=pltpu.PrefetchScalarGridSpec(
            num_scalar_prefetch=0,
            grid=grid,
            in_specs=[
                pl.BlockSpec((tm, gd_in), lambda i: (i, 0)),
                pl.BlockSpec(packed["wf"].shape, lambda i: (0, 0)),
                pl.BlockSpec(packed["bf"].shape, lambda i: (0, 0)),
                pl.BlockSpec(packed["wh"].shape, lambda i: (0, 0, 0)),
                pl.BlockSpec(packed["bh"].shape, lambda i: (0, 0, 0)),
                pl.BlockSpec(packed["wl"].shape, lambda i: (0, 0)),
                pl.BlockSpec(packed["bl"].shape, lambda i: (0, 0)),
            ],
            out_specs=pl.BlockSpec((tm, gd_out), lambda i: (i, 0)),
            scratch_shapes=[pltpu.VMEM((tm, meta["Kin_p"]), jnp.float32)],
        ),
        compiler_params=pltpu.CompilerParams(
            dimension_semantics=("parallel",),
            vmem_limit_bytes=vmem_limit,
        ),
    )(xp, packed["wf"], packed["bf"], packed["wh"], packed["bh"],
      packed["wl"], packed["bl"])

    out = out_p.reshape(Mg, d_out)                # contiguous unpack -> free
    return out[:M] if Mg != M else out


# -----------------------------------------------------------------------------
# Pure-JAX reference (mirrors the PyTorch forward).
# -----------------------------------------------------------------------------
def fieldnet_ref(x, layer_descs, params, *, omega_0=DEFAULT_W0, emulate_matmul_dtype=None):
    def md(a):
        if emulate_matmul_dtype is None:
            return a
        return a.astype(emulate_matmul_dtype).astype(jnp.float32)

    dot = functools.partial(jnp.dot, precision=jax.lax.Precision.HIGHEST)
    h = x.astype(jnp.float32)
    for desc, p in zip(layer_descs, params):
        if desc[0] == "residual":
            w1, b1, w2, b2 = p
            a1, a2 = desc[1], desc[2]
            s1 = jnp.sin(omega_0 * (dot(md(a1 * h), md(w1)) + b1))
            s2 = jnp.sin(omega_0 * (dot(md(s1), md(w2)) + b2))
            h = a2 * (h + s2)
        else:
            w, b = p
            z = dot(md(h), md(w)) + b
            h = jnp.sin(omega_0 * z) if desc[0] == "sine" else z
    return h


if __name__ == "__main__":
    key = jax.random.PRNGKey(0)
    k_x, k_p1, k_p2 = jax.random.split(key, 3)

    d_in, hidden, d_out, w0 = 3, (32, 32, 32), 1, 30.0

    # --- residual FieldNet, bf16 MXU path, row count not a tile multiple ------
    M = 300
    x = jax.random.uniform(k_x, (M, d_in), jnp.float32, minval=-1.0, maxval=1.0)
    descs_r, params_r = init_fieldnet_params(k_p1, d_in, hidden, d_out, w0=w0, is_residual=True)
    packed_bf16 = prepare_fieldnet_params(descs_r, params_r, omega_0=w0,
                                          matmul_dtype=jnp.bfloat16)
    out_bf16 = jax.block_until_ready(fieldnet_forward(x, packed_bf16))
    ref_bf16 = fieldnet_ref(x, descs_r, params_r, omega_0=w0,
                            emulate_matmul_dtype=jnp.bfloat16)
    np.testing.assert_allclose(np.asarray(out_bf16), np.asarray(ref_bf16),
                               atol=3e-2, rtol=3e-2)

    # --- same network, f32-matmul path (parity with the PyTorch module) -------
    packed_f32 = prepare_fieldnet_params(descs_r, params_r, omega_0=w0,
                                         matmul_dtype=jnp.float32)
    out_f32 = jax.block_until_ready(fieldnet_forward(x, packed_f32))
    ref_f32 = fieldnet_ref(x, descs_r, params_r, omega_0=w0)
    np.testing.assert_allclose(np.asarray(out_f32), np.asarray(ref_f32),
                               atol=2e-2, rtol=2e-2)

    # --- non-residual FieldNet (plain SIREN), multi-step grid -----------------
    M2 = 2048
    x2 = jax.random.uniform(k_x, (M2, d_in), jnp.float32, minval=-1.0, maxval=1.0)
    descs_n, params_n = init_fieldnet_params(k_p2, d_in, hidden, d_out, w0=w0, is_residual=False)
    packed_n = prepare_fieldnet_params(descs_n, params_n, omega_0=w0,
                                       matmul_dtype=jnp.bfloat16)
    out_n = jax.block_until_ready(fieldnet_forward(x2, packed_n, tm_rows=1024))
    ref_n = fieldnet_ref(x2, descs_n, params_n, omega_0=w0,
                         emulate_matmul_dtype=jnp.bfloat16)
    np.testing.assert_allclose(np.asarray(out_n), np.asarray(ref_n),
                               atol=3e-2, rtol=3e-2)

    print("KERNEL_OK")
</pallas_src>

<mosaic_0001>
module attributes {stable_mosaic.version = 11 : i64} {
  func.func @_fieldnet_kernel(%arg0: i32, %arg1: memref<80x12xf32, #tpu.memory_space<vmem>>, %arg2: memref<128x128xbf16, #tpu.memory_space<vmem>>, %arg3: memref<1x128xf32, #tpu.memory_space<vmem>>, %arg4: memref<4x128x128xbf16, #tpu.memory_space<vmem>>, %arg5: memref<4x1x128xf32, #tpu.memory_space<vmem>>, %arg6: memref<128x128xbf16, #tpu.memory_space<vmem>>, %arg7: memref<1x128xf32, #tpu.memory_space<vmem>>, %arg8: memref<80x4xf32, #tpu.memory_space<vmem>>, %arg9: memref<80x128xf32, #tpu.memory_space<vmem>>) attributes {dimension_semantics = [#tpu.dimension_semantics<parallel>], iteration_bounds = array<i64: 1>, scalar_prefetch = 0 : i64, scratch_operands = 1 : i64, tpu.core_type = #tpu.core_type<tc>, window_params = [{transform_indices = @transform_0, window_bounds = array<i64: 80, 12>}, {pipeline_mode = #tpu.pipeline_mode<synchronous>, transform_indices = @transform_1, window_bounds = array<i64: 128, 128>}, {pipeline_mode = #tpu.pipeline_mode<synchronous>, transform_indices = @transform_2, window_bounds = array<i64: 1, 128>}, {pipeline_mode = #tpu.pipeline_mode<synchronous>, transform_indices = @transform_3, window_bounds = array<i64: 4, 128, 128>}, {pipeline_mode = #tpu.pipeline_mode<synchronous>, transform_indices = @transform_4, window_bounds = array<i64: 4, 1, 128>}, {pipeline_mode = #tpu.pipeline_mode<synchronous>, transform_indices = @transform_5, window_bounds = array<i64: 128, 128>}, {pipeline_mode = #tpu.pipeline_mode<synchronous>, transform_indices = @transform_6, window_bounds = array<i64: 1, 128>}, {transform_indices = @transform_7, window_bounds = array<i64: 80, 4>}]} {
    %cst = arith.constant 0.000000e+00 : f32
    %0 = vector.broadcast %cst : f32 to vector<80x128xf32>
    %c0 = arith.constant 0 : index
    %c0_0 = arith.constant 0 : index
    %1 = vector.load %arg9[%c0, %c0_0] : memref<80x128xf32, #tpu.memory_space<vmem>>, vector<80x128xf32>
    tpu.vector_store %arg9[%c0, %c0_0], %0 {strides = array<i32>} : memref<80x128xf32, #tpu.memory_space<vmem>>, vector<80x128xf32>,
    %c0_1 = arith.constant 0 : index
    %c0_2 = arith.constant 0 : index
    %2 = vector.load %arg1[%c0_1, %c0_2] : memref<80x12xf32, #tpu.memory_space<vmem>>, vector<80x12xf32>
    %c0_3 = arith.constant 0 : index
    %c0_4 = arith.constant 0 : index
    %3 = vector.load %arg9[%c0_3, %c0_4] : memref<80x128xf32, #tpu.memory_space<vmem>>, vector<80x12xf32>
    tpu.vector_store %arg9[%c0_3, %c0_4], %2 {strides = array<i32>} : memref<80x128xf32, #tpu.memory_space<vmem>>, vector<80x12xf32>,
    %c0_5 = arith.constant 0 : index
    %c0_6 = arith.constant 0 : index
    %4 = vector.load %arg9[%c0_5, %c0_6] : memref<80x128xf32, #tpu.memory_space<vmem>>, vector<80x128xf32>
    %c0_7 = arith.constant 0 : index
    %c0_8 = arith.constant 0 : index
    %5 = vector.load %arg2[%c0_7, %c0_8] : memref<128x128xbf16, #tpu.memory_space<vmem>>, vector<128x128xbf16>
    %c0_9 = arith.constant 0 : index
    %c0_10 = arith.constant 0 : index
    %6 = vector.load %arg3[%c0_9, %c0_10] : memref<1x128xf32, #tpu.memory_space<vmem>>, vector<1x128xf32>
    %7 = arith.truncf %4 : vector<80x128xf32> to vector<80x128xbf16>
    %cst_11 = arith.constant dense<0.000000e+00> : vector<80x128xf32>
    %8 = tpu.matmul %7, %5, %cst_11 {dimension_numbers = #tpu.dot_dimension_numbers<[1], [0], [0], [1], [0, 0, 1, 1], [], []>} : vector<80x128xbf16>, vector<128x128xbf16>, vector<80x128xf32> -> vector<80x128xf32>
    %9 = vector.broadcast %6 : vector<1x128xf32> to vector<80x128xf32>
    %10 = arith.addf %8, %9 : vector<80x128xf32>
    %11 = math.sin %10 : vector<80x128xf32>
    %c0_12 = arith.constant 0 : index
    %c0_13 = arith.constant 0 : index
    %c0_14 = arith.constant 0 : index
    %12 = vector.load %arg4[%c0_12, %c0_13, %c0_14] : memref<4x128x128xbf16, #tpu.memory_space<vmem>>, vector<1x128x128xbf16>
    %13 = vector.shape_cast %12 : vector<1x128x128xbf16> to vector<128x128xbf16>
    %c0_15 = arith.constant 0 : index
    %c0_16 = arith.constant 0 : index
    %c0_17 = arith.constant 0 : index
    %14 = vector.load %arg5[%c0_15, %c0_16, %c0_17] : memref<4x1x128xf32, #tpu.memory_space<vmem>>, vector<1x1x128xf32>
    %15 = vector.shape_cast %14 : vector<1x1x128xf32> to vector<1x128xf32>
    %16 = arith.truncf %11 : vector<80x128xf32> to vector<80x128xbf16>
    %cst_18 = arith.constant dense<0.000000e+00> : vector<80x128xf32>
    %17 = tpu.matmul %16, %13, %cst_18 {dimension_numbers = #tpu.dot_dimension_numbers<[1], [0], [0], [1], [0, 0, 1, 1], [], []>} : vector<80x128xbf16>, vector<128x128xbf16>, vector<80x128xf32> -> vector<80x128xf32>
    %18 = vector.broadcast %15 : vector<1x128xf32> to vector<80x128xf32>
    %19 = arith.addf %17, %18 : vector<80x128xf32>
    %20 = math.sin %19 : vector<80x128xf32>
    %c1 = arith.constant 1 : index
    %c0_19 = arith.constant 0 : index
    %c0_20 = arith.constant 0 : index
    %21 = vector.load %arg4[%c1, %c0_19, %c0_20] : memref<4x128x128xbf16, #tpu.memory_space<vmem>>, vector<1x128x128xbf16>
    %22 = vector.shape_cast %21 : vector<1x128x128xbf16> to vector<128x128xbf16>
    %c1_21 = arith.constant 1 : index
    %c0_22 = arith.constant 0 : index
    %c0_23 = arith.constant 0 : index
    %23 = vector.load %arg5[%c1_21, %c0_22, %c0_23] : memref<4x1x128xf32, #tpu.memory_space<vmem>>, vector<1x1x128xf32>
    %24 = vector.shape_cast %23 : vector<1x1x128xf32> to vector<1x128xf32>
    %25 = arith.truncf %20 : vector<80x128xf32> to vector<80x128xbf16>
    %cst_24 = arith.constant dense<0.000000e+00> : vector<80x128xf32>
    %26 = tpu.matmul %25, %22, %cst_24 {dimension_numbers = #tpu.dot_dimension_numbers<[1], [0], [0], [1], [0, 0, 1, 1], [], []>} : vector<80x128xbf16>, vector<128x128xbf16>, vector<80x128xf32> -> vector<80x128xf32>
    %27 = vector.broadcast %24 : vector<1x128xf32> to vector<80x128xf32>
    %28 = arith.addf %26, %27 : vector<80x128xf32>
    %29 = math.sin %28 : vector<80x128xf32>
    %30 = arith.addf %11, %29 : vector<80x128xf32>
    %c2 = arith.constant 2 : index
    %c0_25 = arith.constant 0 : index
    %c0_26 = arith.constant 0 : index
    %31 = vector.load %arg4[%c2, %c0_25, %c0_26] : memref<4x128x128xbf16, #tpu.memory_space<vmem>>, vector<1x128x128xbf16>
    %32 = vector.shape_cast %31 : vector<1x128x128xbf16> to vector<128x128xbf16>
    %c2_27 = arith.constant 2 : index
    %c0_28 = arith.constant 0 : index
    %c0_29 = arith.constant 0 : index
    %33 = vector.load %arg5[%c2_27, %c0_28, %c0_29] : memref<4x1x128xf32, #tpu.memory_space<vmem>>, vector<1x1x128xf32>
    %34 = vector.shape_cast %33 : vector<1x1x128xf32> to vector<1x128xf32>
    %35 = arith.truncf %30 : vector<80x128xf32> to vector<80x128xbf16>
    %cst_30 = arith.constant dense<0.000000e+00> : vector<80x128xf32>
    %36 = tpu.matmul %35, %32, %cst_30 {dimension_numbers = #tpu.dot_dimension_numbers<[1], [0], [0], [1], [0, 0, 1, 1], [], []>} : vector<80x128xbf16>, vector<128x128xbf16>, vector<80x128xf32> -> vector<80x128xf32>
    %37 = vector.broadcast %34 : vector<1x128xf32> to vector<80x128xf32>
    %38 = arith.addf %36, %37 : vector<80x128xf32>
    %39 = math.sin %38 : vector<80x128xf32>
    %c3 = arith.constant 3 : index
    %c0_31 = arith.constant 0 : index
    %c0_32 = arith.constant 0 : index
    %40 = vector.load %arg4[%c3, %c0_31, %c0_32] : memref<4x128x128xbf16, #tpu.memory_space<vmem>>, vector<1x128x128xbf16>
    %41 = vector.shape_cast %40 : vector<1x128x128xbf16> to vector<128x128xbf16>
    %c3_33 = arith.constant 3 : index
    %c0_34 = arith.constant 0 : index
    %c0_35 = arith.constant 0 : index
    %42 = vector.load %arg5[%c3_33, %c0_34, %c0_35] : memref<4x1x128xf32, #tpu.memory_space<vmem>>, vector<1x1x128xf32>
    %43 = vector.shape_cast %42 : vector<1x1x128xf32> to vector<1x128xf32>
    %44 = arith.truncf %39 : vector<80x128xf32> to vector<80x128xbf16>
    %cst_36 = arith.constant dense<0.000000e+00> : vector<80x128xf32>
    %45 = tpu.matmul %44, %41, %cst_36 {dimension_numbers = #tpu.dot_dimension_numbers<[1], [0], [0], [1], [0, 0, 1, 1], [], []>} : vector<80x128xbf16>, vector<128x128xbf16>, vector<80x128xf32> -> vector<80x128xf32>
    %46 = vector.broadcast %43 : vector<1x128xf32> to vector<80x128xf32>
    %47 = arith.addf %45, %46 : vector<80x128xf32>
    %48 = math.sin %47 : vector<80x128xf32>
    %49 = arith.addf %30, %48 : vector<80x128xf32>
    %c0_37 = arith.constant 0 : index
    %c0_38 = arith.constant 0 : index
    %50 = vector.load %arg6[%c0_37, %c0_38] : memref<128x128xbf16, #tpu.memory_space<vmem>>, vector<128x128xbf16>
    %c0_39 = arith.constant 0 : index
    %c0_40 = arith.constant 0 : index
    %51 = vector.load %arg7[%c0_39, %c0_40] : memref<1x128xf32, #tpu.memory_space<vmem>>, vector<1x128xf32>
    %52 = arith.truncf %49 : vector<80x128xf32> to vector<80x128xbf16>
    %cst_41 = arith.constant dense<0.000000e+00> : vector<80x128xf32>
    %53 = tpu.matmul %52, %50, %cst_41 {dimension_numbers = #tpu.dot_dimension_numbers<[1], [0], [0], [1], [0, 0, 1, 1], [], []>} : vector<80x128xbf16>, vector<128x128xbf16>, vector<80x128xf32> -> vector<80x128xf32>
    %54 = vector.broadcast %51 : vector<1x128xf32> to vector<80x128xf32>
    %55 = arith.addf %53, %54 : vector<80x128xf32>
    %56 = vector.extract_strided_slice %55 {offsets = [0, 0], sizes = [80, 4], strides = [1, 1]} : vector<80x128xf32> to vector<80x4xf32>
    %c0_42 = arith.constant 0 : index
    %c0_43 = arith.constant 0 : index
    %57 = vector.load %arg8[%c0_42, %c0_43] : memref<80x4xf32, #tpu.memory_space<vmem>>, vector<80x4xf32>
    tpu.vector_store %arg8[%c0_42, %c0_43], %56 {strides = array<i32>} : memref<80x4xf32, #tpu.memory_space<vmem>>, vector<80x4xf32>,
    return
  }
  func.func @transform_0(%arg0: i32) -> (i32, i32) {
    %c0_i32 = arith.constant 0 : i32
    %c0_i32_0 = arith.constant 0 : i32
    return %arg0, %c0_i32 : i32, i32
  }
  func.func @transform_1(%arg0: i32) -> (i32, i32) {
    %c0_i32 = arith.constant 0 : i32
    %c0_i32_0 = arith.constant 0 : i32
    %c0_i32_1 = arith.constant 0 : i32
    return %c0_i32, %c0_i32_0 : i32, i32
  }
  func.func @transform_2(%arg0: i32) -> (i32, i32) {
    %c0_i32 = arith.constant 0 : i32
    %c0_i32_0 = arith.constant 0 : i32
    %c0_i32_1 = arith.constant 0 : i32
    return %c0_i32, %c0_i32_0 : i32, i32
  }
  func.func @transform_3(%arg0: i32) -> (i32, i32, i32) {
    %c0_i32 = arith.constant 0 : i32
    %c0_i32_0 = arith.constant 0 : i32
    %c0_i32_1 = arith.constant 0 : i32
    %c0_i32_2 = arith.constant 0 : i32
    return %c0_i32, %c0_i32_0, %c0_i32_1 : i32, i32, i32
  }
  func.func @transform_4(%arg0: i32) -> (i32, i32, i32) {
    %c0_i32 = arith.constant 0 : i32
    %c0_i32_0 = arith.constant 0 : i32
    %c0_i32_1 = arith.constant 0 : i32
    %c0_i32_2 = arith.constant 0 : i32
    return %c0_i32, %c0_i32_0, %c0_i32_1 : i32, i32, i32
  }
  func.func @transform_5(%arg0: i32) -> (i32, i32) {
    %c0_i32 = arith.constant 0 : i32
    %c0_i32_0 = arith.constant 0 : i32
    %c0_i32_1 = arith.constant 0 : i32
    return %c0_i32, %c0_i32_0 : i32, i32
  }
  func.func @transform_6(%arg0: i32) -> (i32, i32) {
    %c0_i32 = arith.constant 0 : i32
    %c0_i32_0 = arith.constant 0 : i32
    %c0_i32_1 = arith.constant 0 : i32
    return %c0_i32, %c0_i32_0 : i32, i32
  }
  func.func @transform_7(%arg0: i32) -> (i32, i32) {
    %c0_i32 = arith.constant 0 : i32
    %c0_i32_0 = arith.constant 0 : i32
    return %arg0, %c0_i32 : i32, i32
  }
}

</mosaic_0001>

<llo_original>
// kernel: tpu_custom_call.1
$region0: #{tpu_custom_call.1}
  #allocation0 [shape = 'u32[]', space=smem, size = 0x4, offset = 0x4, fixed_abs, tag = 'smem constant byte address 0x4 - core index']
  #allocation1 [shape = 'u32[144,128]{1,0:T(1,128)}', space=vmem, size = 0x12000, scoped, tag = 'internal scratch']
  #allocation2 [shape = 'f32[80,128]{1,0:T(8,128)}', space=vmem, size = 0xa000, scoped, tag = 'scratch operand']
  %s0 = inlined_call_operand.vmem [shape: f32[75,12], index: 0, kind: input, shape index: {}]
  %s1 = inlined_call_operand.vmem [shape: bf16[128,128], index: 1, kind: input, shape index: {}]
  %s2 = inlined_call_operand.vmem [shape: f32[1,128], index: 2, kind: input, shape index: {}]
  %s3 = inlined_call_operand.hbm [shape: bf16[4,128,128], index: 3, kind: input, shape index: {}]
  %s4 = inlined_call_operand.vmem [shape: f32[4,1,128], index: 4, kind: input, shape index: {}]
  %s5 = inlined_call_operand.hbm [shape: bf16[128,128], index: 5, kind: input, shape index: {}]
  %s6 = inlined_call_operand.vmem [shape: f32[1,128], index: 6, kind: input, shape index: {}]
  %s7 = inlined_call_operand.vmem [shape: f32[75,4], index: 7, kind: output, shape index: {}]
  %s8 = sld [smem:[#allocation0]]
  $region46: #{tpu_custom_call.1} parent=0
    _
  %s10 = ssub.s32 1, %s8
  %s11 = scalar_select 0, %s10, %s8
  $region1: #{tpu_custom_call.1} parent=0
    #allocation3 [shape = 'u8[131072]{0}', space=vmem, size = 0x20000, scoped, tag = 'input window, operand 3, single buffered']
    #allocation4 [shape = 's32[1]{0}', space=sflag, size = 0x4, scoped, tag = 'scoped memory for tpu_custom_call.1']
    #allocation5 [shape = 'u8[32768]{0}', space=vmem, size = 0x8000, scoped, tag = 'input window, operand 5, single buffered']
    #allocation6 [shape = 's32[1]{0}', space=sflag, size = 0x4, scoped, tag = 'scoped memory for tpu_custom_call.1']
    %12 = vsyncpa [#allocation4], 0
    %13 = vsyncpa [#allocation6], 0
    // Predicated region
    $region2: #{tpu_custom_call.1} parent=1 // pred_check
      _
    $region3: #{tpu_custom_call.1} parent=1 // pred_check_branch
      %15 = sbr.rel (0) target = $region5
    $region4: #{tpu_custom_call.1} parent=1 // pred_region
      _
    $region5: #{tpu_custom_call.1} parent=1 // pred_fallthru
      _
    // Predicated region
    $region6: #{tpu_custom_call.1} parent=1 // pred_check
      _
    $region7: #{tpu_custom_call.1} parent=1 // pred_check_branch
      %17 = sbr.rel (0) target = $region9
    $region8: #{tpu_custom_call.1} parent=1 // pred_region
      _
    $region9: #{tpu_custom_call.1} parent=1 // pred_fallthru
      _
    // Predicated region
    $region10: #{tpu_custom_call.1} parent=1 // pred_check
      _
    $region11: #{tpu_custom_call.1} parent=1 // pred_check_branch
      %19 = sbr.rel (0) target = $region13
    $region12: #{tpu_custom_call.1} parent=1 // pred_region
      _
    $region13: #{tpu_custom_call.1} parent=1 // pred_fallthru
      _
    // Predicated region
    $region14: #{tpu_custom_call.1} parent=1 // pred_check
      _
    $region15: #{tpu_custom_call.1} parent=1 // pred_check_branch
      %21 = sbr.rel (0) target = $region17
    $region16: #{tpu_custom_call.1} parent=1 // pred_region
      %s23 = ssub.s32 4096, 4096
      %24 = vsyncadd [#allocation4], %s23
      %s25 = sshll.u32 [#allocation3], 4
      %s26 = int_to_ptr.vmem [resolvable:$true] %s25
      %31 = dma.hbm_to_vmem [thread:$0]  %s3, 4096, %s26, [#allocation4], 64, 64, 4
    $region17: #{tpu_custom_call.1} parent=1 // pred_fallthru
      _
    // Predicated region
    $region18: #{tpu_custom_call.1} parent=1 // pred_check
      _
    $region19: #{tpu_custom_call.1} parent=1 // pred_check_branch
      %33 = sbr.rel (0) target = $region21
    $region20: #{tpu_custom_call.1} parent=1 // pred_region
      _
    $region21: #{tpu_custom_call.1} parent=1 // pred_fallthru
      _
    // Predicated region
    $region22: #{tpu_custom_call.1} parent=1 // pred_check
      _
    $region23: #{tpu_custom_call.1} parent=1 // pred_check_branch
      %35 = sbr.rel (0) target = $region25
    $region24: #{tpu_custom_call.1} parent=1 // pred_region
      %s37 = ssub.s32 1024, 1024
      %38 = vsyncadd [#allocation6], %s37
      %s39 = sshll.u32 [#allocation5], 4
      %s40 = int_to_ptr.vmem [resolvable:$true] %s39
      %45 = dma.hbm_to_vmem [thread:$0]  %s5, 1024, %s40, [#allocation6], 64, 64, 4
    $region25: #{tpu_custom_call.1} parent=1 // pred_fallthru
      _
    // Predicated region
    $region26: #{tpu_custom_call.1} parent=1 // pred_check
      _
    $region27: #{tpu_custom_call.1} parent=1 // pred_check_branch
      %47 = sbr.rel (0) target = $region29
    $region28: #{tpu_custom_call.1} parent=1 // pred_region
      _
    $region29: #{tpu_custom_call.1} parent=1 // pred_fallthru
      _
    // Predicated region
    $region30: #{tpu_custom_call.1} parent=1 // pred_check
      _
    $region31: #{tpu_custom_call.1} parent=1 // pred_check_branch
      %49 = sbr.rel (0) target = $region33
    $region32: #{tpu_custom_call.1} parent=1 // pred_region
      %50 = dma.done [#allocation4], 4096
    $region33: #{tpu_custom_call.1} parent=1 // pred_fallthru
      _
    // Predicated region
    $region34: #{tpu_custom_call.1} parent=1 // pred_check
      _
    $region35: #{tpu_custom_call.1} parent=1 // pred_check_branch
      %52 = sbr.rel (0) target = $region37
    $region36: #{tpu_custom_call.1} parent=1 // pred_region
      %53 = dma.done [#allocation6], 1024
    $region37: #{tpu_custom_call.1} parent=1 // pred_fallthru
      _
    %55 = vst [vmem:[#allocation2] sm:$0xff] 0.0
    %56 = vst [vmem:[#allocation2 + $0x8] sm:$0xff] 0.0
    %57 = vst [vmem:[#allocation2 + $0x10] sm:$0xff] 0.0
    %58 = vst [vmem:[#allocation2 + $0x18] sm:$0xff] 0.0
    %59 = vst [vmem:[#allocation2 + $0x20] sm:$0xff] 0.0
    %60 = vst [vmem:[#allocation2 + $0x28] sm:$0xff] 0.0
    %61 = vst [vmem:[#allocation2 + $0x30] sm:$0xff] 0.0
    %62 = vst [vmem:[#allocation2 + $0x38] sm:$0xff] 0.0
    %63 = vst [vmem:[#allocation2 + $0x40] sm:$0xff] 0.0
    %64 = vst [vmem:[#allocation2 + $0x48] sm:$0xff] 0.0
    %v65 = vld [vmem:[%s0] sm:$0xff]
    %v66 = vld [vmem:[%s0 + $0x8] sm:$0xff]
    %v67 = vld [vmem:[%s0 + $0x10] sm:$0xff]
    %v68 = vld [vmem:[%s0 + $0x18] sm:$0xff]
    %v69 = vld [vmem:[%s0 + $0x20] sm:$0xff]
    %v70 = vld [vmem:[%s0 + $0x28] sm:$0xff]
    %v71 = vld [vmem:[%s0 + $0x30] sm:$0xff]
    %v72 = vld [vmem:[%s0 + $0x38] sm:$0xff]
    %v73 = vld [vmem:[%s0 + $0x40] sm:$0xff]
    %v74 = vld [vmem:[%s0 + $0x48] sm:$0xff]
    %vm75 = vcmask 97280
    %76 = vst.msk [vmem:[#allocation2] sm:$0xff] %vm75, %v65
    %77 = vst.msk [vmem:[#allocation2 + $0x8] sm:$0xff] %vm75, %v66
    %78 = vst.msk [vmem:[#allocation2 + $0x10] sm:$0xff] %vm75, %v67
    %79 = vst.msk [vmem:[#allocation2 + $0x18] sm:$0xff] %vm75, %v68
    %80 = vst.msk [vmem:[#allocation2 + $0x20] sm:$0xff] %vm75, %v69
    %81 = vst.msk [vmem:[#allocation2 + $0x28] sm:$0xff] %vm75, %v70
    %82 = vst.msk [vmem:[#allocation2 + $0x30] sm:$0xff] %vm75, %v71
    %83 = vst.msk [vmem:[#allocation2 + $0x38] sm:$0xff] %vm75, %v72
    %84 = vst.msk [vmem:[#allocation2 + $0x40] sm:$0xff] %vm75, %v73
    %85 = vst.msk [vmem:[#allocation2 + $0x48] sm:$0xff] %vm75, %v74
    %v86 = vld [vmem:[#allocation2] sm:$0xff]
    %v87 = vld [vmem:[#allocation2 + $0x8] sm:$0xff]
    %v88 = vld [vmem:[#allocation2 + $0x10] sm:$0xff]
    %v89 = vld [vmem:[#allocation2 + $0x18] sm:$0xff]
    %v90 = vld [vmem:[#allocation2 + $0x20] sm:$0xff]
    %v91 = vld [vmem:[#allocation2 + $0x28] sm:$0xff]
    %v92 = vld [vmem:[#allocation2 + $0x30] sm:$0xff]
    %v93 = vld [vmem:[#allocation2 + $0x38] sm:$0xff]
    %v94 = vld [vmem:[#allocation2 + $0x40] sm:$0xff]
    %v95 = vld [vmem:[#allocation2 + $0x48] sm:$0xff]
    %v96 = vld [vmem:[%s1] sm:$0xf]
    %v97 = vld [vmem:[%s1 + $0x4] sm:$0xf]
    %v98 = vld [vmem:[%s1 + $0x8] sm:$0xf]
    %v99 = vld [vmem:[%s1 + $0xc] sm:$0xf]
    %v100 = vld [vmem:[%s1 + $0x10] sm:$0xf]
    %v101 = vld [vmem:[%s1 + $0x14] sm:$0xf]
    %v102 = vld [vmem:[%s1 + $0x18] sm:$0xf]
    %v103 = vld [vmem:[%s1 + $0x1c] sm:$0xf]
    %v104 = vld [vmem:[%s1 + $0x20] sm:$0xf]
    %v105 = vld [vmem:[%s1 + $0x24] sm:$0xf]
    %v106 = vld [vmem:[%s1 + $0x28] sm:$0xf]
    %v107 = vld [vmem:[%s1 + $0x2c] sm:$0xf]
    %v108 = vld [vmem:[%s1 + $0x30] sm:$0xf]
    %v109 = vld [vmem:[%s1 + $0x34] sm:$0xf]
    %v110 = vld [vmem:[%s1 + $0x38] sm:$0xf]
    %v111 = vld [vmem:[%s1 + $0x3c] sm:$0xf]
    %v112 = vld [vmem:[%s2] sm:$0x1]
    %v113 = vpack.c.bf16 %v87, %v86
    %v114 = vpack.c.bf16 %v89, %v88
    %v115 = vpack.c.bf16 %v91, %v90
    %v116 = vpack.c.bf16 %v93, %v92
    %v117 = vpack.c.bf16 %v95, %v94
    %v119 = vlaneseq
    %v120 = vshrl.u32 %v119, 7
    %v121 = vsub.s32 0, %v120
    %v122 = vrot.slane %v112, %v121
    %v140 = vunpack.c.l.b16 %v96
    %v141 = vunpack.c.l.b16 %v97
    %v142 = vunpack.c.l.b16 %v98
    %v143 = vunpack.c.l.b16 %v99
    %v144 = vunpack.c.l.b16 %v100
    %v145 = vunpack.c.l.b16 %v101
    %v146 = vunpack.c.l.b16 %v102
    %v147 = vunpack.c.l.b16 %v103
    %v148 = vunpack.c.l.b16 %v104
    %v149 = vunpack.c.l.b16 %v105
    %v150 = vunpack.c.l.b16 %v106
    %v151 = vunpack.c.l.b16 %v107
    %v152 = vunpack.c.l.b16 %v108
    %v153 = vunpack.c.l.b16 %v109
    %v154 = vunpack.c.l.b16 %v110
    %v155 = vunpack.c.l.b16 %v111
    %v156 = vpack.c.b16 %v141, %v140
    %v157 = vpack.c.b16 %v143, %v142
    %v158 = vpack.c.b16 %v145, %v144
    %v159 = vpack.c.b16 %v147, %v146
    %v160 = vpack.c.b16 %v149, %v148
    %v161 = vpack.c.b16 %v151, %v150
    %v162 = vpack.c.b16 %v153, %v152
    %v163 = vpack.c.b16 %v155, %v154
    %172 = vmatprep.subr.bf16.mxu0 0
    %173 = vmatpush1.bf16.msra.mxu0 %v156
    %174 = vmatprep.subr.bf16.mxu0 0
    %175 = vmatpush1.bf16.msra.mxu0 %v157
    %176 = vmatprep.subr.bf16.mxu0 0
    %177 = vmatpush1.bf16.msra.mxu0 %v158
    %178 = vmatprep.subr.bf16.mxu0 0
    %179 = vmatpush1.bf16.msra.mxu0 %v159
    %180 = vmatprep.subr.bf16.mxu0 0
    %181 = vmatpush1.bf16.msra.mxu0 %v160
    %182 = vmatprep.subr.bf16.mxu0 0
    %183 = vmatpush1.bf16.msra.mxu0 %v161
    %184 = vmatprep.subr.bf16.mxu0 0
    %185 = vmatpush1.bf16.msra.mxu0 %v162
    %186 = vmatprep.subr.bf16.mxu0 0
    %187 = vmatpush1.bf16.msra.mxu0 %v163
    %188 = vmatprep.subr.bf16.mxu0 0
    %189 = vmatpush1.bf16.msra.mxu0 0
    %190 = vmatprep.subr.bf16.mxu0 0
    %191 = vmatpush1.bf16.msra.mxu0 0
    %192 = vmatprep.subr.bf16.mxu0 0
    %193 = vmatpush1.bf16.msra.mxu0 0
    %194 = vmatprep.subr.bf16.mxu0 0
    %195 = vmatpush1.bf16.msra.mxu0 0
    %196 = vmatprep.subr.bf16.mxu0 0
    %197 = vmatpush1.bf16.msra.mxu0 0
    %198 = vmatprep.subr.bf16.mxu0 0
    %199 = vmatpush1.bf16.msra.mxu0 0
    %200 = vmatprep.subr.bf16.mxu0 0
    %201 = vmatpush1.bf16.msra.mxu0 0
    %202 = vmatprep.subr.bf16.mxu0 0
    %203 = vmatpush1.bf16.msra.mxu0 0
    %204 = vmatprep.mubr.bf16.mxu0 0
    %205 = vmatmul.mubr.bf16.gmra.mrb[0].mxu0 %v113
    %v206 = vpop.f32.mrb[0].mxu0
    %v207 = vadd.f32 %v122, %v206
    %v208 = vpop.f32.mrb[0].mxu0
    %v209 = vpop.f32.mrb[0].mxu0
    %v210 = vadd.f32 %v122, %v209
    %v211 = vpop.f32.mrb[0].mxu0
    %212 = vmatprep.mubr.bf16.mxu0 0
    %213 = vmatmul.mubr.bf16.gmra.mrb[0].mxu0 %v114
    %v214 = vpop.f32.mrb[0].mxu0
    %v215 = vadd.f32 %v122, %v214
    %v216 = vpop.f32.mrb[0].mxu0
    %v217 = vpop.f32.mrb[0].mxu0
    %v218 = vadd.f32 %v122, %v217
    %v219 = vpop.f32.mrb[0].mxu0
    %220 = vmatprep.mubr.bf16.mxu0 0
    %221 = vmatmul.mubr.bf16.gmra.mrb[0].mxu0 %v115
    %v222 = vpop.f32.mrb[0].mxu0
    %v223 = vadd.f32 %v122, %v222
    %v224 = vpop.f32.mrb[0].mxu0
    %v225 = vpop.f32.mrb[0].mxu0
    %v226 = vadd.f32 %v122, %v225
    %v227 = vpop.f32.mrb[0].mxu0
    %228 = vmatprep.mubr.bf16.mxu0 0
    %229 = vmatmul.mubr.bf16.gmra.mrb[0].mxu0 %v116
    %v230 = vpop.f32.mrb[0].mxu0
    %v231 = vadd.f32 %v122, %v230
    %v232 = vpop.f32.mrb[0].mxu0
    %v233 = vpop.f32.mrb[0].mxu0
    %v234 = vadd.f32 %v122, %v233
    %v235 = vpop.f32.mrb[0].mxu0
    %236 = vmatprep.mubr.bf16.mxu0 0
    %237 = vmatmul.mubr.bf16.gmra.mrb[0].mxu0 %v117
    %v238 = vpop.f32.mrb[0].mxu0
    %v239 = vadd.f32 %v122, %v238
    %v240 = vpop.f32.mrb[0].mxu0
    %v241 = vpop.f32.mrb[0].mxu0
    %v242 = vadd.f32 %v122, %v241
    %v243 = vpop.f32.mrb[0].mxu0
    %244 = vdwg.mxu0
    %v245 = vand.u32 2147483647, %v207
    %vm246 = vcmp.le.f32.partialorder %v245, 0.7853982
    %vm247 = vcmp.lt.s32.totalorder %v207, 0
    %v248 = vand.u32 %v207, 2139095040
    %v249 = vshrl.u32 %v248, 23
    %v250 = vsub.s32 %v249, 127
    %v251 = vand.u32 2147483647, %v207
    %v252 = vand.u32 %v251, 8388607
    %v253 = vor.u32 %v252, 8388608
    %v254 = vsub.s32 0, %v253
    %v255 = vadd.s32 %v250, 1
    %vm256 = vcmp.gt.s32.totalorder %v255, 0
    %v257 = vsel %vm256, %v255, 0
    %v258 = vshrl.u32 %v257, 5
    %v259 = vand.u32 %v257, 31
    %v260 = vsub.s32 32, %v259
    %v261 = vshrl.u32 683565275, %v260
    %v262 = vshll.u32 683565275, %v259
    %v263 = vshrl.u32 2475754826, %v260
    %v264 = vor.u32 %v262, %v263
    %v265 = vshll.u32 2475754826, %v259
    %v266 = vshrl.u32 2131351028, %v260
    %v267 = vor.u32 %v265, %v266
    %v268 = vshll.u32 2131351028, %v259
    %v269 = vshrl.u32 2102212464, %v260
    %v270 = vor.u32 %v268, %v269
    %v271 = vshll.u32 2102212464, %v259
    %v272 = vshrl.u32 920167782, %v260
    %v273 = vor.u32 %v271, %v272
    %v274 = vshll.u32 920167782, %v259
    %v275 = vshrl.u32 1326507024, %v260
    %v276 = vor.u32 %v274, %v275
    %vm277 = vcmp.lt.s32.totalorder %v258, 1
    %vm278 = vcmp.lt.s32.totalorder %v258, 2
    %vm279 = vcmp.lt.s32.totalorder %v258, 3
    %vm280 = vcmp.lt.s32.totalorder %v258, 4
    %v281 = vsel %vm277, %v261, %v264
    %v282 = vsel %vm280, %v270, 2102212464
    %v283 = vsel %vm279, %v267, %v282
    %v284 = vsel %vm278, %v281, %v283
    %v285 = vsel %vm277, %v264, %v267
    %v286 = vsel %vm280, %v273, 920167782
    %v287 = vsel %vm279, %v270, %v286
    %v288 = vsel %vm278, %v285, %v287
    %v289 = vsel %vm277, %v267, %v270
    %v290 = vsel %vm280, %v276, 1326507024
    %v291 = vsel %vm279, %v273, %v290
    %v292 = vsel %vm278, %v289, %v291
    %v293 = vshll.u32 %v253, 8
    %v294 = vmul.u32.u64.compose %v293, %v292
    %v295 = vextract.low.u32 %v294
    %v296 = vextract.high.u32 %v294
    %v297 = vmul.u32.u64.compose %v293, %v288
    %v298 = vextract.low.u32 %v297
    %v299 = vextract.high.u32 %v297
    %v300 = vmul.u32 %v293, %v284
    %v301 = vadd.s32 %v296, %v298
    %vm302 = vc.u32 %v296, %v298
    %v303 = vadd.s32 %v299, 1
    %v304 = vsel %vm302, %v303, %v299
    %v305 = vadd.s32 %v300, %v304
    %v306 = vadd.s32 %v305, 536870912
    %v307 = vshrl.u32 %v306, 30
    %v308 = vshll.u32 %v307, 30
    %v309 = vsub.s32 %v305, %v308
    %vm310 = vcmp.lt.s32.totalorder %v309, 0
    %v311 = vsub.s32 0, %v309
    %v312 = vsel %vm310, %v311, %v309
    %v313 = vclz %v312
    %v314 = vsub.s32 %v313, 2
    %vm315 = vcmp.gt.s32.totalorder 0, %v314
    %v316 = vsel %vm315, 0, %v314
    %v317 = vsub.s32 32, %v316
    %v318 = vshll.u32 %v309, %v316
    %v319 = vshrl.u32 %v301, %v317
    %v320 = vor.u32 %v318, %v319
    %v321 = vsub.s32 4294967266, %v316
    %v322 = vadd.s32 %v321, 127
    %v323 = vshll.u32 %v322, 23
    %v324 = vor.u32 4788187, %v323
    %v325 = vand.u32 2147483647, %v324
    %v327 = vcvt.s32.f32 %v320
    %v328 = vmul.f32 %v327, %v325
    %v329 = vxor.u32 %v328, 2147483648
    %v330 = vsel %vm247, %v329, %v328
    %v331 = vsub.s32 4, %v307
    %v332 = vsel %vm247, %v331, %v307
    %v333 = vsel %vm246, %v207, %v330
    %v334 = vsel %vm246, 0, %v332
    %v335 = vcosq.f32.pop %v333
    %v336 = vsinq.f32.pop %v333
    %vm337 = vweird.f32 %v207
    %v338 = vadd.s32 %v334, 3
    %v339 = vand.u32 %v338, 3
    %vm340 = vcmp.lt.s32.totalorder %v339, 2
    %vm341 = vcmp.eq.s32.totalorder %v339, 0
    %v342 = vxor.u32 %v336, 2147483648
    %v343 = vsel %vm341, %v335, %v342
    %vm344 = vcmp.eq.s32.totalorder %v339, 2
    %v345 = vxor.u32 %v335, 2147483648
    %v346 = vsel %vm344, %v345, %v336
    %v347 = vsel %vm340, %v343, %v346
    %v348 = vsel %vm337, nan, %v347
    %v349 = vand.u32 2147483647, %v210
    %vm350 = vcmp.le.f32.partialorder %v349, 0.7853982
    %vm351 = vcmp.lt.s32.totalorder %v210, 0
    %v352 = vand.u32 %v210, 2139095040
    %v353 = vshrl.u32 %v352, 23
    %v354 = vsub.s32 %v353, 127
    %v355 = vand.u32 2147483647, %v210
    %v356 = vand.u32 %v355, 8388607
    %v357 = vor.u32 %v356, 8388608
    %v358 = vsub.s32 0, %v357
    %v359 = vadd.s32 %v354, 1
    %vm360 = vcmp.gt.s32.totalorder %v359, 0
    %v361 = vsel %vm360, %v359, 0
    %v362 = vshrl.u32 %v361, 5
    %v363 = vand.u32 %v361, 31
    %v364 = vsub.s32 32, %v363
    %v365 = vshrl.u32 683565275, %v364
    %v366 = vshll.u32 683565275, %v363
    %v367 = vshrl.u32 2475754826, %v364
    %v368 = vor.u32 %v366, %v367
    %v369 = vshll.u32 2475754826, %v363
    %v370 = vshrl.u32 2131351028, %v364
    %v371 = vor.u32 %v369, %v370
    %v372 = vshll.u32 2131351028, %v363
    %v373 = vshrl.u32 2102212464, %v364
    %v374 = vor.u32 %v372, %v373
    %v375 = vshll.u32 2102212464, %v363
    %v376 = vshrl.u32 920167782, %v364
    %v377 = vor.u32 %v375, %v376
    %v378 = vshll.u32 920167782, %v363
    %v379 = vshrl.u32 1326507024, %v364
    %v380 = vor.u32 %v378, %v379
    %vm381 = vcmp.lt.s32.totalorder %v362, 1
    %vm382 = vcmp.lt.s32.totalorder %v362, 2
    %vm383 = vcmp.lt.s32.totalorder %v362, 3
    %vm384 = vcmp.lt.s32.totalorder %v362, 4
    %v385 = vsel %vm381, %v365, %v368
    %v386 = vsel %vm384, %v374, 2102212464
    %v387 = vsel %vm383, %v371, %v386
    %v388 = vsel %vm382, %v385, %v387
    %v389 = vsel %vm381, %v368, %v371
    %v390 = vsel %vm384, %v377, 920167782
    %v391 = vsel %vm383, %v374, %v390
    %v392 = vsel %vm382, %v389, %v391
    %v393 = vsel %vm381, %v371, %v374
    %v394 = vsel %vm384, %v380, 1326507024
    %v395 = vsel %vm383, %v377, %v394
    %v396 = vsel %vm382, %v393, %v395
    %v397 = vshll.u32 %v357, 8
    %v398 = vmul.u32.u64.compose %v397, %v396
    %v399 = vextract.low.u32 %v398
    %v400 = vextract.high.u32 %v398
    %v401 = vmul.u32.u64.compose %v397, %v392
    %v402 = vextract.low.u32 %v401
    %v403 = vextract.high.u32 %v401
    %v404 = vmul.u32 %v397, %v388
    %v405 = vadd.s32 %v400, %v402
    %vm406 = vc.u32 %v400, %v402
    %v407 = vadd.s32 %v403, 1
    %v408 = vsel %vm406, %v407, %v403
    %v409 = vadd.s32 %v404, %v408
    %v410 = vadd.s32 %v409, 536870912
    %v411 = vshrl.u32 %v410, 30
    %v412 = vshll.u32 %v411, 30
    %v413 = vsub.s32 %v409, %v412
    %vm414 = vcmp.lt.s32.totalorder %v413, 0
    %v415 = vsub.s32 0, %v413
    %v416 = vsel %vm414, %v415, %v413
    %v417 = vclz %v416
    %v418 = vsub.s32 %v417, 2
    %vm419 = vcmp.gt.s32.totalorder 0, %v418
    %v420 = vsel %vm419, 0, %v418
    %v421 = vsub.s32 32, %v420
    %v422 = vshll.u32 %v413, %v420
    %v423 = vshrl.u32 %v405, %v421
    %v424 = vor.u32 %v422, %v423
    %v425 = vsub.s32 4294967266, %v420
    %v426 = vadd.s32 %v425, 127
    %v427 = vshll.u32 %v426, 23
    %v428 = vor.u32 4788187, %v427
    %v429 = vand.u32 2147483647, %v428
    %v431 = vcvt.s32.f32 %v424
    %v432 = vmul.f32 %v431, %v429
    %v433 = vxor.u32 %v432, 2147483648
    %v434 = vsel %vm351, %v433, %v432
    %v435 = vsub.s32 4, %v411
    %v436 = vsel %vm351, %v435, %v411
    %v437 = vsel %vm350, %v210, %v434
    %v438 = vsel %vm350, 0, %v436
    %v439 = vcosq.f32.pop %v437
    %v440 = vsinq.f32.pop %v437
    %vm441 = vweird.f32 %v210
    %v442 = vadd.s32 %v438, 3
    %v443 = vand.u32 %v442, 3
    %vm444 = vcmp.lt.s32.totalorder %v443, 2
    %vm445 = vcmp.eq.s32.totalorder %v443, 0
    %v446 = vxor.u32 %v440, 2147483648
    %v447 = vsel %vm445, %v439, %v446
    %vm448 = vcmp.eq.s32.totalorder %v443, 2
    %v449 = vxor.u32 %v439, 2147483648
    %v450 = vsel %vm448, %v449, %v440
    %v451 = vsel %vm444, %v447, %v450
    %v452 = vsel %vm441, nan, %v451
    %v453 = vand.u32 2147483647, %v215
    %vm454 = vcmp.le.f32.partialorder %v453, 0.7853982
    %vm455 = vcmp.lt.s32.totalorder %v215, 0
    %v456 = vand.u32 %v215, 2139095040
    %v457 = vshrl.u32 %v456, 23
    %v458 = vsub.s32 %v457, 127
    %v459 = vand.u32 2147483647, %v215
    %v460 = vand.u32 %v459, 8388607
    %v461 = vor.u32 %v460, 8388608
    %v462 = vsub.s32 0, %v461
    %v463 = vadd.s32 %v458, 1
    %vm464 = vcmp.gt.s32.totalorder %v463, 0
    %v465 = vsel %vm464, %v463, 0
    %v466 = vshrl.u32 %v465, 5
    %v467 = vand.u32 %v465, 31
    %v468 = vsub.s32 32, %v467
    %v469 = vshrl.u32 683565275, %v468
    %v470 = vshll.u32 683565275, %v467
    %v471 = vshrl.u32 2475754826, %v468
    %v472 = vor.u32 %v470, %v471
    %v473 = vshll.u32 2475754826, %v467
    %v474 = vshrl.u32 2131351028, %v468
    %v475 = vor.u32 %v473, %v474
    %v476 = vshll.u32 2131351028, %v467
    %v477 = vshrl.u32 2102212464, %v468
    %v478 = vor.u32 %v476, %v477
    %v479 = vshll.u32 2102212464, %v467
    %v480 = vshrl.u32 920167782, %v468
    %v481 = vor.u32 %v479, %v480
    %v482 = vshll.u32 920167782, %v467
    %v483 = vshrl.u32 1326507024, %v468
    %v484 = vor.u32 %v482, %v483
    %vm485 = vcmp.lt.s32.totalorder %v466, 1
    %vm486 = vcmp.lt.s32.totalorder %v466, 2
    %vm487 = vcmp.lt.s32.totalorder %v466, 3
    %vm488 = vcmp.lt.s32.totalorder %v466, 4
    %v489 = vsel %vm485, %v469, %v472
    %v490 = vsel %vm488, %v478, 2102212464
    %v491 = vsel %vm487, %v475, %v490
    %v492 = vsel %vm486, %v489, %v491
    %v493 = vsel %vm485, %v472, %v475
    %v494 = vsel %vm488, %v481, 920167782
    %v495 = vsel %vm487, %v478, %v494
    %v496 = vsel %vm486, %v493, %v495
    %v497 = vsel %vm485, %v475, %v478
    %v498 = vsel %vm488, %v484, 1326507024
    %v499 = vsel %vm487, %v481, %v498
    %v500 = vsel %vm486, %v497, %v499
    %v501 = vshll.u32 %v461, 8
    %v502 = vmul.u32.u64.compose %v501, %v500
    %v503 = vextract.low.u32 %v502
    %v504 = vextract.high.u32 %v502
    %v505 = vmul.u32.u64.compose %v501, %v496
    %v506 = vextract.low.u32 %v505
    %v507 = vextract.high.u32 %v505
    %v508 = vmul.u32 %v501, %v492
    %v509 = vadd.s32 %v504, %v506
    %vm510 = vc.u32 %v504, %v506
    %v511 = vadd.s32 %v507, 1
    %v512 = vsel %vm510, %v511, %v507
    %v513 = vadd.s32 %v508, %v512
    %v514 = vadd.s32 %v513, 536870912
    %v515 = vshrl.u32 %v514, 30
    %v516 = vshll.u32 %v515, 30
    %v517 = vsub.s32 %v513, %v516
    %vm518 = vcmp.lt.s32.totalorder %v517, 0
    %v519 = vsub.s32 0, %v517
    %v520 = vsel %vm518, %v519, %v517
    %v521 = vclz %v520
    %v522 = vsub.s32 %v521, 2
    %vm523 = vcmp.gt.s32.totalorder 0, %v522
    %v524 = vsel %vm523, 0, %v522
    %v525 = vsub.s32 32, %v524
    %v526 = vshll.u32 %v517, %v524
    %v527 = vshrl.u32 %v509, %v525
    %v528 = vor.u32 %v526, %v527
    %v529 = vsub.s32 4294967266, %v524
    %v530 = vadd.s32 %v529, 127
    %v531 = vshll.u32 %v530, 23
    %v532 = vor.u32 4788187, %v531
    %v533 = vand.u32 2147483647, %v532
    %v535 = vcvt.s32.f32 %v528
    %v536 = vmul.f32 %v535, %v533
    %v537 = vxor.u32 %v536, 2147483648
    %v538 = vsel %vm455, %v537, %v536
    %v539 = vsub.s32 4, %v515
    %v540 = vsel %vm455, %v539, %v515
    %v541 = vsel %vm454, %v215, %v538
    %v542 = vsel %vm454, 0, %v540
    %v543 = vcosq.f32.pop %v541
    %v544 = vsinq.f32.pop %v541
    %vm545 = vweird.f32 %v215
    %v546 = vadd.s32 %v542, 3
    %v547 = vand.u32 %v546, 3
    %vm548 = vcmp.lt.s32.totalorder %v547, 2
    %vm549 = vcmp.eq.s32.totalorder %v547, 0
    %v550 = vxor.u32 %v544, 2147483648
    %v551 = vsel %vm549, %v543, %v550
    %vm552 = vcmp.eq.s32.totalorder %v547, 2
    %v553 = vxor.u32 %v543, 2147483648
    %v554 = vsel %vm552, %v553, %v544
    %v555 = vsel %vm548, %v551, %v554
    %v556 = vsel %vm545, nan, %v555
    %v557 = vand.u32 2147483647, %v218
    %vm558 = vcmp.le.f32.partialorder %v557, 0.7853982
    %vm559 = vcmp.lt.s32.totalorder %v218, 0
    %v560 = vand.u32 %v218, 2139095040
    %v561 = vshrl.u32 %v560, 23
    %v562 = vsub.s32 %v561, 127
    %v563 = vand.u32 2147483647, %v218
    %v564 = vand.u32 %v563, 8388607
    %v565 = vor.u32 %v564, 8388608
    %v566 = vsub.s32 0, %v565
    %v567 = vadd.s32 %v562, 1
    %vm568 = vcmp.gt.s32.totalorder %v567, 0
    %v569 = vsel %vm568, %v567, 0
    %v570 = vshrl.u32 %v569, 5
    %v571 = vand.u32 %v569, 31
    %v572 = vsub.s32 32, %v571
    %v573 = vshrl.u32 683565275, %v572
    %v574 = vshll.u32 683565275, %v571
    %v575 = vshrl.u32 2475754826, %v572
    %v576 = vor.u32 %v574, %v575
    %v577 = vshll.u32 2475754826, %v571
    %v578 = vshrl.u32 2131351028, %v572
    %v579 = vor.u32 %v577, %v578
    %v580 = vshll.u32 2131351028, %v571
    %v581 = vshrl.u32 2102212464, %v572
    %v582 = vor.u32 %v580, %v581
    %v583 = vshll.u32 2102212464, %v571
    %v584 = vshrl.u32 920167782, %v572
    %v585 = vor.u32 %v583, %v584
    %v586 = vshll.u32 920167782, %v571
    %v587 = vshrl.u32 1326507024, %v572
    %v588 = vor.u32 %v586, %v587
    %vm589 = vcmp.lt.s32.totalorder %v570, 1
    %vm590 = vcmp.lt.s32.totalorder %v570, 2
    %vm591 = vcmp.lt.s32.totalorder %v570, 3
    %vm592 = vcmp.lt.s32.totalorder %v570, 4
    %v593 = vsel %vm589, %v573, %v576
    %v594 = vsel %vm592, %v582, 2102212464
    %v595 = vsel %vm591, %v579, %v594
    %v596 = vsel %vm590, %v593, %v595
    %v597 = vsel %vm589, %v576, %v579
    %v598 = vsel %vm592, %v585, 920167782
    %v599 = vsel %vm591, %v582, %v598
    %v600 = vsel %vm590, %v597, %v599
    %v601 = vsel %vm589, %v579, %v582
    %v602 = vsel %vm592, %v588, 1326507024
    %v603 = vsel %vm591, %v585, %v602
    %v604 = vsel %vm590, %v601, %v603
    %v605 = vshll.u32 %v565, 8
    %v606 = vmul.u32.u64.compose %v605, %v604
    %v607 = vextract.low.u32 %v606
    %v608 = vextract.high.u32 %v606
    %v609 = vmul.u32.u64.compose %v605, %v600
    %v610 = vextract.low.u32 %v609
    %v611 = vextract.high.u32 %v609
    %v612 = vmul.u32 %v605, %v596
    %v613 = vadd.s32 %v608, %v610
    %vm614 = vc.u32 %v608, %v610
    %v615 = vadd.s32 %v611, 1
    %v616 = vsel %vm614, %v615, %v611
    %v617 = vadd.s32 %v612, %v616
    %v618 = vadd.s32 %v617, 536870912
    %v619 = vshrl.u32 %v618, 30
    %v620 = vshll.u32 %v619, 30
    %v621 = vsub.s32 %v617, %v620
    %vm622 = vcmp.lt.s32.totalorder %v621, 0
    %v623 = vsub.s32 0, %v621
    %v624 = vsel %vm622, %v623, %v621
    %v625 = vclz %v624
    %v626 = vsub.s32 %v625, 2
    %vm627 = vcmp.gt.s32.totalorder 0, %v626
    %v628 = vsel %vm627, 0, %v626
    %v629 = vsub.s32 32, %v628
    %v630 = vshll.u32 %v621, %v628
    %v631 = vshrl.u32 %v613, %v629
    %v632 = vor.u32 %v630, %v631
    %v633 = vsub.s32 4294967266, %v628
    %v634 = vadd.s32 %v633, 127
    %v635 = vshll.u32 %v634, 23
    %v636 = vor.u32 4788187, %v635
    %v637 = vand.u32 2147483647, %v636
    %v639 = vcvt.s32.f32 %v632
    %v640 = vmul.f32 %v639, %v637
    %v641 = vxor.u32 %v640, 2147483648
    %v642 = vsel %vm559, %v641, %v640
    %v643 = vsub.s32 4, %v619
    %v644 = vsel %vm559, %v643, %v619
    %v645 = vsel %vm558, %v218, %v642
    %v646 = vsel %vm558, 0, %v644
    %v647 = vcosq.f32.pop %v645
    %v648 = vsinq.f32.pop %v645
    %vm649 = vweird.f32 %v218
    %v650 = vadd.s32 %v646, 3
    %v651 = vand.u32 %v650, 3
    %vm652 = vcmp.lt.s32.totalorder %v651, 2
    %vm653 = vcmp.eq.s32.totalorder %v651, 0
    %v654 = vxor.u32 %v648, 2147483648
    %v655 = vsel %vm653, %v647, %v654
    %vm656 = vcmp.eq.s32.totalorder %v651, 2
    %v657 = vxor.u32 %v647, 2147483648
    %v658 = vsel %vm656, %v657, %v648
    %v659 = vsel %vm652, %v655, %v658
    %v660 = vsel %vm649, nan, %v659
    %v661 = vand.u32 2147483647, %v223
    %vm662 = vcmp.le.f32.partialorder %v661, 0.7853982
    %vm663 = vcmp.lt.s32.totalorder %v223, 0
    %v664 = vand.u32 %v223, 2139095040
    %v665 = vshrl.u32 %v664, 23
    %v666 = vsub.s32 %v665, 127
    %v667 = vand.u32 2147483647, %v223
    %v668 = vand.u32 %v667, 8388607
    %v669 = vor.u32 %v668, 8388608
    %v670 = vsub.s32 0, %v669
    %v671 = vadd.s32 %v666, 1
    %vm672 = vcmp.gt.s32.totalorder %v671, 0
    %v673 = vsel %vm672, %v671, 0
    %v674 = vshrl.u32 %v673, 5
    %v675 = vand.u32 %v673, 31
    %v676 = vsub.s32 32, %v675
    %v677 = vshrl.u32 683565275, %v676
    %v678 = vshll.u32 683565275, %v675
    %v679 = vshrl.u32 2475754826, %v676
    %v680 = vor.u32 %v678, %v679
    %v681 = vshll.u32 2475754826, %v675
    %v682 = vshrl.u32 2131351028, %v676
    %v683 = vor.u32 %v681, %v682
    %v684 = vshll.u32 2131351028, %v675
    %v685 = vshrl.u32 2102212464, %v676
    %v686 = vor.u32 %v684, %v685
    %v687 = vshll.u32 2102212464, %v675
    %v688 = vshrl.u32 920167782, %v676
    %v689 = vor.u32 %v687, %v688
    %v690 = vshll.u32 920167782, %v675
    %v691 = vshrl.u32 1326507024, %v676
    %v692 = vor.u32 %v690, %v691
    %vm693 = vcmp.lt.s32.totalorder %v674, 1
    %vm694 = vcmp.lt.s32.totalorder %v674, 2
    %vm695 = vcmp.lt.s32.totalorder %v674, 3
    %vm696 = vcmp.lt.s32.totalorder %v674, 4
    %v697 = vsel %vm693, %v677, %v680
    %v698 = vsel %vm696, %v686, 2102212464
    %v699 = vsel %vm695, %v683, %v698
    %v700 = vsel %vm694, %v697, %v699
    %v701 = vsel %vm693, %v680, %v683
    %v702 = vsel %vm696, %v689, 920167782
    %v703 = vsel %vm695, %v686, %v702
    %v704 = vsel %vm694, %v701, %v703
    %v705 = vsel %vm693, %v683, %v686
    %v706 = vsel %vm696, %v692, 1326507024
    %v707 = vsel %vm695, %v689, %v706
    %v708 = vsel %vm694, %v705, %v707
    %v709 = vshll.u32 %v669, 8
    %v710 = vmul.u32.u64.compose %v709, %v708
    %v711 = vextract.low.u32 %v710
    %v712 = vextract.high.u32 %v710
    %v713 = vmul.u32.u64.compose %v709, %v704
    %v714 = vextract.low.u32 %v713
    %v715 = vextract.high.u32 %v713
    %v716 = vmul.u32 %v709, %v700
    %v717 = vadd.s32 %v712, %v714
    %vm718 = vc.u32 %v712, %v714
    %v719 = vadd.s32 %v715, 1
    %v720 = vsel %vm718, %v719, %v715
    %v721 = vadd.s32 %v716, %v720
    %v722 = vadd.s32 %v721, 536870912
    %v723 = vshrl.u32 %v722, 30
    %v724 = vshll.u32 %v723, 30
    %v725 = vsub.s32 %v721, %v724
    %vm726 = vcmp.lt.s32.totalorder %v725, 0
    %v727 = vsub.s32 0, %v725
    %v728 = vsel %vm726, %v727, %v725
    %v729 = vclz %v728
    %v730 = vsub.s32 %v729, 2
    %vm731 = vcmp.gt.s32.totalorder 0, %v730
    %v732 = vsel %vm731, 0, %v730
    %v733 = vsub.s32 32, %v732
    %v734 = vshll.u32 %v725, %v732
    %v735 = vshrl.u32 %v717, %v733
    %v736 = vor.u32 %v734, %v735
    %v737 = vsub.s32 4294967266, %v732
    %v738 = vadd.s32 %v737, 127
    %v739 = vshll.u32 %v738, 23
    %v740 = vor.u32 4788187, %v739
    %v741 = vand.u32 2147483647, %v740
    %v743 = vcvt.s32.f32 %v736
    %v744 = vmul.f32 %v743, %v741
    %v745 = vxor.u32 %v744, 2147483648
    %v746 = vsel %vm663, %v745, %v744
    %v747 = vsub.s32 4, %v723
    %v748 = vsel %vm663, %v747, %v723
    %v749 = vsel %vm662, %v223, %v746
    %v750 = vsel %vm662, 0, %v748
    %v751 = vcosq.f32.pop %v749
    %v752 = vsinq.f32.pop %v749
    %vm753 = vweird.f32 %v223
    %v754 = vadd.s32 %v750, 3
    %v755 = vand.u32 %v754, 3
    %vm756 = vcmp.lt.s32.totalorder %v755, 2
    %vm757 = vcmp.eq.s32.totalorder %v755, 0
    %v758 = vxor.u32 %v752, 2147483648
    %v759 = vsel %vm757, %v751, %v758
    %vm760 = vcmp.eq.s32.totalorder %v755, 2
    %v761 = vxor.u32 %v751, 2147483648
    %v762 = vsel %vm760, %v761, %v752
    %v763 = vsel %vm756, %v759, %v762
    %v764 = vsel %vm753, nan, %v763
    %v765 = vand.u32 2147483647, %v226
    %vm766 = vcmp.le.f32.partialorder %v765, 0.7853982
    %vm767 = vcmp.lt.s32.totalorder %v226, 0
    %v768 = vand.u32 %v226, 2139095040
    %v769 = vshrl.u32 %v768, 23
    %v770 = vsub.s32 %v769, 127
    %v771 = vand.u32 2147483647, %v226
    %v772 = vand.u32 %v771, 8388607
    %v773 = vor.u32 %v772, 8388608
    %v774 = vsub.s32 0, %v773
    %v775 = vadd.s32 %v770, 1
    %vm776 = vcmp.gt.s32.totalorder %v775, 0
    %v777 = vsel %vm776, %v775, 0
    %v778 = vshrl.u32 %v777, 5
    %v779 = vand.u32 %v777, 31
    %v780 = vsub.s32 32, %v779
    %v781 = vshrl.u32 683565275, %v780
    %v782 = vshll.u32 683565275, %v779
    %v783 = vshrl.u32 2475754826, %v780
    %v784 = vor.u32 %v782, %v783
    %v785 = vshll.u32 2475754826, %v779
    %v786 = vshrl.u32 2131351028, %v780
    %v787 = vor.u32 %v785, %v786
    %v788 = vshll.u32 2131351028, %v779
    %v789 = vshrl.u32 2102212464, %v780
    %v790 = vor.u32 %v788, %v789
    %v791 = vshll.u32 2102212464, %v779
    %v792 = vshrl.u32 920167782, %v780
    %v793 = vor.u32 %v791, %v792
    %v794 = vshll.u32 920167782, %v779
    %v795 = vshrl.u32 1326507024, %v780
    %v796 = vor.u32 %v794, %v795
    %vm797 = vcmp.lt.s32.totalorder %v778, 1
    %vm798 = vcmp.lt.s32.totalorder %v778, 2
    %vm799 = vcmp.lt.s32.totalorder %v778, 3
    %vm800 = vcmp.lt.s32.totalorder %v778, 4
    %v801 = vsel %vm797, %v781, %v784
    %v802 = vsel %vm800, %v790, 2102212464
    %v803 = vsel %vm799, %v787, %v802
    %v804 = vsel %vm798, %v801, %v803
    %v805 = vsel %vm797, %v784, %v787
    %v806 = vsel %vm800, %v793, 920167782
    %v807 = vsel %vm799, %v790, %v806
    %v808 = vsel %vm798, %v805, %v807
    %v809 = vsel %vm797, %v787, %v790
    %v810 = vsel %vm800, %v796, 1326507024
    %v811 = vsel %vm799, %v793, %v810
    %v812 = vsel %vm798, %v809, %v811
    %v813 = vshll.u32 %v773, 8
    %v814 = vmul.u32.u64.compose %v813, %v812
    %v815 = vextract.low.u32 %v814
    %v816 = vextract.high.u32 %v814
    %v817 = vmul.u32.u64.compose %v813, %v808
    %v818 = vextract.low.u32 %v817
    %v819 = vextract.high.u32 %v817
    %v820 = vmul.u32 %v813, %v804
    %v821 = vadd.s32 %v816, %v818
    %vm822 = vc.u32 %v816, %v818
    %v823 = vadd.s32 %v819, 1
    %v824 = vsel %vm822, %v823, %v819
    %v825 = vadd.s32 %v820, %v824
    %v826 = vadd.s32 %v825, 536870912
    %v827 = vshrl.u32 %v826, 30
    %v828 = vshll.u32 %v827, 30
    %v829 = vsub.s32 %v825, %v828
    %vm830 = vcmp.lt.s32.totalorder %v829, 0
    %v831 = vsub.s32 0, %v829
    %v832 = vsel %vm830, %v831, %v829
    %v833 = vclz %v832
    %v834 = vsub.s32 %v833, 2
    %vm835 = vcmp.gt.s32.totalorder 0, %v834
    %v836 = vsel %vm835, 0, %v834
    %v837 = vsub.s32 32, %v836
    %v838 = vshll.u32 %v829, %v836
    %v839 = vshrl.u32 %v821, %v837
    %v840 = vor.u32 %v838, %v839
    %v841 = vsub.s32 4294967266, %v836
    %v842 = vadd.s32 %v841, 127
    %v843 = vshll.u32 %v842, 23
    %v844 = vor.u32 4788187, %v843
    %v845 = vand.u32 2147483647, %v844
    %v847 = vcvt.s32.f32 %v840
    %v848 = vmul.f32 %v847, %v845
    %v849 = vxor.u32 %v848, 2147483648
    %v850 = vsel %vm767, %v849, %v848
    %v851 = vsub.s32 4, %v827
    %v852 = vsel %vm767, %v851, %v827
    %v853 = vsel %vm766, %v226, %v850
    %v854 = vsel %vm766, 0, %v852
    %v855 = vcosq.f32.pop %v853
    %v856 = vsinq.f32.pop %v853
    %vm857 = vweird.f32 %v226
    %v858 = vadd.s32 %v854, 3
    %v859 = vand.u32 %v858, 3
    %vm860 = vcmp.lt.s32.totalorder %v859, 2
    %vm861 = vcmp.eq.s32.totalorder %v859, 0
    %v862 = vxor.u32 %v856, 2147483648
    %v863 = vsel %vm861, %v855, %v862
    %vm864 = vcmp.eq.s32.totalorder %v859, 2
    %v865 = vxor.u32 %v855, 2147483648
    %v866 = vsel %vm864, %v865, %v856
    %v867 = vsel %vm860, %v863, %v866
    %v868 = vsel %vm857, nan, %v867
    %v869 = vand.u32 2147483647, %v231
    %vm870 = vcmp.le.f32.partialorder %v869, 0.7853982
    %vm871 = vcmp.lt.s32.totalorder %v231, 0
    %v872 = vand.u32 %v231, 2139095040
    %v873 = vshrl.u32 %v872, 23
    %v874 = vsub.s32 %v873, 127
    %v875 = vand.u32 2147483647, %v231
    %v876 = vand.u32 %v875, 8388607
    %v877 = vor.u32 %v876, 8388608
    %v878 = vsub.s32 0, %v877
    %v879 = vadd.s32 %v874, 1
    %vm880 = vcmp.gt.s32.totalorder %v879, 0
    %v881 = vsel %vm880, %v879, 0
    %v882 = vshrl.u32 %v881, 5
    %v883 = vand.u32 %v881, 31
    %v884 = vsub.s32 32, %v883
    %v885 = vshrl.u32 683565275, %v884
    %v886 = vshll.u32 683565275, %v883
    %v887 = vshrl.u32 2475754826, %v884
    %v888 = vor.u32 %v886, %v887
    %v889 = vshll.u32 2475754826, %v883
    %v890 = vshrl.u32 2131351028, %v884
    %v891 = vor.u32 %v889, %v890
    %v892 = vshll.u32 2131351028, %v883
    %v893 = vshrl.u32 2102212464, %v884
    %v894 = vor.u32 %v892, %v893
    %v895 = vshll.u32 2102212464, %v883
    %v896 = vshrl.u32 920167782, %v884
    %v897 = vor.u32 %v895, %v896
    %v898 = vshll.u32 920167782, %v883
    %v899 = vshrl.u32 1326507024, %v884
    %v900 = vor.u32 %v898, %v899
    %vm901 = vcmp.lt.s32.totalorder %v882, 1
    %vm902 = vcmp.lt.s32.totalorder %v882, 2
    %vm903 = vcmp.lt.s32.totalorder %v882, 3
    %vm904 = vcmp.lt.s32.totalorder %v882, 4
    %v905 = vsel %vm901, %v885, %v888
    %v906 = vsel %vm904, %v894, 2102212464
    %v907 = vsel %vm903, %v891, %v906
    %v908 = vsel %vm902, %v905, %v907
    %v909 = vsel %vm901, %v888, %v891
    %v910 = vsel %vm904, %v897, 920167782
    %v911 = vsel %vm903, %v894, %v910
    %v912 = vsel %vm902, %v909, %v911
    %v913 = vsel %vm901, %v891, %v894
    %v914 = vsel %vm904, %v900, 1326507024
    %v915 = vsel %vm903, %v897, %v914
    %v916 = vsel %vm902, %v913, %v915
    %v917 = vshll.u32 %v877, 8
    %v918 = vmul.u32.u64.compose %v917, %v916
    %v919 = vextract.low.u32 %v918
    %v920 = vextract.high.u32 %v918
    %v921 = vmul.u32.u64.compose %v917, %v912
    %v922 = vextract.low.u32 %v921
    %v923 = vextract.high.u32 %v921
    %v924 = vmul.u32 %v917, %v908
    %v925 = vadd.s32 %v920, %v922
    %vm926 = vc.u32 %v920, %v922
    %v927 = vadd.s32 %v923, 1
    %v928 = vsel %vm926, %v927, %v923
    %v929 = vadd.s32 %v924, %v928
    %v930 = vadd.s32 %v929, 536870912
    %v931 = vshrl.u32 %v930, 30
    %v932 = vshll.u32 %v931, 30
    %v933 = vsub.s32 %v929, %v932
    %vm934 = vcmp.lt.s32.totalorder %v933, 0
    %v935 = vsub.s32 0, %v933
    %v936 = vsel %vm934, %v935, %v933
    %v937 = vclz %v936
    %v938 = vsub.s32 %v937, 2
    %vm939 = vcmp.gt.s32.totalorder 0, %v938
    %v940 = vsel %vm939, 0, %v938
    %v941 = vsub.s32 32, %v940
    %v942 = vshll.u32 %v933, %v940
    %v943 = vshrl.u32 %v925, %v941
    %v944 = vor.u32 %v942, %v943
    %v945 = vsub.s32 4294967266, %v940
    %v946 = vadd.s32 %v945, 127
    %v947 = vshll.u32 %v946, 23
    %v948 = vor.u32 4788187, %v947
    %v949 = vand.u32 2147483647, %v948
    %v951 = vcvt.s32.f32 %v944
    %v952 = vmul.f32 %v951, %v949
    %v953 = vxor.u32 %v952, 2147483648
    %v954 = vsel %vm871, %v953, %v952
    %v955 = vsub.s32 4, %v931
    %v956 = vsel %vm871, %v955, %v931
    %v957 = vsel %vm870, %v231, %v954
    %v958 = vsel %vm870, 0, %v956
    %v959 = vcosq.f32.pop %v957
    %v960 = vsinq.f32.pop %v957
    %vm961 = vweird.f32 %v231
    %v962 = vadd.s32 %v958, 3
    %v963 = vand.u32 %v962, 3
    %vm964 = vcmp.lt.s32.totalorder %v963, 2
    %vm965 = vcmp.eq.s32.totalorder %v963, 0
    %v966 = vxor.u32 %v960, 2147483648
    %v967 = vsel %vm965, %v959, %v966
    %vm968 = vcmp.eq.s32.totalorder %v963, 2
    %v969 = vxor.u32 %v959, 2147483648
    %v970 = vsel %vm968, %v969, %v960
    %v971 = vsel %vm964, %v967, %v970
    %v972 = vsel %vm961, nan, %v971
    %v973 = vand.u32 2147483647, %v234
    %vm974 = vcmp.le.f32.partialorder %v973, 0.7853982
    %vm975 = vcmp.lt.s32.totalorder %v234, 0
    %v976 = vand.u32 %v234, 2139095040
    %v977 = vshrl.u32 %v976, 23
    %v978 = vsub.s32 %v977, 127
    %v979 = vand.u32 2147483647, %v234
    %v980 = vand.u32 %v979, 8388607
    %v981 = vor.u32 %v980, 8388608
    %v982 = vsub.s32 0, %v981
    %v983 = vadd.s32 %v978, 1
    %vm984 = vcmp.gt.s32.totalorder %v983, 0
    %v985 = vsel %vm984, %v983, 0
    %v986 = vshrl.u32 %v985, 5
    %v987 = vand.u32 %v985, 31
    %v988 = vsub.s32 32, %v987
    %v989 = vshrl.u32 683565275, %v988
    %v990 = vshll.u32 683565275, %v987
    %v991 = vshrl.u32 2475754826, %v988
    %v992 = vor.u32 %v990, %v991
    %v993 = vshll.u32 2475754826, %v987
    %v994 = vshrl.u32 2131351028, %v988
    %v995 = vor.u32 %v993, %v994
    %v996 = vshll.u32 2131351028, %v987
    %v997 = vshrl.u32 2102212464, %v988
    %v998 = vor.u32 %v996, %v997
    %v999 = vshll.u32 2102212464, %v987
    %v1000 = vshrl.u32 920167782, %v988
    %v1001 = vor.u32 %v999, %v1000
    %v1002 = vshll.u32 920167782, %v987
    %v1003 = vshrl.u32 1326507024, %v988
    %v1004 = vor.u32 %v1002, %v1003
    %vm1005 = vcmp.lt.s32.totalorder %v986, 1
    %vm1006 = vcmp.lt.s32.totalorder %v986, 2
    %vm1007 = vcmp.lt.s32.totalorder %v986, 3
    %vm1008 = vcmp.lt.s32.totalorder %v986, 4
    %v1009 = vsel %vm1005, %v989, %v992
    %v1010 = vsel %vm1008, %v998, 2102212464
    %v1011 = vsel %vm1007, %v995, %v1010
    %v1012 = vsel %vm1006, %v1009, %v1011
    %v1013 = vsel %vm1005, %v992, %v995
    %v1014 = vsel %vm1008, %v1001, 920167782
    %v1015 = vsel %vm1007, %v998, %v1014
    %v1016 = vsel %vm1006, %v1013, %v1015
    %v1017 = vsel %vm1005, %v995, %v998
    %v1018 = vsel %vm1008, %v1004, 1326507024
    %v1019 = vsel %vm1007, %v1001, %v1018
    %v1020 = vsel %vm1006, %v1017, %v1019
    %v1021 = vshll.u32 %v981, 8
    %v1022 = vmul.u32.u64.compose %v1021, %v1020
    %v1023 = vextract.low.u32 %v1022
    %v1024 = vextract.high.u32 %v1022
    %v1025 = vmul.u32.u64.compose %v1021, %v1016
    %v1026 = vextract.low.u32 %v1025
    %v1027 = vextract.high.u32 %v1025
    %v1028 = vmul.u32 %v1021, %v1012
    %v1029 = vadd.s32 %v1024, %v1026
    %vm1030 = vc.u32 %v1024, %v1026
    %v1031 = vadd.s32 %v1027, 1
    %v1032 = vsel %vm1030, %v1031, %v1027
    %v1033 = vadd.s32 %v1028, %v1032
    %v1034 = vadd.s32 %v1033, 536870912
    %v1035 = vshrl.u32 %v1034, 30
    %v1036 = vshll.u32 %v1035, 30
    %v1037 = vsub.s32 %v1033, %v1036
    %vm1038 = vcmp.lt.s32.totalorder %v1037, 0
    %v1039 = vsub.s32 0, %v1037
    %v1040 = vsel %vm1038, %v1039, %v1037
    %v1041 = vclz %v1040
    %v1042 = vsub.s32 %v1041, 2
    %vm1043 = vcmp.gt.s32.totalorder 0, %v1042
    %v1044 = vsel %vm1043, 0, %v1042
    %v1045 = vsub.s32 32, %v1044
    %v1046 = vshll.u32 %v1037, %v1044
    %v1047 = vshrl.u32 %v1029, %v1045
    %v1048 = vor.u32 %v1046, %v1047
    %v1049 = vsub.s32 4294967266, %v1044
    %v1050 = vadd.s32 %v1049, 127
    %v1051 = vshll.u32 %v1050, 23
    %v1052 = vor.u32 4788187, %v1051
    %v1053 = vand.u32 2147483647, %v1052
    %v1055 = vcvt.s32.f32 %v1048
    %v1056 = vmul.f32 %v1055, %v1053
    %v1057 = vxor.u32 %v1056, 2147483648
    %v1058 = vsel %vm975, %v1057, %v1056
    %v1059 = vsub.s32 4, %v1035
    %v1060 = vsel %vm975, %v1059, %v1035
    %v1061 = vsel %vm974, %v234, %v1058
    %v1062 = vsel %vm974, 0, %v1060
    %v1063 = vcosq.f32.pop %v1061
    %v1064 = vsinq.f32.pop %v1061
    %vm1065 = vweird.f32 %v234
    %v1066 = vadd.s32 %v1062, 3
    %v1067 = vand.u32 %v1066, 3
    %vm1068 = vcmp.lt.s32.totalorder %v1067, 2
    %vm1069 = vcmp.eq.s32.totalorder %v1067, 0
    %v1070 = vxor.u32 %v1064, 2147483648
    %v1071 = vsel %vm1069, %v1063, %v1070
    %vm1072 = vcmp.eq.s32.totalorder %v1067, 2
    %v1073 = vxor.u32 %v1063, 2147483648
    %v1074 = vsel %vm1072, %v1073, %v1064
    %v1075 = vsel %vm1068, %v1071, %v1074
    %v1076 = vsel %vm1065, nan, %v1075
    %v1077 = vand.u32 2147483647, %v239
    %vm1078 = vcmp.le.f32.partialorder %v1077, 0.7853982
    %vm1079 = vcmp.lt.s32.totalorder %v239, 0
    %v1080 = vand.u32 %v239, 2139095040
    %v1081 = vshrl.u32 %v1080, 23
    %v1082 = vsub.s32 %v1081, 127
    %v1083 = vand.u32 2147483647, %v239
    %v1084 = vand.u32 %v1083, 8388607
    %v1085 = vor.u32 %v1084, 8388608
    %v1086 = vsub.s32 0, %v1085
    %v1087 = vadd.s32 %v1082, 1
    %vm1088 = vcmp.gt.s32.totalorder %v1087, 0
    %v1089 = vsel %vm1088, %v1087, 0
    %v1090 = vshrl.u32 %v1089, 5
    %v1091 = vand.u32 %v1089, 31
    %v1092 = vsub.s32 32, %v1091
    %v1093 = vshrl.u32 683565275, %v1092
    %v1094 = vshll.u32 683565275, %v1091
    %v1095 = vshrl.u32 2475754826, %v1092
    %v1096 = vor.u32 %v1094, %v1095
    %v1097 = vshll.u32 2475754826, %v1091
    %v1098 = vshrl.u32 2131351028, %v1092
    %v1099 = vor.u32 %v1097, %v1098
    %v1100 = vshll.u32 2131351028, %v1091
    %v1101 = vshrl.u32 2102212464, %v1092
    %v1102 = vor.u32 %v1100, %v1101
    %v1103 = vshll.u32 2102212464, %v1091
    %v1104 = vshrl.u32 920167782, %v1092
    %v1105 = vor.u32 %v1103, %v1104
    %v1106 = vshll.u32 920167782, %v1091
    %v1107 = vshrl.u32 1326507024, %v1092
    %v1108 = vor.u32 %v1106, %v1107
    %vm1109 = vcmp.lt.s32.totalorder %v1090, 1
    %vm1110 = vcmp.lt.s32.totalorder %v1090, 2
    %vm1111 = vcmp.lt.s32.totalorder %v1090, 3
    %vm1112 = vcmp.lt.s32.totalorder %v1090, 4
    %v1113 = vsel %vm1109, %v1093, %v1096
    %v1114 = vsel %vm1112, %v1102, 2102212464
    %v1115 = vsel %vm1111, %v1099, %v1114
    %v1116 = vsel %vm1110, %v1113, %v1115
    %v1117 = vsel %vm1109, %v1096, %v1099
    %v1118 = vsel %vm1112, %v1105, 920167782
    %v1119 = vsel %vm1111, %v1102, %v1118
    %v1120 = vsel %vm1110, %v1117, %v1119
    %v1121 = vsel %vm1109, %v1099, %v1102
    %v1122 = vsel %vm1112, %v1108, 1326507024
    %v1123 = vsel %vm1111, %v1105, %v1122
    %v1124 = vsel %vm1110, %v1121, %v1123
    %v1125 = vshll.u32 %v1085, 8
    %v1126 = vmul.u32.u64.compose %v1125, %v1124
    %v1127 = vextract.low.u32 %v1126
    %v1128 = vextract.high.u32 %v1126
    %v1129 = vmul.u32.u64.compose %v1125, %v1120
    %v1130 = vextract.low.u32 %v1129
    %v1131 = vextract.high.u32 %v1129
    %v1132 = vmul.u32 %v1125, %v1116
    %v1133 = vadd.s32 %v1128, %v1130
    %vm1134 = vc.u32 %v1128, %v1130
    %v1135 = vadd.s32 %v1131, 1
    %v1136 = vsel %vm1134, %v1135, %v1131
    %v1137 = vadd.s32 %v1132, %v1136
    %v1138 = vadd.s32 %v1137, 536870912
    %v1139 = vshrl.u32 %v1138, 30
    %v1140 = vshll.u32 %v1139, 30
    %v1141 = vsub.s32 %v1137, %v1140
    %vm1142 = vcmp.lt.s32.totalorder %v1141, 0
    %v1143 = vsub.s32 0, %v1141
    %v1144 = vsel %vm1142, %v1143, %v1141
    %v1145 = vclz %v1144
    %v1146 = vsub.s32 %v1145, 2
    %vm1147 = vcmp.gt.s32.totalorder 0, %v1146
    %v1148 = vsel %vm1147, 0, %v1146
    %v1149 = vsub.s32 32, %v1148
    %v1150 = vshll.u32 %v1141, %v1148
    %v1151 = vshrl.u32 %v1133, %v1149
    %v1152 = vor.u32 %v1150, %v1151
    %v1153 = vsub.s32 4294967266, %v1148
    %v1154 = vadd.s32 %v1153, 127
    %v1155 = vshll.u32 %v1154, 23
    %v1156 = vor.u32 4788187, %v1155
    %v1157 = vand.u32 2147483647, %v1156
    %v1159 = vcvt.s32.f32 %v1152
    %v1160 = vmul.f32 %v1159, %v1157
    %v1161 = vxor.u32 %v1160, 2147483648
    %v1162 = vsel %vm1079, %v1161, %v1160
    %v1163 = vsub.s32 4, %v1139
    %v1164 = vsel %vm1079, %v1163, %v1139
    %v1165 = vsel %vm1078, %v239, %v1162
    %v1166 = vsel %vm1078, 0, %v1164
    %v1167 = vcosq.f32.pop %v1165
    %v1168 = vsinq.f32.pop %v1165
    %vm1169 = vweird.f32 %v239
    %v1170 = vadd.s32 %v1166, 3
    %v1171 = vand.u32 %v1170, 3
    %vm1172 = vcmp.lt.s32.totalorder %v1171, 2
    %vm1173 = vcmp.eq.s32.totalorder %v1171, 0
    %v1174 = vxor.u32 %v1168, 2147483648
    %v1175 = vsel %vm1173, %v1167, %v1174
    %vm1176 = vcmp.eq.s32.totalorder %v1171, 2
    %v1177 = vxor.u32 %v1167, 2147483648
    %v1178 = vsel %vm1176, %v1177, %v1168
    %v1179 = vsel %vm1172, %v1175, %v1178
    %v1180 = vsel %vm1169, nan, %v1179
    %v1181 = vand.u32 2147483647, %v242
    %vm1182 = vcmp.le.f32.partialorder %v1181, 0.7853982
    %vm1183 = vcmp.lt.s32.totalorder %v242, 0
    %v1184 = vand.u32 %v242, 2139095040
    %v1185 = vshrl.u32 %v1184, 23
    %v1186 = vsub.s32 %v1185, 127
    %v1187 = vand.u32 2147483647, %v242
    %v1188 = vand.u32 %v1187, 8388607
    %v1189 = vor.u32 %v1188, 8388608
    %v1190 = vsub.s32 0, %v1189
    %v1191 = vadd.s32 %v1186, 1
    %vm1192 = vcmp.gt.s32.totalorder %v1191, 0
    %v1193 = vsel %vm1192, %v1191, 0
    %v1194 = vshrl.u32 %v1193, 5
    %v1195 = vand.u32 %v1193, 31
    %v1196 = vsub.s32 32, %v1195
    %v1197 = vshrl.u32 683565275, %v1196
    %v1198 = vshll.u32 683565275, %v1195
    %v1199 = vshrl.u32 2475754826, %v1196
    %v1200 = vor.u32 %v1198, %v1199
    %v1201 = vshll.u32 2475754826, %v1195
    %v1202 = vshrl.u32 2131351028, %v1196
    %v1203 = vor.u32 %v1201, %v1202
    %v1204 = vshll.u32 2131351028, %v1195
    %v1205 = vshrl.u32 2102212464, %v1196
    %v1206 = vor.u32 %v1204, %v1205
    %v1207 = vshll.u32 2102212464, %v1195
    %v1208 = vshrl.u32 920167782, %v1196
    %v1209 = vor.u32 %v1207, %v1208
    %v1210 = vshll.u32 920167782, %v1195
    %v1211 = vshrl.u32 1326507024, %v1196
    %v1212 = vor.u32 %v1210, %v1211
    %vm1213 = vcmp.lt.s32.totalorder %v1194, 1
    %vm1214 = vcmp.lt.s32.totalorder %v1194, 2
    %vm1215 = vcmp.lt.s32.totalorder %v1194, 3
    %vm1216 = vcmp.lt.s32.totalorder %v1194, 4
    %v1217 = vsel %vm1213, %v1197, %v1200
    %v1218 = vsel %vm1216, %v1206, 2102212464
    %v1219 = vsel %vm1215, %v1203, %v1218
    %v1220 = vsel %vm1214, %v1217, %v1219
    %v1221 = vsel %vm1213, %v1200, %v1203
    %v1222 = vsel %vm1216, %v1209, 920167782
    %v1223 = vsel %vm1215, %v1206, %v1222
    %v1224 = vsel %vm1214, %v1221, %v1223
    %v1225 = vsel %vm1213, %v1203, %v1206
    %v1226 = vsel %vm1216, %v1212, 1326507024
    %v1227 = vsel %vm1215, %v1209, %v1226
    %v1228 = vsel %vm1214, %v1225, %v1227
    %v1229 = vshll.u32 %v1189, 8
    %v1230 = vmul.u32.u64.compose %v1229, %v1228
    %v1231 = vextract.low.u32 %v1230
    %v1232 = vextract.high.u32 %v1230
    %v1233 = vmul.u32.u64.compose %v1229, %v1224
    %v1234 = vextract.low.u32 %v1233
    %v1235 = vextract.high.u32 %v1233
    %v1236 = vmul.u32 %v1229, %v1220
    %v1237 = vadd.s32 %v1232, %v1234
    %vm1238 = vc.u32 %v1232, %v1234
    %v1239 = vadd.s32 %v1235, 1
    %v1240 = vsel %vm1238, %v1239, %v1235
    %v1241 = vadd.s32 %v1236, %v1240
    %v1242 = vadd.s32 %v1241, 536870912
    %v1243 = vshrl.u32 %v1242, 30
    %v1244 = vshll.u32 %v1243, 30
    %v1245 = vsub.s32 %v1241, %v1244
    %vm1246 = vcmp.lt.s32.totalorder %v1245, 0
    %v1247 = vsub.s32 0, %v1245
    %v1248 = vsel %vm1246, %v1247, %v1245
    %v1249 = vclz %v1248
    %v1250 = vsub.s32 %v1249, 2
    %vm1251 = vcmp.gt.s32.totalorder 0, %v1250
    %v1252 = vsel %vm1251, 0, %v1250
    %v1253 = vsub.s32 32, %v1252
    %v1254 = vshll.u32 %v1245, %v1252
    %v1255 = vshrl.u32 %v1237, %v1253
    %v1256 = vor.u32 %v1254, %v1255
    %v1257 = vsub.s32 4294967266, %v1252
    %v1258 = vadd.s32 %v1257, 127
    %v1259 = vshll.u32 %v1258, 23
    %v1260 = vor.u32 4788187, %v1259
    %v1261 = vand.u32 2147483647, %v1260
    %v1263 = vcvt.s32.f32 %v1256
    %v1264 = vmul.f32 %v1263, %v1261
    %v1265 = vxor.u32 %v1264, 2147483648
    %v1266 = vsel %vm1183, %v1265, %v1264
    %v1267 = vsub.s32 4, %v1243
    %v1268 = vsel %vm1183, %v1267, %v1243
    %v1269 = vsel %vm1182, %v242, %v1266
    %v1270 = vsel %vm1182, 0, %v1268
    %v1271 = vcosq.f32.pop %v1269
    %v1272 = vsinq.f32.pop %v1269
    %vm1273 = vweird.f32 %v242
    %v1274 = vadd.s32 %v1270, 3
    %v1275 = vand.u32 %v1274, 3
    %vm1276 = vcmp.lt.s32.totalorder %v1275, 2
    %vm1277 = vcmp.eq.s32.totalorder %v1275, 0
    %v1278 = vxor.u32 %v1272, 2147483648
    %v1279 = vsel %vm1277, %v1271, %v1278
    %vm1280 = vcmp.eq.s32.totalorder %v1275, 2
    %v1281 = vxor.u32 %v1271, 2147483648
    %v1282 = vsel %vm1280, %v1281, %v1272
    %v1283 = vsel %vm1276, %v1279, %v1282
    %v1284 = vsel %vm1273, nan, %v1283
    %v1285 = vld [vmem:[#allocation3] sm:$0xf]
    %v1286 = vld [vmem:[#allocation3 + $0x4] sm:$0xf]
    %v1287 = vld [vmem:[#allocation3 + $0x8] sm:$0xf]
    %v1288 = vld [vmem:[#allocation3 + $0xc] sm:$0xf]
    %v1289 = vld [vmem:[#allocation3 + $0x10] sm:$0xf]
    %v1290 = vld [vmem:[#allocation3 + $0x14] sm:$0xf]
    %v1291 = vld [vmem:[#allocation3 + $0x18] sm:$0xf]
    %v1292 = vld [vmem:[#allocation3 + $0x1c] sm:$0xf]
    %v1293 = vld [vmem:[#allocation3 + $0x20] sm:$0xf]
    %v1294 = vld [vmem:[#allocation3 + $0x24] sm:$0xf]
    %v1295 = vld [vmem:[#allocation3 + $0x28] sm:$0xf]
    %v1296 = vld [vmem:[#allocation3 + $0x2c] sm:$0xf]
    %v1297 = vld [vmem:[#allocation3 + $0x30] sm:$0xf]
    %v1298 = vld [vmem:[#allocation3 + $0x34] sm:$0xf]
    %v1299 = vld [vmem:[#allocation3 + $0x38] sm:$0xf]
    %v1300 = vld [vmem:[#allocation3 + $0x3c] sm:$0xf]
    %v1301 = vld [vmem:[%s4] sm:$0x1]
    %v1302 = vpack.c.bf16 %v452, %v348
    %v1303 = vpack.c.bf16 %v660, %v556
    %v1304 = vpack.c.bf16 %v868, %v764
    %v1305 = vpack.c.bf16 %v1076, %v972
    %v1306 = vpack.c.bf16 %v1284, %v1180
    %v1308 = vlaneseq
    %v1309 = vshrl.u32 %v1308, 7
    %v1310 = vsub.s32 0, %v1309
    %v1311 = vrot.slane %v1301, %v1310
    %v1329 = vunpack.c.l.b16 %v1285
    %v1330 = vunpack.c.l.b16 %v1286
    %v1331 = vunpack.c.l.b16 %v1287
    %v1332 = vunpack.c.l.b16 %v1288
    %v1333 = vunpack.c.l.b16 %v1289
    %v1334 = vunpack.c.l.b16 %v1290
    %v1335 = vunpack.c.l.b16 %v1291
    %v1336 = vunpack.c.l.b16 %v1292
    %v1337 = vunpack.c.l.b16 %v1293
    %v1338 = vunpack.c.l.b16 %v1294
    %v1339 = vunpack.c.l.b16 %v1295
    %v1340 = vunpack.c.l.b16 %v1296
    %v1341 = vunpack.c.l.b16 %v1297
    %v1342 = vunpack.c.l.b16 %v1298
    %v1343 = vunpack.c.l.b16 %v1299
    %v1344 = vunpack.c.l.b16 %v1300
    %v1345 = vpack.c.b16 %v1330, %v1329
    %v1346 = vpack.c.b16 %v1332, %v1331
    %v1347 = vpack.c.b16 %v1334, %v1333
    %v1348 = vpack.c.b16 %v1336, %v1335
    %v1349 = vpack.c.b16 %v1338, %v1337
    %v1350 = vpack.c.b16 %v1340, %v1339
    %v1351 = vpack.c.b16 %v1342, %v1341
    %v1352 = vpack.c.b16 %v1344, %v1343
    %1361 = vmatprep.subr.bf16.mxu0 0
    %1362 = vmatpush1.bf16.msra.mxu0 %v1345
    %1363 = vmatprep.subr.bf16.mxu0 0
    %1364 = vmatpush1.bf16.msra.mxu0 %v1346
    %1365 = vmatprep.subr.bf16.mxu0 0
    %1366 = vmatpush1.bf16.msra.mxu0 %v1347
    %1367 = vmatprep.subr.bf16.mxu0 0
    %1368 = vmatpush1.bf16.msra.mxu0 %v1348
    %1369 = vmatprep.subr.bf16.mxu0 0
    %1370 = vmatpush1.bf16.msra.mxu0 %v1349
    %1371 = vmatprep.subr.bf16.mxu0 0
    %1372 = vmatpush1.bf16.msra.mxu0 %v1350
    %1373 = vmatprep.subr.bf16.mxu0 0
    %1374 = vmatpush1.bf16.msra.mxu0 %v1351
    %1375 = vmatprep.subr.bf16.mxu0 0
    %1376 = vmatpush1.bf16.msra.mxu0 %v1352
    %1377 = vmatprep.subr.bf16.mxu0 0
    %1378 = vmatpush1.bf16.msra.mxu0 0
    %1379 = vmatprep.subr.bf16.mxu0 0
    %1380 = vmatpush1.bf16.msra.mxu0 0
    %1381 = vmatprep.subr.bf16.mxu0 0
    %1382 = vmatpush1.bf16.msra.mxu0 0
    %1383 = vmatprep.subr.bf16.mxu0 0
    %1384 = vmatpush1.bf16.msra.mxu0 0
    %1385 = vmatprep.subr.bf16.mxu0 0
    %1386 = vmatpush1.bf16.msra.mxu0 0
    %1387 = vmatprep.subr.bf16.mxu0 0
    %1388 = vmatpush1.bf16.msra.mxu0 0
    %1389 = vmatprep.subr.bf16.mxu0 0
    %1390 = vmatpush1.bf16.msra.mxu0 0
    %1391 = vmatprep.subr.bf16.mxu0 0
    %1392 = vmatpush1.bf16.msra.mxu0 0
    %1393 = vmatprep.mubr.bf16.mxu0 0
    %1394 = vmatmul.mubr.bf16.gmra.mrb[0].mxu0 %v1302
    %v1395 = vpop.f32.mrb[0].mxu0
    %v1396 = vadd.f32 %v1311, %v1395
    %v1397 = vpop.f32.mrb[0].mxu0
    %v1398 = vpop.f32.mrb[0].mxu0
    %v1399 = vadd.f32 %v1311, %v1398
    %v1400 = vpop.f32.mrb[0].mxu0
    %1401 = vmatprep.mubr.bf16.mxu0 0
    %1402 = vmatmul.mubr.bf16.gmra.mrb[0].mxu0 %v1303
    %v1403 = vpop.f32.mrb[0].mxu0
    %v1404 = vadd.f32 %v1311, %v1403
    %v1405 = vpop.f32.mrb[0].mxu0
    %v1406 = vpop.f32.mrb[0].mxu0
    %v1407 = vadd.f32 %v1311, %v1406
    %v1408 = vpop.f32.mrb[0].mxu0
    %1409 = vmatprep.mubr.bf16.mxu0 0
    %1410 = vmatmul.mubr.bf16.gmra.mrb[0].mxu0 %v1304
    %v1411 = vpop.f32.mrb[0].mxu0
    %v1412 = vadd.f32 %v1311, %v1411
    %v1413 = vpop.f32.mrb[0].mxu0
    %v1414 = vpop.f32.mrb[0].mxu0
    %v1415 = vadd.f32 %v1311, %v1414
    %v1416 = vpop.f32.mrb[0].mxu0
    %1417 = vmatprep.mubr.bf16.mxu0 0
    %1418 = vmatmul.mubr.bf16.gmra.mrb[0].mxu0 %v1305
    %v1419 = vpop.f32.mrb[0].mxu0
    %v1420 = vadd.f32 %v1311, %v1419
    %v1421 = vpop.f32.mrb[0].mxu0
    %v1422 = vpop.f32.mrb[0].mxu0
    %v1423 = vadd.f32 %v1311, %v1422
    %v1424 = vpop.f32.mrb[0].mxu0
    %1425 = vmatprep.mubr.bf16.mxu0 0
    %1426 = vmatmul.mubr.bf16.gmra.mrb[0].mxu0 %v1306
    %v1427 = vpop.f32.mrb[0].mxu0
    %v1428 = vadd.f32 %v1311, %v1427
    %v1429 = vpop.f32.mrb[0].mxu0
    %v1430 = vpop.f32.mrb[0].mxu0
    %v1431 = vadd.f32 %v1311, %v1430
    %v1432 = vpop.f32.mrb[0].mxu0
    %1433 = vdwg.mxu0
    %v1434 = vand.u32 2147483647, %v1396
    %vm1435 = vcmp.le.f32.partialorder %v1434, 0.7853982
    %vm1436 = vcmp.lt.s32.totalorder %v1396, 0
    %v1437 = vand.u32 %v1396, 2139095040
    %v1438 = vshrl.u32 %v1437, 23
    %v1439 = vsub.s32 %v1438, 127
    %v1440 = vand.u32 2147483647, %v1396
    %v1441 = vand.u32 %v1440, 8388607
    %v1442 = vor.u32 %v1441, 8388608
    %v1443 = vsub.s32 0, %v1442
    %v1444 = vadd.s32 %v1439, 1
    %vm1445 = vcmp.gt.s32.totalorder %v1444, 0
    %v1446 = vsel %vm1445, %v1444, 0
    %v1447 = vshrl.u32 %v1446, 5
    %v1448 = vand.u32 %v1446, 31
    %v1449 = vsub.s32 32, %v1448
    %v1450 = vshrl.u32 683565275, %v1449
    %v1451 = vshll.u32 683565275, %v1448
    %v1452 = vshrl.u32 2475754826, %v1449
    %v1453 = vor.u32 %v1451, %v1452
    %v1454 = vshll.u32 2475754826, %v1448
    %v1455 = vshrl.u32 2131351028, %v1449
    %v1456 = vor.u32 %v1454, %v1455
    %v1457 = vshll.u32 2131351028, %v1448
    %v1458 = vshrl.u32 2102212464, %v1449
    %v1459 = vor.u32 %v1457, %v1458
    %v1460 = vshll.u32 2102212464, %v1448
    %v1461 = vshrl.u32 920167782, %v1449
    %v1462 = vor.u32 %v1460, %v1461
    %v1463 = vshll.u32 920167782, %v1448
    %v1464 = vshrl.u32 1326507024, %v1449
    %v1465 = vor.u32 %v1463, %v1464
    %vm1466 = vcmp.lt.s32.totalorder %v1447, 1
    %vm1467 = vcmp.lt.s32.totalorder %v1447, 2
    %vm1468 = vcmp.lt.s32.totalorder %v1447, 3
    %vm1469 = vcmp.lt.s32.totalorder %v1447, 4
    %v1470 = vsel %vm1466, %v1450, %v1453
    %v1471 = vsel %vm1469, %v1459, 2102212464
    %v1472 = vsel %vm1468, %v1456, %v1471
    %v1473 = vsel %vm1467, %v1470, %v1472
    %v1474 = vsel %vm1466, %v1453, %v1456
    %v1475 = vsel %vm1469, %v1462, 920167782
    %v1476 = vsel %vm1468, %v1459, %v1475
    %v1477 = vsel %vm1467, %v1474, %v1476
    %v1478 = vsel %vm1466, %v1456, %v1459
    %v1479 = vsel %vm1469, %v1465, 1326507024
    %v1480 = vsel %vm1468, %v1462, %v1479
    %v1481 = vsel %vm1467, %v1478, %v1480
    %v1482 = vshll.u32 %v1442, 8
    %v1483 = vmul.u32.u64.compose %v1482, %v1481
    %v1484 = vextract.low.u32 %v1483
    %v1485 = vextract.high.u32 %v1483
    %v1486 = vmul.u32.u64.compose %v1482, %v1477
    %v1487 = vextract.low.u32 %v1486
    %v1488 = vextract.high.u32 %v1486
    %v1489 = vmul.u32 %v1482, %v1473
    %v1490 = vadd.s32 %v1485, %v1487
    %vm1491 = vc.u32 %v1485, %v1487
    %v1492 = vadd.s32 %v1488, 1
    %v1493 = vsel %vm1491, %v1492, %v1488
    %v1494 = vadd.s32 %v1489, %v1493
    %v1495 = vadd.s32 %v1494, 536870912
    %v1496 = vshrl.u32 %v1495, 30
    %v1497 = vshll.u32 %v1496, 30
    %v1498 = vsub.s32 %v1494, %v1497
    %vm1499 = vcmp.lt.s32.totalorder %v1498, 0
    %v1500 = vsub.s32 0, %v1498
    %v1501 = vsel %vm1499, %v1500, %v1498
    %v1502 = vclz %v1501
    %v1503 = vsub.s32 %v1502, 2
    %vm1504 = vcmp.gt.s32.totalorder 0, %v1503
    %v1505 = vsel %vm1504, 0, %v1503
    %v1506 = vsub.s32 32, %v1505
    %v1507 = vshll.u32 %v1498, %v1505
    %v1508 = vshrl.u32 %v1490, %v1506
    %v1509 = vor.u32 %v1507, %v1508
    %v1510 = vsub.s32 4294967266, %v1505
    %v1511 = vadd.s32 %v1510, 127
    %v1512 = vshll.u32 %v1511, 23
    %v1513 = vor.u32 4788187, %v1512
    %v1514 = vand.u32 2147483647, %v1513
    %v1516 = vcvt.s32.f32 %v1509
    %v1517 = vmul.f32 %v1516, %v1514
    %v1518 = vxor.u32 %v1517, 2147483648
    %v1519 = vsel %vm1436, %v1518, %v1517
    %v1520 = vsub.s32 4, %v1496
    %v1521 = vsel %vm1436, %v1520, %v1496
    %v1522 = vsel %vm1435, %v1396, %v1519
    %v1523 = vsel %vm1435, 0, %v1521
    %v1524 = vcosq.f32.pop %v1522
    %v1525 = vsinq.f32.pop %v1522
    %vm1526 = vweird.f32 %v1396
    %v1527 = vadd.s32 %v1523, 3
    %v1528 = vand.u32 %v1527, 3
    %vm1529 = vcmp.lt.s32.totalorder %v1528, 2
    %vm1530 = vcmp.eq.s32.totalorder %v1528, 0
    %v1531 = vxor.u32 %v1525, 2147483648
    %v1532 = vsel %vm1530, %v1524, %v1531
    %vm1533 = vcmp.eq.s32.totalorder %v1528, 2
    %v1534 = vxor.u32 %v1524, 2147483648
    %v1535 = vsel %vm1533, %v1534, %v1525
    %v1536 = vsel %vm1529, %v1532, %v1535
    %v1537 = vsel %vm1526, nan, %v1536
    %v1538 = vand.u32 2147483647, %v1399
    %vm1539 = vcmp.le.f32.partialorder %v1538, 0.7853982
    %vm1540 = vcmp.lt.s32.totalorder %v1399, 0
    %v1541 = vand.u32 %v1399, 2139095040
    %v1542 = vshrl.u32 %v1541, 23
    %v1543 = vsub.s32 %v1542, 127
    %v1544 = vand.u32 2147483647, %v1399
    %v1545 = vand.u32 %v1544, 8388607
    %v1546 = vor.u32 %v1545, 8388608
    %v1547 = vsub.s32 0, %v1546
    %v1548 = vadd.s32 %v1543, 1
    %vm1549 = vcmp.gt.s32.totalorder %v1548, 0
    %v1550 = vsel %vm1549, %v1548, 0
    %v1551 = vshrl.u32 %v1550, 5
    %v1552 = vand.u32 %v1550, 31
    %v1553 = vsub.s32 32, %v1552
    %v1554 = vshrl.u32 683565275, %v1553
    %v1555 = vshll.u32 683565275, %v1552
    %v1556 = vshrl.u32 2475754826, %v1553
    %v1557 = vor.u32 %v1555, %v1556
    %v1558 = vshll.u32 2475754826, %v1552
    %v1559 = vshrl.u32 2131351028, %v1553
    %v1560 = vor.u32 %v1558, %v1559
    %v1561 = vshll.u32 2131351028, %v1552
    %v1562 = vshrl.u32 2102212464, %v1553
    %v1563 = vor.u32 %v1561, %v1562
    %v1564 = vshll.u32 2102212464, %v1552
    %v1565 = vshrl.u32 920167782, %v1553
    %v1566 = vor.u32 %v1564, %v1565
    %v1567 = vshll.u32 920167782, %v1552
    %v1568 = vshrl.u32 1326507024, %v1553
    %v1569 = vor.u32 %v1567, %v1568
    %vm1570 = vcmp.lt.s32.totalorder %v1551, 1
    %vm1571 = vcmp.lt.s32.totalorder %v1551, 2
    %vm1572 = vcmp.lt.s32.totalorder %v1551, 3
    %vm1573 = vcmp.lt.s32.totalorder %v1551, 4
    %v1574 = vsel %vm1570, %v1554, %v1557
    %v1575 = vsel %vm1573, %v1563, 2102212464
    %v1576 = vsel %vm1572, %v1560, %v1575
    %v1577 = vsel %vm1571, %v1574, %v1576
    %v1578 = vsel %vm1570, %v1557, %v1560
    %v1579 = vsel %vm1573, %v1566, 920167782
    %v1580 = vsel %vm1572, %v1563, %v1579
    %v1581 = vsel %vm1571, %v1578, %v1580
    %v1582 = vsel %vm1570, %v1560, %v1563
    %v1583 = vsel %vm1573, %v1569, 1326507024
    %v1584 = vsel %vm1572, %v1566, %v1583
    %v1585 = vsel %vm1571, %v1582, %v1584
    %v1586 = vshll.u32 %v1546, 8
    %v1587 = vmul.u32.u64.compose %v1586, %v1585
    %v1588 = vextract.low.u32 %v1587
    %v1589 = vextract.high.u32 %v1587
    %v1590 = vmul.u32.u64.compose %v1586, %v1581
    %v1591 = vextract.low.u32 %v1590
    %v1592 = vextract.high.u32 %v1590
    %v1593 = vmul.u32 %v1586, %v1577
    %v1594 = vadd.s32 %v1589, %v1591
    %vm1595 = vc.u32 %v1589, %v1591
    %v1596 = vadd.s32 %v1592, 1
    %v1597 = vsel %vm1595, %v1596, %v1592
    %v1598 = vadd.s32 %v1593, %v1597
    %v1599 = vadd.s32 %v1598, 536870912
    %v1600 = vshrl.u32 %v1599, 30
    %v1601 = vshll.u32 %v1600, 30
    %v1602 = vsub.s32 %v1598, %v1601
    %vm1603 = vcmp.lt.s32.totalorder %v1602, 0
    %v1604 = vsub.s32 0, %v1602
    %v1605 = vsel %vm1603, %v1604, %v1602
    %v1606 = vclz %v1605
    %v1607 = vsub.s32 %v1606, 2
    %vm1608 = vcmp.gt.s32.totalorder 0, %v1607
    %v1609 = vsel %vm1608, 0, %v1607
    %v1610 = vsub.s32 32, %v1609
    %v1611 = vshll.u32 %v1602, %v1609
    %v1612 = vshrl.u32 %v1594, %v1610
    %v1613 = vor.u32 %v1611, %v1612
    %v1614 = vsub.s32 4294967266, %v1609
    %v1615 = vadd.s32 %v1614, 127
    %v1616 = vshll.u32 %v1615, 23
    %v1617 = vor.u32 4788187, %v1616
    %v1618 = vand.u32 2147483647, %v1617
    %v1620 = vcvt.s32.f32 %v1613
    %v1621 = vmul.f32 %v1620, %v1618
    %v1622 = vxor.u32 %v1621, 2147483648
    %v1623 = vsel %vm1540, %v1622, %v1621
    %v1624 = vsub.s32 4, %v1600
    %v1625 = vsel %vm1540, %v1624, %v1600
    %v1626 = vsel %vm1539, %v1399, %v1623
    %v1627 = vsel %vm1539, 0, %v1625
    %v1628 = vcosq.f32.pop %v1626
    %v1629 = vsinq.f32.pop %v1626
    %vm1630 = vweird.f32 %v1399
    %v1631 = vadd.s32 %v1627, 3
    %v1632 = vand.u32 %v1631, 3
    %vm1633 = vcmp.lt.s32.totalorder %v1632, 2
    %vm1634 = vcmp.eq.s32.totalorder %v1632, 0
    %v1635 = vxor.u32 %v1629, 2147483648
    %v1636 = vsel %vm1634, %v1628, %v1635
    %vm1637 = vcmp.eq.s32.totalorder %v1632, 2
    %v1638 = vxor.u32 %v1628, 2147483648
    %v1639 = vsel %vm1637, %v1638, %v1629
    %v1640 = vsel %vm1633, %v1636, %v1639
    %v1641 = vsel %vm1630, nan, %v1640
    %v1642 = vand.u32 2147483647, %v1404
    %vm1643 = vcmp.le.f32.partialorder %v1642, 0.7853982
    %vm1644 = vcmp.lt.s32.totalorder %v1404, 0
    %v1645 = vand.u32 %v1404, 2139095040
    %v1646 = vshrl.u32 %v1645, 23
    %v1647 = vsub.s32 %v1646, 127
    %v1648 = vand.u32 2147483647, %v1404
    %v1649 = vand.u32 %v1648, 8388607
    %v1650 = vor.u32 %v1649, 8388608
    %v1651 = vsub.s32 0, %v1650
    %v1652 = vadd.s32 %v1647, 1
    %vm1653 = vcmp.gt.s32.totalorder %v1652, 0
    %v1654 = vsel %vm1653, %v1652, 0
    %v1655 = vshrl.u32 %v1654, 5
    %v1656 = vand.u32 %v1654, 31
    %v1657 = vsub.s32 32, %v1656
    %v1658 = vshrl.u32 683565275, %v1657
    %v1659 = vshll.u32 683565275, %v1656
    %v1660 = vshrl.u32 2475754826, %v1657
    %v1661 = vor.u32 %v1659, %v1660
    %v1662 = vshll.u32 2475754826, %v1656
    %v1663 = vshrl.u32 2131351028, %v1657
    %v1664 = vor.u32 %v1662, %v1663
    %v1665 = vshll.u32 2131351028, %v1656
    %v1666 = vshrl.u32 2102212464, %v1657
    %v1667 = vor.u32 %v1665, %v1666
    %v1668 = vshll.u32 2102212464, %v1656
    %v1669 = vshrl.u32 920167782, %v1657
    %v1670 = vor.u32 %v1668, %v1669
    %v1671 = vshll.u32 920167782, %v1656
    %v1672 = vshrl.u32 1326507024, %v1657
    %v1673 = vor.u32 %v1671, %v1672
    %vm1674 = vcmp.lt.s32.totalorder %v1655, 1
    %vm1675 = vcmp.lt.s32.totalorder %v1655, 2
    %vm1676 = vcmp.lt.s32.totalorder %v1655, 3
    %vm1677 = vcmp.lt.s32.totalorder %v1655, 4
    %v1678 = vsel %vm1674, %v1658, %v1661
    %v1679 = vsel %vm1677, %v1667, 2102212464
    %v1680 = vsel %vm1676, %v1664, %v1679
    %v1681 = vsel %vm1675, %v1678, %v1680
    %v1682 = vsel %vm1674, %v1661, %v1664
    %v1683 = vsel %vm1677, %v1670, 920167782
    %v1684 = vsel %vm1676, %v1667, %v1683
    %v1685 = vsel %vm1675, %v1682, %v1684
    %v1686 = vsel %vm1674, %v1664, %v1667
    %v1687 = vsel %vm1677, %v1673, 1326507024
    %v1688 = vsel %vm1676, %v1670, %v1687
    %v1689 = vsel %vm1675, %v1686, %v1688
    %v1690 = vshll.u32 %v1650, 8
    %v1691 = vmul.u32.u64.compose %v1690, %v1689
    %v1692 = vextract.low.u32 %v1691
    %v1693 = vextract.high.u32 %v1691
    %v1694 = vmul.u32.u64.compose %v1690, %v1685
    %v1695 = vextract.low.u32 %v1694
    %v1696 = vextract.high.u32 %v1694
    %v1697 = vmul.u32 %v1690, %v1681
    %v1698 = vadd.s32 %v1693, %v1695
    %vm1699 = vc.u32 %v1693, %v1695
    %v1700 = vadd.s32 %v1696, 1
    %v1701 = vsel %vm1699, %v1700, %v1696
    %v1702 = vadd.s32 %v1697, %v1701
    %v1703 = vadd.s32 %v1702, 536870912
    %v1704 = vshrl.u32 %v1703, 30
    %v1705 = vshll.u32 %v1704, 30
    %v1706 = vsub.s32 %v1702, %v1705
    %vm1707 = vcmp.lt.s32.totalorder %v1706, 0
    %v1708 = vsub.s32 0, %v1706
    %v1709 = vsel %vm1707, %v1708, %v1706
    %v1710 = vclz %v1709
    %v1711 = vsub.s32 %v1710, 2
    %vm1712 = vcmp.gt.s32.totalorder 0, %v1711
    %v1713 = vsel %vm1712, 0, %v1711
    %v1714 = vsub.s32 32, %v1713
    %v1715 = vshll.u32 %v1706, %v1713
    %v1716 = vshrl.u32 %v1698, %v1714
    %v1717 = vor.u32 %v1715, %v1716
    %v1718 = vsub.s32 4294967266, %v1713
    %v1719 = vadd.s32 %v1718, 127
    %v1720 = vshll.u32 %v1719, 23
    %v1721 = vor.u32 4788187, %v1720
    %v1722 = vand.u32 2147483647, %v1721
    %v1724 = vcvt.s32.f32 %v1717
    %v1725 = vmul.f32 %v1724, %v1722
    %v1726 = vxor.u32 %v1725, 2147483648
    %v1727 = vsel %vm1644, %v1726, %v1725
    %v1728 = vsub.s32 4, %v1704
    %v1729 = vsel %vm1644, %v1728, %v1704
    %v1730 = vsel %vm1643, %v1404, %v1727
    %v1731 = vsel %vm1643, 0, %v1729
    %v1732 = vcosq.f32.pop %v1730
    %v1733 = vsinq.f32.pop %v1730
    %vm1734 = vweird.f32 %v1404
    %v1735 = vadd.s32 %v1731, 3
    %v1736 = vand.u32 %v1735, 3
    %vm1737 = vcmp.lt.s32.totalorder %v1736, 2
    %vm1738 = vcmp.eq.s32.totalorder %v1736, 0
    %v1739 = vxor.u32 %v1733, 2147483648
    %v1740 = vsel %vm1738, %v1732, %v1739
    %vm1741 = vcmp.eq.s32.totalorder %v1736, 2
    %v1742 = vxor.u32 %v1732, 2147483648
    %v1743 = vsel %vm1741, %v1742, %v1733
    %v1744 = vsel %vm1737, %v1740, %v1743
    %v1745 = vsel %vm1734, nan, %v1744
    %v1746 = vand.u32 2147483647, %v1407
    %vm1747 = vcmp.le.f32.partialorder %v1746, 0.7853982
    %vm1748 = vcmp.lt.s32.totalorder %v1407, 0
    %v1749 = vand.u32 %v1407, 2139095040
    %v1750 = vshrl.u32 %v1749, 23
    %v1751 = vsub.s32 %v1750, 127
    %v1752 = vand.u32 2147483647, %v1407
    %v1753 = vand.u32 %v1752, 8388607
    %v1754 = vor.u32 %v1753, 8388608
    %v1755 = vsub.s32 0, %v1754
    %v1756 = vadd.s32 %v1751, 1
    %vm1757 = vcmp.gt.s32.totalorder %v1756, 0
    %v1758 = vsel %vm1757, %v1756, 0
    %v1759 = vshrl.u32 %v1758, 5
    %v1760 = vand.u32 %v1758, 31
    %v1761 = vsub.s32 32, %v1760
    %v1762 = vshrl.u32 683565275, %v1761
    %v1763 = vshll.u32 683565275, %v1760
    %v1764 = vshrl.u32 2475754826, %v1761
    %v1765 = vor.u32 %v1763, %v1764
    %v1766 = vshll.u32 2475754826, %v1760
    %v1767 = vshrl.u32 2131351028, %v1761
    %v1768 = vor.u32 %v1766, %v1767
    %v1769 = vshll.u32 2131351028, %v1760
    %v1770 = vshrl.u32 2102212464, %v1761
    %v1771 = vor.u32 %v1769, %v1770
    %v1772 = vshll.u32 2102212464, %v1760
    %v1773 = vshrl.u32 920167782, %v1761
    %v1774 = vor.u32 %v1772, %v1773
    %v1775 = vshll.u32 920167782, %v1760
    %v1776 = vshrl.u32 1326507024, %v1761
    %v1777 = vor.u32 %v1775, %v1776
    %vm1778 = vcmp.lt.s32.totalorder %v1759, 1
    %vm1779 = vcmp.lt.s32.totalorder %v1759, 2
    %vm1780 = vcmp.lt.s32.totalorder %v1759, 3
    %vm1781 = vcmp.lt.s32.totalorder %v1759, 4
    %v1782 = vsel %vm1778, %v1762, %v1765
    %v1783 = vsel %vm1781, %v1771, 2102212464
    %v1784 = vsel %vm1780, %v1768, %v1783
    %v1785 = vsel %vm1779, %v1782, %v1784
    %v1786 = vsel %vm1778, %v1765, %v1768
    %v1787 = vsel %vm1781, %v1774, 920167782
    %v1788 = vsel %vm1780, %v1771, %v1787
    %v1789 = vsel %vm1779, %v1786, %v1788
    %v1790 = vsel %vm1778, %v1768, %v1771
    %v1791 = vsel %vm1781, %v1777, 1326507024
    %v1792 = vsel %vm1780, %v1774, %v1791
    %v1793 = vsel %vm1779, %v1790, %v1792
    %v1794 = vshll.u32 %v1754, 8
    %v1795 = vmul.u32.u64.compose %v1794, %v1793
    %v1796 = vextract.low.u32 %v1795
    %v1797 = vextract.high.u32 %v1795
    %v1798 = vmul.u32.u64.compose %v1794, %v1789
    %v1799 = vextract.low.u32 %v1798
    %v1800 = vextract.high.u32 %v1798
    %v1801 = vmul.u32 %v1794, %v1785
    %v1802 = vadd.s32 %v1797, %v1799
    %vm1803 = vc.u32 %v1797, %v1799
    %v1804 = vadd.s32 %v1800, 1
    %v1805 = vsel %vm1803, %v1804, %v1800
    %v1806 = vadd.s32 %v1801, %v1805
    %v1807 = vadd.s32 %v1806, 536870912
    %v1808 = vshrl.u32 %v1807, 30
    %v1809 = vshll.u32 %v1808, 30
    %v1810 = vsub.s32 %v1806, %v1809
    %vm1811 = vcmp.lt.s32.totalorder %v1810, 0
    %v1812 = vsub.s32 0, %v1810
    %v1813 = vsel %vm1811, %v1812, %v1810
    %v1814 = vclz %v1813
    %v1815 = vsub.s32 %v1814, 2
    %vm1816 = vcmp.gt.s32.totalorder 0, %v1815
    %v1817 = vsel %vm1816, 0, %v1815
    %v1818 = vsub.s32 32, %v1817
    %v1819 = vshll.u32 %v1810, %v1817
    %v1820 = vshrl.u32 %v1802, %v1818
    %v1821 = vor.u32 %v1819, %v1820
    %v1822 = vsub.s32 4294967266, %v1817
    %v1823 = vadd.s32 %v1822, 127
    %v1824 = vshll.u32 %v1823, 23
    %v1825 = vor.u32 4788187, %v1824
    %v1826 = vand.u32 2147483647, %v1825
    %v1828 = vcvt.s32.f32 %v1821
    %v1829 = vmul.f32 %v1828, %v1826
    %v1830 = vxor.u32 %v1829, 2147483648
    %v1831 = vsel %vm1748, %v1830, %v1829
    %v1832 = vsub.s32 4, %v1808
    %v1833 = vsel %vm1748, %v1832, %v1808
    %v1834 = vsel %vm1747, %v1407, %v1831
    %v1835 = vsel %vm1747, 0, %v1833
    %v1836 = vcosq.f32.pop %v1834
    %v1837 = vsinq.f32.pop %v1834
    %vm1838 = vweird.f32 %v1407
    %v1839 = vadd.s32 %v1835, 3
    %v1840 = vand.u32 %v1839, 3
    %vm1841 = vcmp.lt.s32.totalorder %v1840, 2
    %vm1842 = vcmp.eq.s32.totalorder %v1840, 0
    %v1843 = vxor.u32 %v1837, 2147483648
    %v1844 = vsel %vm1842, %v1836, %v1843
    %vm1845 = vcmp.eq.s32.totalorder %v1840, 2
    %v1846 = vxor.u32 %v1836, 2147483648
    %v1847 = vsel %vm1845, %v1846, %v1837
    %v1848 = vsel %vm1841, %v1844, %v1847
    %v1849 = vsel %vm1838, nan, %v1848
    %v1850 = vand.u32 2147483647, %v1412
    %vm1851 = vcmp.le.f32.partialorder %v1850, 0.7853982
    %vm1852 = vcmp.lt.s32.totalorder %v1412, 0
    %v1853 = vand.u32 %v1412, 2139095040
    %v1854 = vshrl.u32 %v1853, 23
    %v1855 = vsub.s32 %v1854, 127
    %v1856 = vand.u32 2147483647, %v1412
    %v1857 = vand.u32 %v1856, 8388607
    %v1858 = vor.u32 %v1857, 8388608
    %v1859 = vsub.s32 0, %v1858
    %v1860 = vadd.s32 %v1855, 1
    %vm1861 = vcmp.gt.s32.totalorder %v1860, 0
    %v1862 = vsel %vm1861, %v1860, 0
    %v1863 = vshrl.u32 %v1862, 5
    %v1864 = vand.u32 %v1862, 31
    %v1865 = vsub.s32 32, %v1864
    %v1866 = vshrl.u32 683565275, %v1865
    %v1867 = vshll.u32 683565275, %v1864
    %v1868 = vshrl.u32 2475754826, %v1865
    %v1869 = vor.u32 %v1867, %v1868
    %v1870 = vshll.u32 2475754826, %v1864
    %v1871 = vshrl.u32 2131351028, %v1865
    %v1872 = vor.u32 %v1870, %v1871
    %v1873 = vshll.u32 2131351028, %v1864
    %v1874 = vshrl.u32 2102212464, %v1865
    %v1875 = vor.u32 %v1873, %v1874
    %v1876 = vshll.u32 2102212464, %v1864
    %v1877 = vshrl.u32 920167782, %v1865
    %v1878 = vor.u32 %v1876, %v1877
    %v1879 = vshll.u32 920167782, %v1864
    %v1880 = vshrl.u32 1326507024, %v1865
    %v1881 = vor.u32 %v1879, %v1880
    %vm1882 = vcmp.lt.s32.totalorder %v1863, 1
    %vm1883 = vcmp.lt.s32.totalorder %v1863, 2
    %vm1884 = vcmp.lt.s32.totalorder %v1863, 3
    %vm1885 = vcmp.lt.s32.totalorder %v1863, 4
    %v1886 = vsel %vm1882, %v1866, %v1869
    %v1887 = vsel %vm1885, %v1875, 2102212464
    %v1888 = vsel %vm1884, %v1872, %v1887
    %v1889 = vsel %vm1883, %v1886, %v1888
    %v1890 = vsel %vm1882, %v1869, %v1872
    %v1891 = vsel %vm1885, %v1878, 920167782
    %v1892 = vsel %vm1884, %v1875, %v1891
    %v1893 = vsel %vm1883, %v1890, %v1892
    %v1894 = vsel %vm1882, %v1872, %v1875
    %v1895 = vsel %vm1885, %v1881, 1326507024
    %v1896 = vsel %vm1884, %v1878, %v1895
    %v1897 = vsel %vm1883, %v1894, %v1896
    %v1898 = vshll.u32 %v1858, 8
    %v1899 = vmul.u32.u64.compose %v1898, %v1897
    %v1900 = vextract.low.u32 %v1899
    %v1901 = vextract.high.u32 %v1899
    %v1902 = vmul.u32.u64.compose %v1898, %v1893
    %v1903 = vextract.low.u32 %v1902
    %v1904 = vextract.high.u32 %v1902
    %v1905 = vmul.u32 %v1898, %v1889
    %v1906 = vadd.s32 %v1901, %v1903
    %vm1907 = vc.u32 %v1901, %v1903
    %v1908 = vadd.s32 %v1904, 1
    %v1909 = vsel %vm1907, %v1908, %v1904
    %v1910 = vadd.s32 %v1905, %v1909
    %v1911 = vadd.s32 %v1910, 536870912
    %v1912 = vshrl.u32 %v1911, 30
    %v1913 = vshll.u32 %v1912, 30
    %v1914 = vsub.s32 %v1910, %v1913
    %vm1915 = vcmp.lt.s32.totalorder %v1914, 0
    %v1916 = vsub.s32 0, %v1914
    %v1917 = vsel %vm1915, %v1916, %v1914
    %v1918 = vclz %v1917
    %v1919 = vsub.s32 %v1918, 2
    %vm1920 = vcmp.gt.s32.totalorder 0, %v1919
    %v1921 = vsel %vm1920, 0, %v1919
    %v1922 = vsub.s32 32, %v1921
    %v1923 = vshll.u32 %v1914, %v1921
    %v1924 = vshrl.u32 %v1906, %v1922
    %v1925 = vor.u32 %v1923, %v1924
    %v1926 = vsub.s32 4294967266, %v1921
    %v1927 = vadd.s32 %v1926, 127
    %v1928 = vshll.u32 %v1927, 23
    %v1929 = vor.u32 4788187, %v1928
    %v1930 = vand.u32 2147483647, %v1929
    %v1932 = vcvt.s32.f32 %v1925
    %v1933 = vmul.f32 %v1932, %v1930
    %v1934 = vxor.u32 %v1933, 2147483648
    %v1935 = vsel %vm1852, %v1934, %v1933
    %v1936 = vsub.s32 4, %v1912
    %v1937 = vsel %vm1852, %v1936, %v1912
    %v1938 = vsel %vm1851, %v1412, %v1935
    %v1939 = vsel %vm1851, 0, %v1937
    %v1940 = vcosq.f32.pop %v1938
    %v1941 = vsinq.f32.pop %v1938
    %vm1942 = vweird.f32 %v1412
    %v1943 = vadd.s32 %v1939, 3
    %v1944 = vand.u32 %v1943, 3
    %vm1945 = vcmp.lt.s32.totalorder %v1944, 2
    %vm1946 = vcmp.eq.s32.totalorder %v1944, 0
    %v1947 = vxor.u32 %v1941, 2147483648
    %v1948 = vsel %vm1946, %v1940, %v1947
    %vm1949 = vcmp.eq.s32.totalorder %v1944, 2
    %v1950 = vxor.u32 %v1940, 2147483648
    %v1951 = vsel %vm1949, %v1950, %v1941
    %v1952 = vsel %vm1945, %v1948, %v1951
    %v1953 = vsel %vm1942, nan, %v1952
    %v1954 = vand.u32 2147483647, %v1415
    %vm1955 = vcmp.le.f32.partialorder %v1954, 0.7853982
    %vm1956 = vcmp.lt.s32.totalorder %v1415, 0
    %v1957 = vand.u32 %v1415, 2139095040
    %v1958 = vshrl.u32 %v1957, 23
    %v1959 = vsub.s32 %v1958, 127
    %v1960 = vand.u32 2147483647, %v1415
    %v1961 = vand.u32 %v1960, 8388607
    %v1962 = vor.u32 %v1961, 8388608
    %v1963 = vsub.s32 0, %v1962
    %v1964 = vadd.s32 %v1959, 1
    %vm1965 = vcmp.gt.s32.totalorder %v1964, 0
    %v1966 = vsel %vm1965, %v1964, 0
    %v1967 = vshrl.u32 %v1966, 5
    %v1968 = vand.u32 %v1966, 31
    %v1969 = vsub.s32 32, %v1968
    %v1970 = vshrl.u32 683565275, %v1969
    %v1971 = vshll.u32 683565275, %v1968
    %v1972 = vshrl.u32 2475754826, %v1969
    %v1973 = vor.u32 %v1971, %v1972
    %v1974 = vshll.u32 2475754826, %v1968
    %v1975 = vshrl.u32 2131351028, %v1969
    %v1976 = vor.u32 %v1974, %v1975
    %v1977 = vshll.u32 2131351028, %v1968
    %v1978 = vshrl.u32 2102212464, %v1969
    %v1979 = vor.u32 %v1977, %v1978
    %v1980 = vshll.u32 2102212464, %v1968
    %v1981 = vshrl.u32 920167782, %v1969
    %v1982 = vor.u32 %v1980, %v1981
    %v1983 = vshll.u32 920167782, %v1968
    %v1984 = vshrl.u32 1326507024, %v1969
    %v1985 = vor.u32 %v1983, %v1984
    %vm1986 = vcmp.lt.s32.totalorder %v1967, 1
    %vm1987 = vcmp.lt.s32.totalorder %v1967, 2
    %vm1988 = vcmp.lt.s32.totalorder %v1967, 3
    %vm1989 = vcmp.lt.s32.totalorder %v1967, 4
    %v1990 = vsel %vm1986, %v1970, %v1973
    %v1991 = vsel %vm1989, %v1979, 2102212464
    %v1992 = vsel %vm1988, %v1976, %v1991
    %v1993 = vsel %vm1987, %v1990, %v1992
    %v1994 = vsel %vm1986, %v1973, %v1976
    %v1995 = vsel %vm1989, %v1982, 920167782
    %v1996 = vsel %vm1988, %v1979, %v1995
    %v1997 = vsel %vm1987, %v1994, %v1996
    %v1998 = vsel %vm1986, %v1976, %v1979
    %v1999 = vsel %vm1989, %v1985, 1326507024
    %v2000 = vsel %vm1988, %v1982, %v1999
    %v2001 = vsel %vm1987, %v1998, %v2000
    %v2002 = vshll.u32 %v1962, 8
    %v2003 = vmul.u32.u64.compose %v2002, %v2001
    %v2004 = vextract.low.u32 %v2003
    %v2005 = vextract.high.u32 %v2003
    %v2006 = vmul.u32.u64.compose %v2002, %v1997
    %v2007 = vextract.low.u32 %v2006
    %v2008 = vextract.high.u32 %v2006
    %v2009 = vmul.u32 %v2002, %v1993
    %v2010 = vadd.s32 %v2005, %v2007
    %vm2011 = vc.u32 %v2005, %v2007
    %v2012 = vadd.s32 %v2008, 1
    %v2013 = vsel %vm2011, %v2012, %v2008
    %v2014 = vadd.s32 %v2009, %v2013
    %v2015 = vadd.s32 %v2014, 536870912
    %v2016 = vshrl.u32 %v2015, 30
    %v2017 = vshll.u32 %v2016, 30
    %v2018 = vsub.s32 %v2014, %v2017
    %vm2019 = vcmp.lt.s32.totalorder %v2018, 0
    %v2020 = vsub.s32 0, %v2018
    %v2021 = vsel %vm2019, %v2020, %v2018
    %v2022 = vclz %v2021
    %v2023 = vsub.s32 %v2022, 2
    %vm2024 = vcmp.gt.s32.totalorder 0, %v2023
    %v2025 = vsel %vm2024, 0, %v2023
    %v2026 = vsub.s32 32, %v2025
    %v2027 = vshll.u32 %v2018, %v2025
    %v2028 = vshrl.u32 %v2010, %v2026
    %v2029 = vor.u32 %v2027, %v2028
    %v2030 = vsub.s32 4294967266, %v2025
    %v2031 = vadd.s32 %v2030, 127
    %v2032 = vshll.u32 %v2031, 23
    %v2033 = vor.u32 4788187, %v2032
    %v2034 = vand.u32 2147483647, %v2033
    %v2036 = vcvt.s32.f32 %v2029
    %v2037 = vmul.f32 %v2036, %v2034
    %v2038 = vxor.u32 %v2037, 2147483648
    %v2039 = vsel %vm1956, %v2038, %v2037
    %v2040 = vsub.s32 4, %v2016
    %v2041 = vsel %vm1956, %v2040, %v2016
    %v2042 = vsel %vm1955, %v1415, %v2039
    %v2043 = vsel %vm1955, 0, %v2041
    %v2044 = vcosq.f32.pop %v2042
    %v2045 = vsinq.f32.pop %v2042
    %vm2046 = vweird.f32 %v1415
    %v2047 = vadd.s32 %v2043, 3
    %v2048 = vand.u32 %v2047, 3
    %vm2049 = vcmp.lt.s32.totalorder %v2048, 2
    %vm2050 = vcmp.eq.s32.totalorder %v2048, 0
    %v2051 = vxor.u32 %v2045, 2147483648
    %v2052 = vsel %vm2050, %v2044, %v2051
    %vm2053 = vcmp.eq.s32.totalorder %v2048, 2
    %v2054 = vxor.u32 %v2044, 2147483648
    %v2055 = vsel %vm2053, %v2054, %v2045
    %v2056 = vsel %vm2049, %v2052, %v2055
    %v2057 = vsel %vm2046, nan, %v2056
    %v2058 = vand.u32 2147483647, %v1420
    %vm2059 = vcmp.le.f32.partialorder %v2058, 0.7853982
    %vm2060 = vcmp.lt.s32.totalorder %v1420, 0
    %v2061 = vand.u32 %v1420, 2139095040
    %v2062 = vshrl.u32 %v2061, 23
    %v2063 = vsub.s32 %v2062, 127
    %v2064 = vand.u32 2147483647, %v1420
    %v2065 = vand.u32 %v2064, 8388607
    %v2066 = vor.u32 %v2065, 8388608
    %v2067 = vsub.s32 0, %v2066
    %v2068 = vadd.s32 %v2063, 1
    %vm2069 = vcmp.gt.s32.totalorder %v2068, 0
    %v2070 = vsel %vm2069, %v2068, 0
    %v2071 = vshrl.u32 %v2070, 5
    %v2072 = vand.u32 %v2070, 31
    %v2073 = vsub.s32 32, %v2072
    %v2074 = vshrl.u32 683565275, %v2073
    %v2075 = vshll.u32 683565275, %v2072
    %v2076 = vshrl.u32 2475754826, %v2073
    %v2077 = vor.u32 %v2075, %v2076
    %v2078 = vshll.u32 2475754826, %v2072
    %v2079 = vshrl.u32 2131351028, %v2073
    %v2080 = vor.u32 %v2078, %v2079
    %v2081 = vshll.u32 2131351028, %v2072
    %v2082 = vshrl.u32 2102212464, %v2073
    %v2083 = vor.u32 %v2081, %v2082
    %v2084 = vshll.u32 2102212464, %v2072
    %v2085 = vshrl.u32 920167782, %v2073
    %v2086 = vor.u32 %v2084, %v2085
    %v2087 = vshll.u32 920167782, %v2072
    %v2088 = vshrl.u32 1326507024, %v2073
    %v2089 = vor.u32 %v2087, %v2088
    %vm2090 = vcmp.lt.s32.totalorder %v2071, 1
    %vm2091 = vcmp.lt.s32.totalorder %v2071, 2
    %vm2092 = vcmp.lt.s32.totalorder %v2071, 3
    %vm2093 = vcmp.lt.s32.totalorder %v2071, 4
    %v2094 = vsel %vm2090, %v2074, %v2077
    %v2095 = vsel %vm2093, %v2083, 2102212464
    %v2096 = vsel %vm2092, %v2080, %v2095
    %v2097 = vsel %vm2091, %v2094, %v2096
    %v2098 = vsel %vm2090, %v2077, %v2080
    %v2099 = vsel %vm2093, %v2086, 920167782
    %v2100 = vsel %vm2092, %v2083, %v2099
    %v2101 = vsel %vm2091, %v2098, %v2100
    %v2102 = vsel %vm2090, %v2080, %v2083
    %v2103 = vsel %vm2093, %v2089, 1326507024
    %v2104 = vsel %vm2092, %v2086, %v2103
    %v2105 = vsel %vm2091, %v2102, %v2104
    %v2106 = vshll.u32 %v2066, 8
    %v2107 = vmul.u32.u64.compose %v2106, %v2105
    %v2108 = vextract.low.u32 %v2107
    %v2109 = vextract.high.u32 %v2107
    %v2110 = vmul.u32.u64.compose %v2106, %v2101
    %v2111 = vextract.low.u32 %v2110
    %v2112 = vextract.high.u32 %v2110
    %v2113 = vmul.u32 %v2106, %v2097
    %v2114 = vadd.s32 %v2109, %v2111
    %vm2115 = vc.u32 %v2109, %v2111
    %v2116 = vadd.s32 %v2112, 1
    %v2117 = vsel %vm2115, %v2116, %v2112
    %v2118 = vadd.s32 %v2113, %v2117
    %v2119 = vadd.s32 %v2118, 536870912
    %v2120 = vshrl.u32 %v2119, 30
    %v2121 = vshll.u32 %v2120, 30
    %v2122 = vsub.s32 %v2118, %v2121
    %vm2123 = vcmp.lt.s32.totalorder %v2122, 0
    %v2124 = vsub.s32 0, %v2122
    %v2125 = vsel %vm2123, %v2124, %v2122
    %v2126 = vclz %v2125
    %v2127 = vsub.s32 %v2126, 2
    %vm2128 = vcmp.gt.s32.totalorder 0, %v2127
    %v2129 = vsel %vm2128, 0, %v2127
    %v2130 = vsub.s32 32, %v2129
    %v2131 = vshll.u32 %v2122, %v2129
    %v2132 = vshrl.u32 %v2114, %v2130
    %v2133 = vor.u32 %v2131, %v2132
    %v2134 = vsub.s32 4294967266, %v2129
    %v2135 = vadd.s32 %v2134, 127
    %v2136 = vshll.u32 %v2135, 23
    %v2137 = vor.u32 4788187, %v2136
    %v2138 = vand.u32 2147483647, %v2137
    %v2140 = vcvt.s32.f32 %v2133
    %v2141 = vmul.f32 %v2140, %v2138
    %v2142 = vxor.u32 %v2141, 2147483648
    %v2143 = vsel %vm2060, %v2142, %v2141
    %v2144 = vsub.s32 4, %v2120
    %v2145 = vsel %vm2060, %v2144, %v2120
    %v2146 = vsel %vm2059, %v1420, %v2143
    %v2147 = vsel %vm2059, 0, %v2145
    %v2148 = vcosq.f32.pop %v2146
    %v2149 = vsinq.f32.pop %v2146
    %vm2150 = vweird.f32 %v1420
    %v2151 = vadd.s32 %v2147, 3
    %v2152 = vand.u32 %v2151, 3
    %vm2153 = vcmp.lt.s32.totalorder %v2152, 2
    %vm2154 = vcmp.eq.s32.totalorder %v2152, 0
    %v2155 = vxor.u32 %v2149, 2147483648
    %v2156 = vsel %vm2154, %v2148, %v2155
    %vm2157 = vcmp.eq.s32.totalorder %v2152, 2
    %v2158 = vxor.u32 %v2148, 2147483648
    %v2159 = vsel %vm2157, %v2158, %v2149
    %v2160 = vsel %vm2153, %v2156, %v2159
    %v2161 = vsel %vm2150, nan, %v2160
    %v2162 = vand.u32 2147483647, %v1423
    %vm2163 = vcmp.le.f32.partialorder %v2162, 0.7853982
    %vm2164 = vcmp.lt.s32.totalorder %v1423, 0
    %v2165 = vand.u32 %v1423, 2139095040
    %v2166 = vshrl.u32 %v2165, 23
    %v2167 = vsub.s32 %v2166, 127
    %v2168 = vand.u32 2147483647, %v1423
    %v2169 = vand.u32 %v2168, 8388607
    %v2170 = vor.u32 %v2169, 8388608
    %v2171 = vsub.s32 0, %v2170
    %v2172 = vadd.s32 %v2167, 1
    %vm2173 = vcmp.gt.s32.totalorder %v2172, 0
    %v2174 = vsel %vm2173, %v2172, 0
    %v2175 = vshrl.u32 %v2174, 5
    %v2176 = vand.u32 %v2174, 31
    %v2177 = vsub.s32 32, %v2176
    %v2178 = vshrl.u32 683565275, %v2177
    %v2179 = vshll.u32 683565275, %v2176
    %v2180 = vshrl.u32 2475754826, %v2177
    %v2181 = vor.u32 %v2179, %v2180
    %v2182 = vshll.u32 2475754826, %v2176
    %v2183 = vshrl.u32 2131351028, %v2177
    %v2184 = vor.u32 %v2182, %v2183
    %v2185 = vshll.u32 2131351028, %v2176
    %v2186 = vshrl.u32 2102212464, %v2177
    %v2187 = vor.u32 %v2185, %v2186
    %v2188 = vshll.u32 2102212464, %v2176
    %v2189 = vshrl.u32 920167782, %v2177
    %v2190 = vor.u32 %v2188, %v2189
    %v2191 = vshll.u32 920167782, %v2176
    %v2192 = vshrl.u32 1326507024, %v2177
    %v2193 = vor.u32 %v2191, %v2192
    %vm2194 = vcmp.lt.s32.totalorder %v2175, 1
    %vm2195 = vcmp.lt.s32.totalorder %v2175, 2
    %vm2196 = vcmp.lt.s32.totalorder %v2175, 3
    %vm2197 = vcmp.lt.s32.totalorder %v2175, 4
    %v2198 = vsel %vm2194, %v2178, %v2181
    %v2199 = vsel %vm2197, %v2187, 2102212464
    %v2200 = vsel %vm2196, %v2184, %v2199
    %v2201 = vsel %vm2195, %v2198, %v2200
    %v2202 = vsel %vm2194, %v2181, %v2184
    %v2203 = vsel %vm2197, %v2190, 920167782
    %v2204 = vsel %vm2196, %v2187, %v2203
    %v2205 = vsel %vm2195, %v2202, %v2204
    %v2206 = vsel %vm2194, %v2184, %v2187
    %v2207 = vsel %vm2197, %v2193, 1326507024
    %v2208 = vsel %vm2196, %v2190, %v2207
    %v2209 = vsel %vm2195, %v2206, %v2208
    %v2210 = vshll.u32 %v2170, 8
    %v2211 = vmul.u32.u64.compose %v2210, %v2209
    %v2212 = vextract.low.u32 %v2211
    %v2213 = vextract.high.u32 %v2211
    %v2214 = vmul.u32.u64.compose %v2210, %v2205
    %v2215 = vextract.low.u32 %v2214
    %v2216 = vextract.high.u32 %v2214
    %v2217 = vmul.u32 %v2210, %v2201
    %v2218 = vadd.s32 %v2213, %v2215
    %vm2219 = vc.u32 %v2213, %v2215
    %v2220 = vadd.s32 %v2216, 1
    %v2221 = vsel %vm2219, %v2220, %v2216
    %v2222 = vadd.s32 %v2217, %v2221
    %v2223 = vadd.s32 %v2222, 536870912
    %v2224 = vshrl.u32 %v2223, 30
    %v2225 = vshll.u32 %v2224, 30
    %v2226 = vsub.s32 %v2222, %v2225
    %vm2227 = vcmp.lt.s32.totalorder %v2226, 0
    %v2228 = vsub.s32 0, %v2226
    %v2229 = vsel %vm2227, %v2228, %v2226
    %v2230 = vclz %v2229
    %v2231 = vsub.s32 %v2230, 2
    %vm2232 = vcmp.gt.s32.totalorder 0, %v2231
    %v2233 = vsel %vm2232, 0, %v2231
    %v2234 = vsub.s32 32, %v2233
    %v2235 = vshll.u32 %v2226, %v2233
    %v2236 = vshrl.u32 %v2218, %v2234
    %v2237 = vor.u32 %v2235, %v2236
    %v2238 = vsub.s32 4294967266, %v2233
    %v2239 = vadd.s32 %v2238, 127
    %v2240 = vshll.u32 %v2239, 23
    %v2241 = vor.u32 4788187, %v2240
    %v2242 = vand.u32 2147483647, %v2241
    %v2244 = vcvt.s32.f32 %v2237
    %v2245 = vmul.f32 %v2244, %v2242
    %v2246 = vxor.u32 %v2245, 2147483648
    %v2247 = vsel %vm2164, %v2246, %v2245
    %v2248 = vsub.s32 4, %v2224
    %v2249 = vsel %vm2164, %v2248, %v2224
    %v2250 = vsel %vm2163, %v1423, %v2247
    %v2251 = vsel %vm2163, 0, %v2249
    %v2252 = vcosq.f32.pop %v2250
    %v2253 = vsinq.f32.pop %v2250
    %vm2254 = vweird.f32 %v1423
    %v2255 = vadd.s32 %v2251, 3
    %v2256 = vand.u32 %v2255, 3
    %vm2257 = vcmp.lt.s32.totalorder %v2256, 2
    %vm2258 = vcmp.eq.s32.totalorder %v2256, 0
    %v2259 = vxor.u32 %v2253, 2147483648
    %v2260 = vsel %vm2258, %v2252, %v2259
    %vm2261 = vcmp.eq.s32.totalorder %v2256, 2
    %v2262 = vxor.u32 %v2252, 2147483648
    %v2263 = vsel %vm2261, %v2262, %v2253
    %v2264 = vsel %vm2257, %v2260, %v2263
    %v2265 = vsel %vm2254, nan, %v2264
    %v2266 = vand.u32 2147483647, %v1428
    %vm2267 = vcmp.le.f32.partialorder %v2266, 0.7853982
    %vm2268 = vcmp.lt.s32.totalorder %v1428, 0
    %v2269 = vand.u32 %v1428, 2139095040
    %v2270 = vshrl.u32 %v2269, 23
    %v2271 = vsub.s32 %v2270, 127
    %v2272 = vand.u32 2147483647, %v1428
    %v2273 = vand.u32 %v2272, 8388607
    %v2274 = vor.u32 %v2273, 8388608
    %v2275 = vsub.s32 0, %v2274
    %v2276 = vadd.s32 %v2271, 1
    %vm2277 = vcmp.gt.s32.totalorder %v2276, 0
    %v2278 = vsel %vm2277, %v2276, 0
    %v2279 = vshrl.u32 %v2278, 5
    %v2280 = vand.u32 %v2278, 31
    %v2281 = vsub.s32 32, %v2280
    %v2282 = vshrl.u32 683565275, %v2281
    %v2283 = vshll.u32 683565275, %v2280
    %v2284 = vshrl.u32 2475754826, %v2281
    %v2285 = vor.u32 %v2283, %v2284
    %v2286 = vshll.u32 2475754826, %v2280
    %v2287 = vshrl.u32 2131351028, %v2281
    %v2288 = vor.u32 %v2286, %v2287
    %v2289 = vshll.u32 2131351028, %v2280
    %v2290 = vshrl.u32 2102212464, %v2281
    %v2291 = vor.u32 %v2289, %v2290
    %v2292 = vshll.u32 2102212464, %v2280
    %v2293 = vshrl.u32 920167782, %v2281
    %v2294 = vor.u32 %v2292, %v2293
    %v2295 = vshll.u32 920167782, %v2280
    %v2296 = vshrl.u32 1326507024, %v2281
    %v2297 = vor.u32 %v2295, %v2296
    %vm2298 = vcmp.lt.s32.totalorder %v2279, 1
    %vm2299 = vcmp.lt.s32.totalorder %v2279, 2
    %vm2300 = vcmp.lt.s32.totalorder %v2279, 3
    %vm2301 = vcmp.lt.s32.totalorder %v2279, 4
    %v2302 = vsel %vm2298, %v2282, %v2285
    %v2303 = vsel %vm2301, %v2291, 2102212464
    %v2304 = vsel %vm2300, %v2288, %v2303
    %v2305 = vsel %vm2299, %v2302, %v2304
    %v2306 = vsel %vm2298, %v2285, %v2288
    %v2307 = vsel %vm2301, %v2294, 920167782
    %v2308 = vsel %vm2300, %v2291, %v2307
    %v2309 = vsel %vm2299, %v2306, %v2308
    %v2310 = vsel %vm2298, %v2288, %v2291
    %v2311 = vsel %vm2301, %v2297, 1326507024
    %v2312 = vsel %vm2300, %v2294, %v2311
    %v2313 = vsel %vm2299, %v2310, %v2312
    %v2314 = vshll.u32 %v2274, 8
    %v2315 = vmul.u32.u64.compose %v2314, %v2313
    %v2316 = vextract.low.u32 %v2315
    %v2317 = vextract.high.u32 %v2315
    %v2318 = vmul.u32.u64.compose %v2314, %v2309
    %v2319 = vextract.low.u32 %v2318
    %v2320 = vextract.high.u32 %v2318
    %v2321 = vmul.u32 %v2314, %v2305
    %v2322 = vadd.s32 %v2317, %v2319
    %vm2323 = vc.u32 %v2317, %v2319
    %v2324 = vadd.s32 %v2320, 1
    %v2325 = vsel %vm2323, %v2324, %v2320
    %v2326 = vadd.s32 %v2321, %v2325
    %v2327 = vadd.s32 %v2326, 536870912
    %v2328 = vshrl.u32 %v2327, 30
    %v2329 = vshll.u32 %v2328, 30
    %v2330 = vsub.s32 %v2326, %v2329
    %vm2331 = vcmp.lt.s32.totalorder %v2330, 0
    %v2332 = vsub.s32 0, %v2330
    %v2333 = vsel %vm2331, %v2332, %v2330
    %v2334 = vclz %v2333
    %v2335 = vsub.s32 %v2334, 2
    %vm2336 = vcmp.gt.s32.totalorder 0, %v2335
    %v2337 = vsel %vm2336, 0, %v2335
    %v2338 = vsub.s32 32, %v2337
    %v2339 = vshll.u32 %v2330, %v2337
    %v2340 = vshrl.u32 %v2322, %v2338
    %v2341 = vor.u32 %v2339, %v2340
    %v2342 = vsub.s32 4294967266, %v2337
    %v2343 = vadd.s32 %v2342, 127
    %v2344 = vshll.u32 %v2343, 23
    %v2345 = vor.u32 4788187, %v2344
    %v2346 = vand.u32 2147483647, %v2345
    %v2348 = vcvt.s32.f32 %v2341
    %v2349 = vmul.f32 %v2348, %v2346
    %v2350 = vxor.u32 %v2349, 2147483648
    %v2351 = vsel %vm2268, %v2350, %v2349
    %v2352 = vsub.s32 4, %v2328
    %v2353 = vsel %vm2268, %v2352, %v2328
    %v2354 = vsel %vm2267, %v1428, %v2351
    %v2355 = vsel %vm2267, 0, %v2353
    %v2356 = vcosq.f32.pop %v2354
    %v2357 = vsinq.f32.pop %v2354
    %vm2358 = vweird.f32 %v1428
    %v2359 = vadd.s32 %v2355, 3
    %v2360 = vand.u32 %v2359, 3
    %vm2361 = vcmp.lt.s32.totalorder %v2360, 2
    %vm2362 = vcmp.eq.s32.totalorder %v2360, 0
    %v2363 = vxor.u32 %v2357, 2147483648
    %v2364 = vsel %vm2362, %v2356, %v2363
    %vm2365 = vcmp.eq.s32.totalorder %v2360, 2
    %v2366 = vxor.u32 %v2356, 2147483648
    %v2367 = vsel %vm2365, %v2366, %v2357
    %v2368 = vsel %vm2361, %v2364, %v2367
    %v2369 = vsel %vm2358, nan, %v2368
    %v2370 = vand.u32 2147483647, %v1431
    %vm2371 = vcmp.le.f32.partialorder %v2370, 0.7853982
    %vm2372 = vcmp.lt.s32.totalorder %v1431, 0
    %v2373 = vand.u32 %v1431, 2139095040
    %v2374 = vshrl.u32 %v2373, 23
    %v2375 = vsub.s32 %v2374, 127
    %v2376 = vand.u32 2147483647, %v1431
    %v2377 = vand.u32 %v2376, 8388607
    %v2378 = vor.u32 %v2377, 8388608
    %v2379 = vsub.s32 0, %v2378
    %v2380 = vadd.s32 %v2375, 1
    %vm2381 = vcmp.gt.s32.totalorder %v2380, 0
    %v2382 = vsel %vm2381, %v2380, 0
    %v2383 = vshrl.u32 %v2382, 5
    %v2384 = vand.u32 %v2382, 31
    %v2385 = vsub.s32 32, %v2384
    %v2386 = vshrl.u32 683565275, %v2385
    %v2387 = vshll.u32 683565275, %v2384
    %v2388 = vshrl.u32 2475754826, %v2385
    %v2389 = vor.u32 %v2387, %v2388
    %v2390 = vshll.u32 2475754826, %v2384
    %v2391 = vshrl.u32 2131351028, %v2385
    %v2392 = vor.u32 %v2390, %v2391
    %v2393 = vshll.u32 2131351028, %v2384
    %v2394 = vshrl.u32 2102212464, %v2385
    %v2395 = vor.u32 %v2393, %v2394
    %v2396 = vshll.u32 2102212464, %v2384
    %v2397 = vshrl.u32 920167782, %v2385
    %v2398 = vor.u32 %v2396, %v2397
    %v2399 = vshll.u32 920167782, %v2384
    %v2400 = vshrl.u32 1326507024, %v2385
    %v2401 = vor.u32 %v2399, %v2400
    %vm2402 = vcmp.lt.s32.totalorder %v2383, 1
    %vm2403 = vcmp.lt.s32.totalorder %v2383, 2
    %vm2404 = vcmp.lt.s32.totalorder %v2383, 3
    %vm2405 = vcmp.lt.s32.totalorder %v2383, 4
    %v2406 = vsel %vm2402, %v2386, %v2389
    %v2407 = vsel %vm2405, %v2395, 2102212464
    %v2408 = vsel %vm2404, %v2392, %v2407
    %v2409 = vsel %vm2403, %v2406, %v2408
    %v2410 = vsel %vm2402, %v2389, %v2392
    %v2411 = vsel %vm2405, %v2398, 920167782
    %v2412 = vsel %vm2404, %v2395, %v2411
    %v2413 = vsel %vm2403, %v2410, %v2412
    %v2414 = vsel %vm2402, %v2392, %v2395
    %v2415 = vsel %vm2405, %v2401, 1326507024
    %v2416 = vsel %vm2404, %v2398, %v2415
    %v2417 = vsel %vm2403, %v2414, %v2416
    %v2418 = vshll.u32 %v2378, 8
    %v2419 = vmul.u32.u64.compose %v2418, %v2417
    %v2420 = vextract.low.u32 %v2419
    %v2421 = vextract.high.u32 %v2419
    %v2422 = vmul.u32.u64.compose %v2418, %v2413
    %v2423 = vextract.low.u32 %v2422
    %v2424 = vextract.high.u32 %v2422
    %v2425 = vmul.u32 %v2418, %v2409
    %v2426 = vadd.s32 %v2421, %v2423
    %vm2427 = vc.u32 %v2421, %v2423
    %v2428 = vadd.s32 %v2424, 1
    %v2429 = vsel %vm2427, %v2428, %v2424
    %v2430 = vadd.s32 %v2425, %v2429
    %v2431 = vadd.s32 %v2430, 536870912
    %v2432 = vshrl.u32 %v2431, 30
    %v2433 = vshll.u32 %v2432, 30
    %v2434 = vsub.s32 %v2430, %v2433
    %vm2435 = vcmp.lt.s32.totalorder %v2434, 0
    %v2436 = vsub.s32 0, %v2434
    %v2437 = vsel %vm2435, %v2436, %v2434
    %v2438 = vclz %v2437
    %v2439 = vsub.s32 %v2438, 2
    %vm2440 = vcmp.gt.s32.totalorder 0, %v2439
    %v2441 = vsel %vm2440, 0, %v2439
    %v2442 = vsub.s32 32, %v2441
    %v2443 = vshll.u32 %v2434, %v2441
    %v2444 = vshrl.u32 %v2426, %v2442
    %v2445 = vor.u32 %v2443, %v2444
    %v2446 = vsub.s32 4294967266, %v2441
    %v2447 = vadd.s32 %v2446, 127
    %v2448 = vshll.u32 %v2447, 23
    %v2449 = vor.u32 4788187, %v2448
    %v2450 = vand.u32 2147483647, %v2449
    %v2452 = vcvt.s32.f32 %v2445
    %v2453 = vmul.f32 %v2452, %v2450
    %v2454 = vxor.u32 %v2453, 2147483648
    %v2455 = vsel %vm2372, %v2454, %v2453
    %v2456 = vsub.s32 4, %v2432
    %v2457 = vsel %vm2372, %v2456, %v2432
    %v2458 = vsel %vm2371, %v1431, %v2455
    %v2459 = vsel %vm2371, 0, %v2457
    %v2460 = vcosq.f32.pop %v2458
    %v2461 = vsinq.f32.pop %v2458
    %vm2462 = vweird.f32 %v1431
    %v2463 = vadd.s32 %v2459, 3
    %v2464 = vand.u32 %v2463, 3
    %vm2465 = vcmp.lt.s32.totalorder %v2464, 2
    %vm2466 = vcmp.eq.s32.totalorder %v2464, 0
    %v2467 = vxor.u32 %v2461, 2147483648
    %v2468 = vsel %vm2466, %v2460, %v2467
    %vm2469 = vcmp.eq.s32.totalorder %v2464, 2
    %v2470 = vxor.u32 %v2460, 2147483648
    %v2471 = vsel %vm2469, %v2470, %v2461
    %v2472 = vsel %vm2465, %v2468, %v2471
    %v2473 = vsel %vm2462, nan, %v2472
    %s2474 = scalar_lea.vmem [#allocation3], 64
    %v2475 = vld [vmem:[%s2474] sm:$0xf]
    %v2476 = vld [vmem:[%s2474 + $0x4] sm:$0xf]
    %v2477 = vld [vmem:[%s2474 + $0x8] sm:$0xf]
    %v2478 = vld [vmem:[%s2474 + $0xc] sm:$0xf]
    %v2479 = vld [vmem:[%s2474 + $0x10] sm:$0xf]
    %v2480 = vld [vmem:[%s2474 + $0x14] sm:$0xf]
    %v2481 = vld [vmem:[%s2474 + $0x18] sm:$0xf]
    %v2482 = vld [vmem:[%s2474 + $0x1c] sm:$0xf]
    %v2483 = vld [vmem:[%s2474 + $0x20] sm:$0xf]
    %v2484 = vld [vmem:[%s2474 + $0x24] sm:$0xf]
    %v2485 = vld [vmem:[%s2474 + $0x28] sm:$0xf]
    %v2486 = vld [vmem:[%s2474 + $0x2c] sm:$0xf]
    %v2487 = vld [vmem:[%s2474 + $0x30] sm:$0xf]
    %v2488 = vld [vmem:[%s2474 + $0x34] sm:$0xf]
    %v2489 = vld [vmem:[%s2474 + $0x38] sm:$0xf]
    %v2490 = vld [vmem:[%s2474 + $0x3c] sm:$0xf]
    %s2491 = scalar_lea.vmem %s4, 1
    %v2492 = vld [vmem:[%s2491] sm:$0x1]
    %v2493 = vpack.c.bf16 %v1641, %v1537
    %v2494 = vpack.c.bf16 %v1849, %v1745
    %v2495 = vpack.c.bf16 %v2057, %v1953
    %v2496 = vpack.c.bf16 %v2265, %v2161
    %v2497 = vpack.c.bf16 %v2473, %v2369
    %v2499 = vlaneseq
    %v2500 = vshrl.u32 %v2499, 7
    %v2501 = vsub.s32 0, %v2500
    %v2502 = vrot.slane %v2492, %v2501
    %v2520 = vunpack.c.l.b16 %v2475
    %v2521 = vunpack.c.l.b16 %v2476
    %v2522 = vunpack.c.l.b16 %v2477
    %v2523 = vunpack.c.l.b16 %v2478
    %v2524 = vunpack.c.l.b16 %v2479
    %v2525 = vunpack.c.l.b16 %v2480
    %v2526 = vunpack.c.l.b16 %v2481
    %v2527 = vunpack.c.l.b16 %v2482
    %v2528 = vunpack.c.l.b16 %v2483
    %v2529 = vunpack.c.l.b16 %v2484
    %v2530 = vunpack.c.l.b16 %v2485
    %v2531 = vunpack.c.l.b16 %v2486
    %v2532 = vunpack.c.l.b16 %v2487
    %v2533 = vunpack.c.l.b16 %v2488
    %v2534 = vunpack.c.l.b16 %v2489
    %v2535 = vunpack.c.l.b16 %v2490
    %v2536 = vpack.c.b16 %v2521, %v2520
    %v2537 = vpack.c.b16 %v2523, %v2522
    %v2538 = vpack.c.b16 %v2525, %v2524
    %v2539 = vpack.c.b16 %v2527, %v2526
    %v2540 = vpack.c.b16 %v2529, %v2528
    %v2541 = vpack.c.b16 %v2531, %v2530
    %v2542 = vpack.c.b16 %v2533, %v2532
    %v2543 = vpack.c.b16 %v2535, %v2534
    %2552 = vmatprep.subr.bf16.mxu0 0
    %2553 = vmatpush1.bf16.msra.mxu0 %v2536
    %2554 = vmatprep.subr.bf16.mxu0 0
    %2555 = vmatpush1.bf16.msra.mxu0 %v2537
    %2556 = vmatprep.subr.bf16.mxu0 0
    %2557 = vmatpush1.bf16.msra.mxu0 %v2538
    %2558 = vmatprep.subr.bf16.mxu0 0
    %2559 = vmatpush1.bf16.msra.mxu0 %v2539
    %2560 = vmatprep.subr.bf16.mxu0 0
    %2561 = vmatpush1.bf16.msra.mxu0 %v2540
    %2562 = vmatprep.subr.bf16.mxu0 0
    %2563 = vmatpush1.bf16.msra.mxu0 %v2541
    %2564 = vmatprep.subr.bf16.mxu0 0
    %2565 = vmatpush1.bf16.msra.mxu0 %v2542
    %2566 = vmatprep.subr.bf16.mxu0 0
    %2567 = vmatpush1.bf16.msra.mxu0 %v2543
    %2568 = vmatprep.subr.bf16.mxu0 0
    %2569 = vmatpush1.bf16.msra.mxu0 0
    %2570 = vmatprep.subr.bf16.mxu0 0
    %2571 = vmatpush1.bf16.msra.mxu0 0
    %2572 = vmatprep.subr.bf16.mxu0 0
    %2573 = vmatpush1.bf16.msra.mxu0 0
    %2574 = vmatprep.subr.bf16.mxu0 0
    %2575 = vmatpush1.bf16.msra.mxu0 0
    %2576 = vmatprep.subr.bf16.mxu0 0
    %2577 = vmatpush1.bf16.msra.mxu0 0
    %2578 = vmatprep.subr.bf16.mxu0 0
    %2579 = vmatpush1.bf16.msra.mxu0 0
    %2580 = vmatprep.subr.bf16.mxu0 0
    %2581 = vmatpush1.bf16.msra.mxu0 0
    %2582 = vmatprep.subr.bf16.mxu0 0
    %2583 = vmatpush1.bf16.msra.mxu0 0
    %2584 = vmatprep.mubr.bf16.mxu0 0
    %2585 = vmatmul.mubr.bf16.gmra.mrb[0].mxu0 %v2493
    %v2586 = vpop.f32.mrb[0].mxu0
    %v2587 = vadd.f32 %v2502, %v2586
    %v2588 = vpop.f32.mrb[0].mxu0
    %v2589 = vpop.f32.mrb[0].mxu0
    %v2590 = vadd.f32 %v2502, %v2589
    %v2591 = vpop.f32.mrb[0].mxu0
    %2592 = vmatprep.mubr.bf16.mxu0 0
    %2593 = vmatmul.mubr.bf16.gmra.mrb[0].mxu0 %v2494
    %v2594 = vpop.f32.mrb[0].mxu0
    %v2595 = vadd.f32 %v2502, %v2594
    %v2596 = vpop.f32.mrb[0].mxu0
    %v2597 = vpop.f32.mrb[0].mxu0
    %v2598 = vadd.f32 %v2502, %v2597
    %v2599 = vpop.f32.mrb[0].mxu0
    %2600 = vmatprep.mubr.bf16.mxu0 0
    %2601 = vmatmul.mubr.bf16.gmra.mrb[0].mxu0 %v2495
    %v2602 = vpop.f32.mrb[0].mxu0
    %v2603 = vadd.f32 %v2502, %v2602
    %v2604 = vpop.f32.mrb[0].mxu0
    %v2605 = vpop.f32.mrb[0].mxu0
    %v2606 = vadd.f32 %v2502, %v2605
    %v2607 = vpop.f32.mrb[0].mxu0
    %2608 = vmatprep.mubr.bf16.mxu0 0
    %2609 = vmatmul.mubr.bf16.gmra.mrb[0].mxu0 %v2496
    %v2610 = vpop.f32.mrb[0].mxu0
    %v2611 = vadd.f32 %v2502, %v2610
    %v2612 = vpop.f32.mrb[0].mxu0
    %v2613 = vpop.f32.mrb[0].mxu0
    %v2614 = vadd.f32 %v2502, %v2613
    %v2615 = vpop.f32.mrb[0].mxu0
    %2616 = vmatprep.mubr.bf16.mxu0 0
    %2617 = vmatmul.mubr.bf16.gmra.mrb[0].mxu0 %v2497
    %v2618 = vpop.f32.mrb[0].mxu0
    %v2619 = vadd.f32 %v2502, %v2618
    %v2620 = vpop.f32.mrb[0].mxu0
    %v2621 = vpop.f32.mrb[0].mxu0
    %v2622 = vadd.f32 %v2502, %v2621
    %v2623 = vpop.f32.mrb[0].mxu0
    %2624 = vdwg.mxu0
    %v2625 = vand.u32 2147483647, %v2587
    %vm2626 = vcmp.le.f32.partialorder %v2625, 0.7853982
    %vm2627 = vcmp.lt.s32.totalorder %v2587, 0
    %v2628 = vand.u32 %v2587, 2139095040
    %v2629 = vshrl.u32 %v2628, 23
    %v2630 = vsub.s32 %v2629, 127
    %v2631 = vand.u32 2147483647, %v2587
    %v2632 = vand.u32 %v2631, 8388607
    %v2633 = vor.u32 %v2632, 8388608
    %v2634 = vsub.s32 0, %v2633
    %v2635 = vadd.s32 %v2630, 1
    %vm2636 = vcmp.gt.s32.totalorder %v2635, 0
    %v2637 = vsel %vm2636, %v2635, 0
    %v2638 = vshrl.u32 %v2637, 5
    %v2639 = vand.u32 %v2637, 31
    %v2640 = vsub.s32 32, %v2639
    %v2641 = vshrl.u32 683565275, %v2640
    %v2642 = vshll.u32 683565275, %v2639
    %v2643 = vshrl.u32 2475754826, %v2640
    %v2644 = vor.u32 %v2642, %v2643
    %v2645 = vshll.u32 2475754826, %v2639
    %v2646 = vshrl.u32 2131351028, %v2640
    %v2647 = vor.u32 %v2645, %v2646
    %v2648 = vshll.u32 2131351028, %v2639
    %v2649 = vshrl.u32 2102212464, %v2640
    %v2650 = vor.u32 %v2648, %v2649
    %v2651 = vshll.u32 2102212464, %v2639
    %v2652 = vshrl.u32 920167782, %v2640
    %v2653 = vor.u32 %v2651, %v2652
    %v2654 = vshll.u32 920167782, %v2639
    %v2655 = vshrl.u32 1326507024, %v2640
    %v2656 = vor.u32 %v2654, %v2655
    %vm2657 = vcmp.lt.s32.totalorder %v2638, 1
    %vm2658 = vcmp.lt.s32.totalorder %v2638, 2
    %vm2659 = vcmp.lt.s32.totalorder %v2638, 3
    %vm2660 = vcmp.lt.s32.totalorder %v2638, 4
    %v2661 = vsel %vm2657, %v2641, %v2644
    %v2662 = vsel %vm2660, %v2650, 2102212464
    %v2663 = vsel %vm2659, %v2647, %v2662
    %v2664 = vsel %vm2658, %v2661, %v2663
    %v2665 = vsel %vm2657, %v2644, %v2647
    %v2666 = vsel %vm2660, %v2653, 920167782
    %v2667 = vsel %vm2659, %v2650, %v2666
    %v2668 = vsel %vm2658, %v2665, %v2667
    %v2669 = vsel %vm2657, %v2647, %v2650
    %v2670 = vsel %vm2660, %v2656, 1326507024
    %v2671 = vsel %vm2659, %v2653, %v2670
    %v2672 = vsel %vm2658, %v2669, %v2671
    %v2673 = vshll.u32 %v2633, 8
    %v2674 = vmul.u32.u64.compose %v2673, %v2672
    %v2675 = vextract.low.u32 %v2674
    %v2676 = vextract.high.u32 %v2674
    %v2677 = vmul.u32.u64.compose %v2673, %v2668
    %v2678 = vextract.low.u32 %v2677
    %v2679 = vextract.high.u32 %v2677
    %v2680 = vmul.u32 %v2673, %v2664
    %v2681 = vadd.s32 %v2676, %v2678
    %vm2682 = vc.u32 %v2676, %v2678
    %v2683 = vadd.s32 %v2679, 1
    %v2684 = vsel %vm2682, %v2683, %v2679
    %v2685 = vadd.s32 %v2680, %v2684
    %v2686 = vadd.s32 %v2685, 536870912
    %v2687 = vshrl.u32 %v2686, 30
    %v2688 = vshll.u32 %v2687, 30
    %v2689 = vsub.s32 %v2685, %v2688
    %vm2690 = vcmp.lt.s32.totalorder %v2689, 0
    %v2691 = vsub.s32 0, %v2689
    %v2692 = vsel %vm2690, %v2691, %v2689
    %v2693 = vclz %v2692
    %v2694 = vsub.s32 %v2693, 2
    %vm2695 = vcmp.gt.s32.totalorder 0, %v2694
    %v2696 = vsel %vm2695, 0, %v2694
    %v2697 = vsub.s32 32, %v2696
    %v2698 = vshll.u32 %v2689, %v2696
    %v2699 = vshrl.u32 %v2681, %v2697
    %v2700 = vor.u32 %v2698, %v2699
    %v2701 = vsub.s32 4294967266, %v2696
    %v2702 = vadd.s32 %v2701, 127
    %v2703 = vshll.u32 %v2702, 23
    %v2704 = vor.u32 4788187, %v2703
    %v2705 = vand.u32 2147483647, %v2704
    %v2707 = vcvt.s32.f32 %v2700
    %v2708 = vmul.f32 %v2707, %v2705
    %v2709 = vxor.u32 %v2708, 2147483648
    %v2710 = vsel %vm2627, %v2709, %v2708
    %v2711 = vsub.s32 4, %v2687
    %v2712 = vsel %vm2627, %v2711, %v2687
    %v2713 = vsel %vm2626, %v2587, %v2710
    %v2714 = vsel %vm2626, 0, %v2712
    %v2715 = vcosq.f32.pop %v2713
    %v2716 = vsinq.f32.pop %v2713
    %vm2717 = vweird.f32 %v2587
    %v2718 = vadd.s32 %v2714, 3
    %v2719 = vand.u32 %v2718, 3
    %vm2720 = vcmp.lt.s32.totalorder %v2719, 2
    %vm2721 = vcmp.eq.s32.totalorder %v2719, 0
    %v2722 = vxor.u32 %v2716, 2147483648
    %v2723 = vsel %vm2721, %v2715, %v2722
    %vm2724 = vcmp.eq.s32.totalorder %v2719, 2
    %v2725 = vxor.u32 %v2715, 2147483648
    %v2726 = vsel %vm2724, %v2725, %v2716
    %v2727 = vsel %vm2720, %v2723, %v2726
    %v2728 = vsel %vm2717, nan, %v2727
    %v2729 = vand.u32 2147483647, %v2590
    %vm2730 = vcmp.le.f32.partialorder %v2729, 0.7853982
    %vm2731 = vcmp.lt.s32.totalorder %v2590, 0
    %v2732 = vand.u32 %v2590, 2139095040
    %v2733 = vshrl.u32 %v2732, 23
    %v2734 = vsub.s32 %v2733, 127
    %v2735 = vand.u32 2147483647, %v2590
    %v2736 = vand.u32 %v2735, 8388607
    %v2737 = vor.u32 %v2736, 8388608
    %v2738 = vsub.s32 0, %v2737
    %v2739 = vadd.s32 %v2734, 1
    %vm2740 = vcmp.gt.s32.totalorder %v2739, 0
    %v2741 = vsel %vm2740, %v2739, 0
    %v2742 = vshrl.u32 %v2741, 5
    %v2743 = vand.u32 %v2741, 31
    %v2744 = vsub.s32 32, %v2743
    %v2745 = vshrl.u32 683565275, %v2744
    %v2746 = vshll.u32 683565275, %v2743
    %v2747 = vshrl.u32 2475754826, %v2744
    %v2748 = vor.u32 %v2746, %v2747
    %v2749 = vshll.u32 2475754826, %v2743
    %v2750 = vshrl.u32 2131351028, %v2744
    %v2751 = vor.u32 %v2749, %v2750
    %v2752 = vshll.u32 2131351028, %v2743
    %v2753 = vshrl.u32 2102212464, %v2744
    %v2754 = vor.u32 %v2752, %v2753
    %v2755 = vshll.u32 2102212464, %v2743
    %v2756 = vshrl.u32 920167782, %v2744
    %v2757 = vor.u32 %v2755, %v2756
    %v2758 = vshll.u32 920167782, %v2743
    %v2759 = vshrl.u32 1326507024, %v2744
    %v2760 = vor.u32 %v2758, %v2759
    %vm2761 = vcmp.lt.s32.totalorder %v2742, 1
    %vm2762 = vcmp.lt.s32.totalorder %v2742, 2
    %vm2763 = vcmp.lt.s32.totalorder %v2742, 3
    %vm2764 = vcmp.lt.s32.totalorder %v2742, 4
    %v2765 = vsel %vm2761, %v2745, %v2748
    %v2766 = vsel %vm2764, %v2754, 2102212464
    %v2767 = vsel %vm2763, %v2751, %v2766
    %v2768 = vsel %vm2762, %v2765, %v2767
    %v2769 = vsel %vm2761, %v2748, %v2751
    %v2770 = vsel %vm2764, %v2757, 920167782
    %v2771 = vsel %vm2763, %v2754, %v2770
    %v2772 = vsel %vm2762, %v2769, %v2771
    %v2773 = vsel %vm2761, %v2751, %v2754
    %v2774 = vsel %vm2764, %v2760, 1326507024
    %v2775 = vsel %vm2763, %v2757, %v2774
    %v2776 = vsel %vm2762, %v2773, %v2775
    %v2777 = vshll.u32 %v2737, 8
    %v2778 = vmul.u32.u64.compose %v2777, %v2776
    %v2779 = vextract.low.u32 %v2778
    %v2780 = vextract.high.u32 %v2778
    %v2781 = vmul.u32.u64.compose %v2777, %v2772
    %v2782 = vextract.low.u32 %v2781
    %v2783 = vextract.high.u32 %v2781
    %v2784 = vmul.u32 %v2777, %v2768
    %v2785 = vadd.s32 %v2780, %v2782
    %vm2786 = vc.u32 %v2780, %v2782
    %v2787 = vadd.s32 %v2783, 1
    %v2788 = vsel %vm2786, %v2787, %v2783
    %v2789 = vadd.s32 %v2784, %v2788
    %v2790 = vadd.s32 %v2789, 536870912
    %v2791 = vshrl.u32 %v2790, 30
    %v2792 = vshll.u32 %v2791, 30
    %v2793 = vsub.s32 %v2789, %v2792
    %vm2794 = vcmp.lt.s32.totalorder %v2793, 0
    %v2795 = vsub.s32 0, %v2793
    %v2796 = vsel %vm2794, %v2795, %v2793
    %v2797 = vclz %v2796
    %v2798 = vsub.s32 %v2797, 2
    %vm2799 = vcmp.gt.s32.totalorder 0, %v2798
    %v2800 = vsel %vm2799, 0, %v2798
    %v2801 = vsub.s32 32, %v2800
    %v2802 = vshll.u32 %v2793, %v2800
    %v2803 = vshrl.u32 %v2785, %v2801
    %v2804 = vor.u32 %v2802, %v2803
    %v2805 = vsub.s32 4294967266, %v2800
    %v2806 = vadd.s32 %v2805, 127
    %v2807 = vshll.u32 %v2806, 23
    %v2808 = vor.u32 4788187, %v2807
    %v2809 = vand.u32 2147483647, %v2808
    %v2811 = vcvt.s32.f32 %v2804
    %v2812 = vmul.f32 %v2811, %v2809
    %v2813 = vxor.u32 %v2812, 2147483648
    %v2814 = vsel %vm2731, %v2813, %v2812
    %v2815 = vsub.s32 4, %v2791
    %v2816 = vsel %vm2731, %v2815, %v2791
    %v2817 = vsel %vm2730, %v2590, %v2814
    %v2818 = vsel %vm2730, 0, %v2816
    %v2819 = vcosq.f32.pop %v2817
    %v2820 = vsinq.f32.pop %v2817
    %vm2821 = vweird.f32 %v2590
    %v2822 = vadd.s32 %v2818, 3
    %v2823 = vand.u32 %v2822, 3
    %vm2824 = vcmp.lt.s32.totalorder %v2823, 2
    %vm2825 = vcmp.eq.s32.totalorder %v2823, 0
    %v2826 = vxor.u32 %v2820, 2147483648
    %v2827 = vsel %vm2825, %v2819, %v2826
    %vm2828 = vcmp.eq.s32.totalorder %v2823, 2
    %v2829 = vxor.u32 %v2819, 2147483648
    %v2830 = vsel %vm2828, %v2829, %v2820
    %v2831 = vsel %vm2824, %v2827, %v2830
    %v2832 = vsel %vm2821, nan, %v2831
    %v2833 = vand.u32 2147483647, %v2595
    %vm2834 = vcmp.le.f32.partialorder %v2833, 0.7853982
    %vm2835 = vcmp.lt.s32.totalorder %v2595, 0
    %v2836 = vand.u32 %v2595, 2139095040
    %v2837 = vshrl.u32 %v2836, 23
    %v2838 = vsub.s32 %v2837, 127
    %v2839 = vand.u32 2147483647, %v2595
    %v2840 = vand.u32 %v2839, 8388607
    %v2841 = vor.u32 %v2840, 8388608
    %v2842 = vsub.s32 0, %v2841
    %v2843 = vadd.s32 %v2838, 1
    %vm2844 = vcmp.gt.s32.totalorder %v2843, 0
    %v2845 = vsel %vm2844, %v2843, 0
    %v2846 = vshrl.u32 %v2845, 5
    %v2847 = vand.u32 %v2845, 31
    %v2848 = vsub.s32 32, %v2847
    %v2849 = vshrl.u32 683565275, %v2848
    %v2850 = vshll.u32 683565275, %v2847
    %v2851 = vshrl.u32 2475754826, %v2848
    %v2852 = vor.u32 %v2850, %v2851
    %v2853 = vshll.u32 2475754826, %v2847
    %v2854 = vshrl.u32 2131351028, %v2848
    %v2855 = vor.u32 %v2853, %v2854
    %v2856 = vshll.u32 2131351028, %v2847
    %v2857 = vshrl.u32 2102212464, %v2848
    %v2858 = vor.u32 %v2856, %v2857
    %v2859 = vshll.u32 2102212464, %v2847
    %v2860 = vshrl.u32 920167782, %v2848
    %v2861 = vor.u32 %v2859, %v2860
    %v2862 = vshll.u32 920167782, %v2847
    %v2863 = vshrl.u32 1326507024, %v2848
    %v2864 = vor.u32 %v2862, %v2863
    %vm2865 = vcmp.lt.s32.totalorder %v2846, 1
    %vm2866 = vcmp.lt.s32.totalorder %v2846, 2
    %vm2867 = vcmp.lt.s32.totalorder %v2846, 3
    %vm2868 = vcmp.lt.s32.totalorder %v2846, 4
    %v2869 = vsel %vm2865, %v2849, %v2852
    %v2870 = vsel %vm2868, %v2858, 2102212464
    %v2871 = vsel %vm2867, %v2855, %v2870
    %v2872 = vsel %vm2866, %v2869, %v2871
    %v2873 = vsel %vm2865, %v2852, %v2855
    %v2874 = vsel %vm2868, %v2861, 920167782
    %v2875 = vsel %vm2867, %v2858, %v2874
    %v2876 = vsel %vm2866, %v2873, %v2875
    %v2877 = vsel %vm2865, %v2855, %v2858
    %v2878 = vsel %vm2868, %v2864, 1326507024
    %v2879 = vsel %vm2867, %v2861, %v2878
    %v2880 = vsel %vm2866, %v2877, %v2879
    %v2881 = vshll.u32 %v2841, 8
    %v2882 = vmul.u32.u64.compose %v2881, %v2880
    %v2883 = vextract.low.u32 %v2882
    %v2884 = vextract.high.u32 %v2882
    %v2885 = vmul.u32.u64.compose %v2881, %v2876
    %v2886 = vextract.low.u32 %v2885
    %v2887 = vextract.high.u32 %v2885
    %v2888 = vmul.u32 %v2881, %v2872
    %v2889 = vadd.s32 %v2884, %v2886
    %vm2890 = vc.u32 %v2884, %v2886
    %v2891 = vadd.s32 %v2887, 1
    %v2892 = vsel %vm2890, %v2891, %v2887
    %v2893 = vadd.s32 %v2888, %v2892
    %v2894 = vadd.s32 %v2893, 536870912
    %v2895 = vshrl.u32 %v2894, 30
    %v2896 = vshll.u32 %v2895, 30
    %v2897 = vsub.s32 %v2893, %v2896
    %vm2898 = vcmp.lt.s32.totalorder %v2897, 0
    %v2899 = vsub.s32 0, %v2897
    %v2900 = vsel %vm2898, %v2899, %v2897
    %v2901 = vclz %v2900
    %v2902 = vsub.s32 %v2901, 2
    %vm2903 = vcmp.gt.s32.totalorder 0, %v2902
    %v2904 = vsel %vm2903, 0, %v2902
    %v2905 = vsub.s32 32, %v2904
    %v2906 = vshll.u32 %v2897, %v2904
    %v2907 = vshrl.u32 %v2889, %v2905
    %v2908 = vor.u32 %v2906, %v2907
    %v2909 = vsub.s32 4294967266, %v2904
    %v2910 = vadd.s32 %v2909, 127
    %v2911 = vshll.u32 %v2910, 23
    %v2912 = vor.u32 4788187, %v2911
    %v2913 = vand.u32 2147483647, %v2912
    %v2915 = vcvt.s32.f32 %v2908
    %v2916 = vmul.f32 %v2915, %v2913
    %v2917 = vxor.u32 %v2916, 2147483648
    %v2918 = vsel %vm2835, %v2917, %v2916
    %v2919 = vsub.s32 4, %v2895
    %v2920 = vsel %vm2835, %v2919, %v2895
    %v2921 = vsel %vm2834, %v2595, %v2918
    %v2922 = vsel %vm2834, 0, %v2920
    %v2923 = vcosq.f32.pop %v2921
    %v2924 = vsinq.f32.pop %v2921
    %vm2925 = vweird.f32 %v2595
    %v2926 = vadd.s32 %v2922, 3
    %v2927 = vand.u32 %v2926, 3
    %vm2928 = vcmp.lt.s32.totalorder %v2927, 2
    %vm2929 = vcmp.eq.s32.totalorder %v2927, 0
    %v2930 = vxor.u32 %v2924, 2147483648
    %v2931 = vsel %vm2929, %v2923, %v2930
    %vm2932 = vcmp.eq.s32.totalorder %v2927, 2
    %v2933 = vxor.u32 %v2923, 2147483648
    %v2934 = vsel %vm2932, %v2933, %v2924
    %v2935 = vsel %vm2928, %v2931, %v2934
    %v2936 = vsel %vm2925, nan, %v2935
    %v2937 = vand.u32 2147483647, %v2598
    %vm2938 = vcmp.le.f32.partialorder %v2937, 0.7853982
    %vm2939 = vcmp.lt.s32.totalorder %v2598, 0
    %v2940 = vand.u32 %v2598, 2139095040
    %v2941 = vshrl.u32 %v2940, 23
    %v2942 = vsub.s32 %v2941, 127
    %v2943 = vand.u32 2147483647, %v2598
    %v2944 = vand.u32 %v2943, 8388607
    %v2945 = vor.u32 %v2944, 8388608
    %v2946 = vsub.s32 0, %v2945
    %v2947 = vadd.s32 %v2942, 1
    %vm2948 = vcmp.gt.s32.totalorder %v2947, 0
    %v2949 = vsel %vm2948, %v2947, 0
    %v2950 = vshrl.u32 %v2949, 5
    %v2951 = vand.u32 %v2949, 31
    %v2952 = vsub.s32 32, %v2951
    %v2953 = vshrl.u32 683565275, %v2952
    %v2954 = vshll.u32 683565275, %v2951
    %v2955 = vshrl.u32 2475754826, %v2952
    %v2956 = vor.u32 %v2954, %v2955
    %v2957 = vshll.u32 2475754826, %v2951
    %v2958 = vshrl.u32 2131351028, %v2952
    %v2959 = vor.u32 %v2957, %v2958
    %v2960 = vshll.u32 2131351028, %v2951
    %v2961 = vshrl.u32 2102212464, %v2952
    %v2962 = vor.u32 %v2960, %v2961
    %v2963 = vshll.u32 2102212464, %v2951
    %v2964 = vshrl.u32 920167782, %v2952
    %v2965 = vor.u32 %v2963, %v2964
    %v2966 = vshll.u32 920167782, %v2951
    %v2967 = vshrl.u32 1326507024, %v2952
    %v2968 = vor.u32 %v2966, %v2967
    %vm2969 = vcmp.lt.s32.totalorder %v2950, 1
    %vm2970 = vcmp.lt.s32.totalorder %v2950, 2
    %vm2971 = vcmp.lt.s32.totalorder %v2950, 3
    %vm2972 = vcmp.lt.s32.totalorder %v2950, 4
    %v2973 = vsel %vm2969, %v2953, %v2956
    %v2974 = vsel %vm2972, %v2962, 2102212464
    %v2975 = vsel %vm2971, %v2959, %v2974
    %v2976 = vsel %vm2970, %v2973, %v2975
    %v2977 = vsel %vm2969, %v2956, %v2959
    %v2978 = vsel %vm2972, %v2965, 920167782
    %v2979 = vsel %vm2971, %v2962, %v2978
    %v2980 = vsel %vm2970, %v2977, %v2979
    %v2981 = vsel %vm2969, %v2959, %v2962
    %v2982 = vsel %vm2972, %v2968, 1326507024
    %v2983 = vsel %vm2971, %v2965, %v2982
    %v2984 = vsel %vm2970, %v2981, %v2983
    %v2985 = vshll.u32 %v2945, 8
    %v2986 = vmul.u32.u64.compose %v2985, %v2984
    %v2987 = vextract.low.u32 %v2986
    %v2988 = vextract.high.u32 %v2986
    %v2989 = vmul.u32.u64.compose %v2985, %v2980
    %v2990 = vextract.low.u32 %v2989
    %v2991 = vextract.high.u32 %v2989
    %v2992 = vmul.u32 %v2985, %v2976
    %v2993 = vadd.s32 %v2988, %v2990
    %vm2994 = vc.u32 %v2988, %v2990
    %v2995 = vadd.s32 %v2991, 1
    %v2996 = vsel %vm2994, %v2995, %v2991
    %v2997 = vadd.s32 %v2992, %v2996
    %v2998 = vadd.s32 %v2997, 536870912
    %v2999 = vshrl.u32 %v2998, 30
    %v3000 = vshll.u32 %v2999, 30
    %v3001 = vsub.s32 %v2997, %v3000
    %vm3002 = vcmp.lt.s32.totalorder %v3001, 0
    %v3003 = vsub.s32 0, %v3001
    %v3004 = vsel %vm3002, %v3003, %v3001
    %v3005 = vclz %v3004
    %v3006 = vsub.s32 %v3005, 2
    %vm3007 = vcmp.gt.s32.totalorder 0, %v3006
    %v3008 = vsel %vm3007, 0, %v3006
    %v3009 = vsub.s32 32, %v3008
    %v3010 = vshll.u32 %v3001, %v3008
    %v3011 = vshrl.u32 %v2993, %v3009
    %v3012 = vor.u32 %v3010, %v3011
    %v3013 = vsub.s32 4294967266, %v3008
    %v3014 = vadd.s32 %v3013, 127
    %v3015 = vshll.u32 %v3014, 23
    %v3016 = vor.u32 4788187, %v3015
    %v3017 = vand.u32 2147483647, %v3016
    %v3019 = vcvt.s32.f32 %v3012
    %v3020 = vmul.f32 %v3019, %v3017
    %v3021 = vxor.u32 %v3020, 2147483648
    %v3022 = vsel %vm2939, %v3021, %v3020
    %v3023 = vsub.s32 4, %v2999
    %v3024 = vsel %vm2939, %v3023, %v2999
    %v3025 = vsel %vm2938, %v2598, %v3022
    %v3026 = vsel %vm2938, 0, %v3024
    %v3027 = vcosq.f32.pop %v3025
    %v3028 = vsinq.f32.pop %v3025
    %vm3029 = vweird.f32 %v2598
    %v3030 = vadd.s32 %v3026, 3
    %v3031 = vand.u32 %v3030, 3
    %vm3032 = vcmp.lt.s32.totalorder %v3031, 2
    %vm3033 = vcmp.eq.s32.totalorder %v3031, 0
    %v3034 = vxor.u32 %v3028, 2147483648
    %v3035 = vsel %vm3033, %v3027, %v3034
    %vm3036 = vcmp.eq.s32.totalorder %v3031, 2
    %v3037 = vxor.u32 %v3027, 2147483648
    %v3038 = vsel %vm3036, %v3037, %v3028
    %v3039 = vsel %vm3032, %v3035, %v3038
    %v3040 = vsel %vm3029, nan, %v3039
    %v3041 = vand.u32 2147483647, %v2603
    %vm3042 = vcmp.le.f32.partialorder %v3041, 0.7853982
    %vm3043 = vcmp.lt.s32.totalorder %v2603, 0
    %v3044 = vand.u32 %v2603, 2139095040
    %v3045 = vshrl.u32 %v3044, 23
    %v3046 = vsub.s32 %v3045, 127
    %v3047 = vand.u32 2147483647, %v2603
    %v3048 = vand.u32 %v3047, 8388607
    %v3049 = vor.u32 %v3048, 8388608
    %v3050 = vsub.s32 0, %v3049
    %v3051 = vadd.s32 %v3046, 1
    %vm3052 = vcmp.gt.s32.totalorder %v3051, 0
    %v3053 = vsel %vm3052, %v3051, 0
    %v3054 = vshrl.u32 %v3053, 5
    %v3055 = vand.u32 %v3053, 31
    %v3056 = vsub.s32 32, %v3055
    %v3057 = vshrl.u32 683565275, %v3056
    %v3058 = vshll.u32 683565275, %v3055
    %v3059 = vshrl.u32 2475754826, %v3056
    %v3060 = vor.u32 %v3058, %v3059
    %v3061 = vshll.u32 2475754826, %v3055
    %v3062 = vshrl.u32 2131351028, %v3056
    %v3063 = vor.u32 %v3061, %v3062
    %v3064 = vshll.u32 2131351028, %v3055
    %v3065 = vshrl.u32 2102212464, %v3056
    %v3066 = vor.u32 %v3064, %v3065
    %v3067 = vshll.u32 2102212464, %v3055
    %v3068 = vshrl.u32 920167782, %v3056
    %v3069 = vor.u32 %v3067, %v3068
    %v3070 = vshll.u32 920167782, %v3055
    %v3071 = vshrl.u32 1326507024, %v3056
    %v3072 = vor.u32 %v3070, %v3071
    %vm3073 = vcmp.lt.s32.totalorder %v3054, 1
    %vm3074 = vcmp.lt.s32.totalorder %v3054, 2
    %vm3075 = vcmp.lt.s32.totalorder %v3054, 3
    %vm3076 = vcmp.lt.s32.totalorder %v3054, 4
    %v3077 = vsel %vm3073, %v3057, %v3060
    %v3078 = vsel %vm3076, %v3066, 2102212464
    %v3079 = vsel %vm3075, %v3063, %v3078
    %v3080 = vsel %vm3074, %v3077, %v3079
    %v3081 = vsel %vm3073, %v3060, %v3063
    %v3082 = vsel %vm3076, %v3069, 920167782
    %v3083 = vsel %vm3075, %v3066, %v3082
    %v3084 = vsel %vm3074, %v3081, %v3083
    %v3085 = vsel %vm3073, %v3063, %v3066
    %v3086 = vsel %vm3076, %v3072, 1326507024
    %v3087 = vsel %vm3075, %v3069, %v3086
    %v3088 = vsel %vm3074, %v3085, %v3087
    %v3089 = vshll.u32 %v3049, 8
    %v3090 = vmul.u32.u64.compose %v3089, %v3088
    %v3091 = vextract.low.u32 %v3090
    %v3092 = vextract.high.u32 %v3090
    %v3093 = vmul.u32.u64.compose %v3089, %v3084
    %v3094 = vextract.low.u32 %v3093
    %v3095 = vextract.high.u32 %v3093
    %v3096 = vmul.u32 %v3089, %v3080
    %v3097 = vadd.s32 %v3092, %v3094
    %vm3098 = vc.u32 %v3092, %v3094
    %v3099 = vadd.s32 %v3095, 1
    %v3100 = vsel %vm3098, %v3099, %v3095
    %v3101 = vadd.s32 %v3096, %v3100
    %v3102 = vadd.s32 %v3101, 536870912
    %v3103 = vshrl.u32 %v3102, 30
    %v3104 = vshll.u32 %v3103, 30
    %v3105 = vsub.s32 %v3101, %v3104
    %vm3106 = vcmp.lt.s32.totalorder %v3105, 0
    %v3107 = vsub.s32 0, %v3105
    %v3108 = vsel %vm3106, %v3107, %v3105
    %v3109 = vclz %v3108
    %v3110 = vsub.s32 %v3109, 2
    %vm3111 = vcmp.gt.s32.totalorder 0, %v3110
    %v3112 = vsel %vm3111, 0, %v3110
    %v3113 = vsub.s32 32, %v3112
    %v3114 = vshll.u32 %v3105, %v3112
    %v3115 = vshrl.u32 %v3097, %v3113
    %v3116 = vor.u32 %v3114, %v3115
    %v3117 = vsub.s32 4294967266, %v3112
    %v3118 = vadd.s32 %v3117, 127
    %v3119 = vshll.u32 %v3118, 23
    %v3120 = vor.u32 4788187, %v3119
    %v3121 = vand.u32 2147483647, %v3120
    %v3123 = vcvt.s32.f32 %v3116
    %v3124 = vmul.f32 %v3123, %v3121
    %v3125 = vxor.u32 %v3124, 2147483648
    %v3126 = vsel %vm3043, %v3125, %v3124
    %v3127 = vsub.s32 4, %v3103
    %v3128 = vsel %vm3043, %v3127, %v3103
    %v3129 = vsel %vm3042, %v2603, %v3126
    %v3130 = vsel %vm3042, 0, %v3128
    %v3131 = vcosq.f32.pop %v3129
    %v3132 = vsinq.f32.pop %v3129
    %vm3133 = vweird.f32 %v2603
    %v3134 = vadd.s32 %v3130, 3
    %v3135 = vand.u32 %v3134, 3
    %vm3136 = vcmp.lt.s32.totalorder %v3135, 2
    %vm3137 = vcmp.eq.s32.totalorder %v3135, 0
    %v3138 = vxor.u32 %v3132, 2147483648
    %v3139 = vsel %vm3137, %v3131, %v3138
    %vm3140 = vcmp.eq.s32.totalorder %v3135, 2
    %v3141 = vxor.u32 %v3131, 2147483648
    %v3142 = vsel %vm3140, %v3141, %v3132
    %v3143 = vsel %vm3136, %v3139, %v3142
    %v3144 = vsel %vm3133, nan, %v3143
    %v3145 = vand.u32 2147483647, %v2606
    %vm3146 = vcmp.le.f32.partialorder %v3145, 0.7853982
    %vm3147 = vcmp.lt.s32.totalorder %v2606, 0
    %v3148 = vand.u32 %v2606, 2139095040
    %v3149 = vshrl.u32 %v3148, 23
    %v3150 = vsub.s32 %v3149, 127
    %v3151 = vand.u32 2147483647, %v2606
    %v3152 = vand.u32 %v3151, 8388607
    %v3153 = vor.u32 %v3152, 8388608
    %v3154 = vsub.s32 0, %v3153
    %v3155 = vadd.s32 %v3150, 1
    %vm3156 = vcmp.gt.s32.totalorder %v3155, 0
    %v3157 = vsel %vm3156, %v3155, 0
    %v3158 = vshrl.u32 %v3157, 5
    %v3159 = vand.u32 %v3157, 31
    %v3160 = vsub.s32 32, %v3159
    %v3161 = vshrl.u32 683565275, %v3160
    %v3162 = vshll.u32 683565275, %v3159
    %v3163 = vshrl.u32 2475754826, %v3160
    %v3164 = vor.u32 %v3162, %v3163
    %v3165 = vshll.u32 2475754826, %v3159
    %v3166 = vshrl.u32 2131351028, %v3160
    %v3167 = vor.u32 %v3165, %v3166
    %v3168 = vshll.u32 2131351028, %v3159
    %v3169 = vshrl.u32 2102212464, %v3160
    %v3170 = vor.u32 %v3168, %v3169
    %v3171 = vshll.u32 2102212464, %v3159
    %v3172 = vshrl.u32 920167782, %v3160
    %v3173 = vor.u32 %v3171, %v3172
    %v3174 = vshll.u32 920167782, %v3159
    %v3175 = vshrl.u32 1326507024, %v3160
    %v3176 = vor.u32 %v3174, %v3175
    %vm3177 = vcmp.lt.s32.totalorder %v3158, 1
    %vm3178 = vcmp.lt.s32.totalorder %v3158, 2
    %vm3179 = vcmp.lt.s32.totalorder %v3158, 3
    %vm3180 = vcmp.lt.s32.totalorder %v3158, 4
    %v3181 = vsel %vm3177, %v3161, %v3164
    %v3182 = vsel %vm3180, %v3170, 2102212464
    %v3183 = vsel %vm3179, %v3167, %v3182
    %v3184 = vsel %vm3178, %v3181, %v3183
    %v3185 = vsel %vm3177, %v3164, %v3167
    %v3186 = vsel %vm3180, %v3173, 920167782
    %v3187 = vsel %vm3179, %v3170, %v3186
    %v3188 = vsel %vm3178, %v3185, %v3187
    %v3189 = vsel %vm3177, %v3167, %v3170
    %v3190 = vsel %vm3180, %v3176, 1326507024
    %v3191 = vsel %vm3179, %v3173, %v3190
    %v3192 = vsel %vm3178, %v3189, %v3191
    %v3193 = vshll.u32 %v3153, 8
    %v3194 = vmul.u32.u64.compose %v3193, %v3192
    %v3195 = vextract.low.u32 %v3194
    %v3196 = vextract.high.u32 %v3194
    %v3197 = vmul.u32.u64.compose %v3193, %v3188
    %v3198 = vextract.low.u32 %v3197
    %v3199 = vextract.high.u32 %v3197
    %v3200 = vmul.u32 %v3193, %v3184
    %v3201 = vadd.s32 %v3196, %v3198
    %vm3202 = vc.u32 %v3196, %v3198
    %v3203 = vadd.s32 %v3199, 1
    %v3204 = vsel %vm3202, %v3203, %v3199
    %v3205 = vadd.s32 %v3200, %v3204
    %v3206 = vadd.s32 %v3205, 536870912
    %v3207 = vshrl.u32 %v3206, 30
    %v3208 = vshll.u32 %v3207, 30
    %v3209 = vsub.s32 %v3205, %v3208
    %vm3210 = vcmp.lt.s32.totalorder %v3209, 0
    %v3211 = vsub.s32 0, %v3209
    %v3212 = vsel %vm3210, %v3211, %v3209
    %v3213 = vclz %v3212
    %v3214 = vsub.s32 %v3213, 2
    %vm3215 = vcmp.gt.s32.totalorder 0, %v3214
    %v3216 = vsel %vm3215, 0, %v3214
    %v3217 = vsub.s32 32, %v3216
    %v3218 = vshll.u32 %v3209, %v3216
    %v3219 = vshrl.u32 %v3201, %v3217
    %v3220 = vor.u32 %v3218, %v3219
    %v3221 = vsub.s32 4294967266, %v3216
    %v3222 = vadd.s32 %v3221, 127
    %v3223 = vshll.u32 %v3222, 23
    %v3224 = vor.u32 4788187, %v3223
    %v3225 = vand.u32 2147483647, %v3224
    %v3227 = vcvt.s32.f32 %v3220
    %v3228 = vmul.f32 %v3227, %v3225
    %v3229 = vxor.u32 %v3228, 2147483648
    %v3230 = vsel %vm3147, %v3229, %v3228
    %v3231 = vsub.s32 4, %v3207
    %v3232 = vsel %vm3147, %v3231, %v3207
    %v3233 = vsel %vm3146, %v2606, %v3230
    %v3234 = vsel %vm3146, 0, %v3232
    %v3235 = vcosq.f32.pop %v3233
    %v3236 = vsinq.f32.pop %v3233
    %vm3237 = vweird.f32 %v2606
    %v3238 = vadd.s32 %v3234, 3
    %v3239 = vand.u32 %v3238, 3
    %vm3240 = vcmp.lt.s32.totalorder %v3239, 2
    %vm3241 = vcmp.eq.s32.totalorder %v3239, 0
    %v3242 = vxor.u32 %v3236, 2147483648
    %v3243 = vsel %vm3241, %v3235, %v3242
    %vm3244 = vcmp.eq.s32.totalorder %v3239, 2
    %v3245 = vxor.u32 %v3235, 2147483648
    %v3246 = vsel %vm3244, %v3245, %v3236
    %v3247 = vsel %vm3240, %v3243, %v3246
    %v3248 = vsel %vm3237, nan, %v3247
    %v3249 = vand.u32 2147483647, %v2611
    %vm3250 = vcmp.le.f32.partialorder %v3249, 0.7853982
    %vm3251 = vcmp.lt.s32.totalorder %v2611, 0
    %v3252 = vand.u32 %v2611, 2139095040
    %v3253 = vshrl.u32 %v3252, 23
    %v3254 = vsub.s32 %v3253, 127
    %v3255 = vand.u32 2147483647, %v2611
    %v3256 = vand.u32 %v3255, 8388607
    %v3257 = vor.u32 %v3256, 8388608
    %v3258 = vsub.s32 0, %v3257
    %v3259 = vadd.s32 %v3254, 1
    %vm3260 = vcmp.gt.s32.totalorder %v3259, 0
    %v3261 = vsel %vm3260, %v3259, 0
    %v3262 = vshrl.u32 %v3261, 5
    %v3263 = vand.u32 %v3261, 31
    %v3264 = vsub.s32 32, %v3263
    %v3265 = vshrl.u32 683565275, %v3264
    %v3266 = vshll.u32 683565275, %v3263
    %v3267 = vshrl.u32 2475754826, %v3264
    %v3268 = vor.u32 %v3266, %v3267
    %v3269 = vshll.u32 2475754826, %v3263
    %v3270 = vshrl.u32 2131351028, %v3264
    %v3271 = vor.u32 %v3269, %v3270
    %v3272 = vshll.u32 2131351028, %v3263
    %v3273 = vshrl.u32 2102212464, %v3264
    %v3274 = vor.u32 %v3272, %v3273
    %v3275 = vshll.u32 2102212464, %v3263
    %v3276 = vshrl.u32 920167782, %v3264
    %v3277 = vor.u32 %v3275, %v3276
    %v3278 = vshll.u32 920167782, %v3263
    %v3279 = vshrl.u32 1326507024, %v3264
    %v3280 = vor.u32 %v3278, %v3279
    %vm3281 = vcmp.lt.s32.totalorder %v3262, 1
    %vm3282 = vcmp.lt.s32.totalorder %v3262, 2
    %vm3283 = vcmp.lt.s32.totalorder %v3262, 3
    %vm3284 = vcmp.lt.s32.totalorder %v3262, 4
    %v3285 = vsel %vm3281, %v3265, %v3268
    %v3286 = vsel %vm3284, %v3274, 2102212464
    %v3287 = vsel %vm3283, %v3271, %v3286
    %v3288 = vsel %vm3282, %v3285, %v3287
    %v3289 = vsel %vm3281, %v3268, %v3271
    %v3290 = vsel %vm3284, %v3277, 920167782
    %v3291 = vsel %vm3283, %v3274, %v3290
    %v3292 = vsel %vm3282, %v3289, %v3291
    %v3293 = vsel %vm3281, %v3271, %v3274
    %v3294 = vsel %vm3284, %v3280, 1326507024
    %v3295 = vsel %vm3283, %v3277, %v3294
    %v3296 = vsel %vm3282, %v3293, %v3295
    %v3297 = vshll.u32 %v3257, 8
    %v3298 = vmul.u32.u64.compose %v3297, %v3296
    %v3299 = vextract.low.u32 %v3298
    %v3300 = vextract.high.u32 %v3298
    %v3301 = vmul.u32.u64.compose %v3297, %v3292
    %v3302 = vextract.low.u32 %v3301
    %v3303 = vextract.high.u32 %v3301
    %v3304 = vmul.u32 %v3297, %v3288
    %v3305 = vadd.s32 %v3300, %v3302
    %vm3306 = vc.u32 %v3300, %v3302
    %v3307 = vadd.s32 %v3303, 1
    %v3308 = vsel %vm3306, %v3307, %v3303
    %v3309 = vadd.s32 %v3304, %v3308
    %v3310 = vadd.s32 %v3309, 536870912
    %v3311 = vshrl.u32 %v3310, 30
    %v3312 = vshll.u32 %v3311, 30
    %v3313 = vsub.s32 %v3309, %v3312
    %vm3314 = vcmp.lt.s32.totalorder %v3313, 0
    %v3315 = vsub.s32 0, %v3313
    %v3316 = vsel %vm3314, %v3315, %v3313
    %v3317 = vclz %v3316
    %v3318 = vsub.s32 %v3317, 2
    %vm3319 = vcmp.gt.s32.totalorder 0, %v3318
    %v3320 = vsel %vm3319, 0, %v3318
    %v3321 = vsub.s32 32, %v3320
    %v3322 = vshll.u32 %v3313, %v3320
    %v3323 = vshrl.u32 %v3305, %v3321
    %v3324 = vor.u32 %v3322, %v3323
    %v3325 = vsub.s32 4294967266, %v3320
    %v3326 = vadd.s32 %v3325, 127
    %v3327 = vshll.u32 %v3326, 23
    %v3328 = vor.u32 4788187, %v3327
    %v3329 = vand.u32 2147483647, %v3328
    %v3331 = vcvt.s32.f32 %v3324
    %v3332 = vmul.f32 %v3331, %v3329
    %v3333 = vxor.u32 %v3332, 2147483648
    %v3334 = vsel %vm3251, %v3333, %v3332
    %v3335 = vsub.s32 4, %v3311
    %v3336 = vsel %vm3251, %v3335, %v3311
    %v3337 = vsel %vm3250, %v2611, %v3334
    %v3338 = vsel %vm3250, 0, %v3336
    %v3339 = vcosq.f32.pop %v3337
    %v3340 = vsinq.f32.pop %v3337
    %vm3341 = vweird.f32 %v2611
    %v3342 = vadd.s32 %v3338, 3
    %v3343 = vand.u32 %v3342, 3
    %vm3344 = vcmp.lt.s32.totalorder %v3343, 2
    %vm3345 = vcmp.eq.s32.totalorder %v3343, 0
    %v3346 = vxor.u32 %v3340, 2147483648
    %v3347 = vsel %vm3345, %v3339, %v3346
    %vm3348 = vcmp.eq.s32.totalorder %v3343, 2
    %v3349 = vxor.u32 %v3339, 2147483648
    %v3350 = vsel %vm3348, %v3349, %v3340
    %v3351 = vsel %vm3344, %v3347, %v3350
    %v3352 = vsel %vm3341, nan, %v3351
    %v3353 = vand.u32 2147483647, %v2614
    %vm3354 = vcmp.le.f32.partialorder %v3353, 0.7853982
    %vm3355 = vcmp.lt.s32.totalorder %v2614, 0
    %v3356 = vand.u32 %v2614, 2139095040
    %v3357 = vshrl.u32 %v3356, 23
    %v3358 = vsub.s32 %v3357, 127
    %v3359 = vand.u32 2147483647, %v2614
    %v3360 = vand.u32 %v3359, 8388607
    %v3361 = vor.u32 %v3360, 8388608
    %v3362 = vsub.s32 0, %v3361
    %v3363 = vadd.s32 %v3358, 1
    %vm3364 = vcmp.gt.s32.totalorder %v3363, 0
    %v3365 = vsel %vm3364, %v3363, 0
    %v3366 = vshrl.u32 %v3365, 5
    %v3367 = vand.u32 %v3365, 31
    %v3368 = vsub.s32 32, %v3367
    %v3369 = vshrl.u32 683565275, %v3368
    %v3370 = vshll.u32 683565275, %v3367
    %v3371 = vshrl.u32 2475754826, %v3368
    %v3372 = vor.u32 %v3370, %v3371
    %v3373 = vshll.u32 2475754826, %v3367
    %v3374 = vshrl.u32 2131351028, %v3368
    %v3375 = vor.u32 %v3373, %v3374
    %v3376 = vshll.u32 2131351028, %v3367
    %v3377 = vshrl.u32 2102212464, %v3368
    %v3378 = vor.u32 %v3376, %v3377
    %v3379 = vshll.u32 2102212464, %v3367
    %v3380 = vshrl.u32 920167782, %v3368
    %v3381 = vor.u32 %v3379, %v3380
    %v3382 = vshll.u32 920167782, %v3367
    %v3383 = vshrl.u32 1326507024, %v3368
    %v3384 = vor.u32 %v3382, %v3383
    %vm3385 = vcmp.lt.s32.totalorder %v3366, 1
    %vm3386 = vcmp.lt.s32.totalorder %v3366, 2
    %vm3387 = vcmp.lt.s32.totalorder %v3366, 3
    %vm3388 = vcmp.lt.s32.totalorder %v3366, 4
    %v3389 = vsel %vm3385, %v3369, %v3372
    %v3390 = vsel %vm3388, %v3378, 2102212464
    %v3391 = vsel %vm3387, %v3375, %v3390
    %v3392 = vsel %vm3386, %v3389, %v3391
    %v3393 = vsel %vm3385, %v3372, %v3375
    %v3394 = vsel %vm3388, %v3381, 920167782
    %v3395 = vsel %vm3387, %v3378, %v3394
    %v3396 = vsel %vm3386, %v3393, %v3395
    %v3397 = vsel %vm3385, %v3375, %v3378
    %v3398 = vsel %vm3388, %v3384, 1326507024
    %v3399 = vsel %vm3387, %v3381, %v3398
    %v3400 = vsel %vm3386, %v3397, %v3399
    %v3401 = vshll.u32 %v3361, 8
    %v3402 = vmul.u32.u64.compose %v3401, %v3400
    %v3403 = vextract.low.u32 %v3402
    %v3404 = vextract.high.u32 %v3402
    %v3405 = vmul.u32.u64.compose %v3401, %v3396
    %v3406 = vextract.low.u32 %v3405
    %v3407 = vextract.high.u32 %v3405
    %v3408 = vmul.u32 %v3401, %v3392
    %v3409 = vadd.s32 %v3404, %v3406
    %vm3410 = vc.u32 %v3404, %v3406
    %v3411 = vadd.s32 %v3407, 1
    %v3412 = vsel %vm3410, %v3411, %v3407
    %v3413 = vadd.s32 %v3408, %v3412
    %v3414 = vadd.s32 %v3413, 536870912
    %v3415 = vshrl.u32 %v3414, 30
    %v3416 = vshll.u32 %v3415, 30
    %v3417 = vsub.s32 %v3413, %v3416
    %vm3418 = vcmp.lt.s32.totalorder %v3417, 0
    %v3419 = vsub.s32 0, %v3417
    %v3420 = vsel %vm3418, %v3419, %v3417
    %v3421 = vclz %v3420
    %v3422 = vsub.s32 %v3421, 2
    %vm3423 = vcmp.gt.s32.totalorder 0, %v3422
    %v3424 = vsel %vm3423, 0, %v3422
    %v3425 = vsub.s32 32, %v3424
    %v3426 = vshll.u32 %v3417, %v3424
    %v3427 = vshrl.u32 %v3409, %v3425
    %v3428 = vor.u32 %v3426, %v3427
    %v3429 = vsub.s32 4294967266, %v3424
    %v3430 = vadd.s32 %v3429, 127
    %v3431 = vshll.u32 %v3430, 23
    %v3432 = vor.u32 4788187, %v3431
    %v3433 = vand.u32 2147483647, %v3432
    %v3435 = vcvt.s32.f32 %v3428
    %v3436 = vmul.f32 %v3435, %v3433
    %v3437 = vxor.u32 %v3436, 2147483648
    %v3438 = vsel %vm3355, %v3437, %v3436
    %v3439 = vsub.s32 4, %v3415
    %v3440 = vsel %vm3355, %v3439, %v3415
    %v3441 = vsel %vm3354, %v2614, %v3438
    %v3442 = vsel %vm3354, 0, %v3440
    %v3443 = vcosq.f32.pop %v3441
    %v3444 = vsinq.f32.pop %v3441
    %vm3445 = vweird.f32 %v2614
    %v3446 = vadd.s32 %v3442, 3
    %v3447 = vand.u32 %v3446, 3
    %vm3448 = vcmp.lt.s32.totalorder %v3447, 2
    %vm3449 = vcmp.eq.s32.totalorder %v3447, 0
    %v3450 = vxor.u32 %v3444, 2147483648
    %v3451 = vsel %vm3449, %v3443, %v3450
    %vm3452 = vcmp.eq.s32.totalorder %v3447, 2
    %v3453 = vxor.u32 %v3443, 2147483648
    %v3454 = vsel %vm3452, %v3453, %v3444
    %v3455 = vsel %vm3448, %v3451, %v3454
    %v3456 = vsel %vm3445, nan, %v3455
    %v3457 = vand.u32 2147483647, %v2619
    %vm3458 = vcmp.le.f32.partialorder %v3457, 0.7853982
    %vm3459 = vcmp.lt.s32.totalorder %v2619, 0
    %v3460 = vand.u32 %v2619, 2139095040
    %v3461 = vshrl.u32 %v3460, 23
    %v3462 = vsub.s32 %v3461, 127
    %v3463 = vand.u32 2147483647, %v2619
    %v3464 = vand.u32 %v3463, 8388607
    %v3465 = vor.u32 %v3464, 8388608
    %v3466 = vsub.s32 0, %v3465
    %v3467 = vadd.s32 %v3462, 1
    %vm3468 = vcmp.gt.s32.totalorder %v3467, 0
    %v3469 = vsel %vm3468, %v3467, 0
    %v3470 = vshrl.u32 %v3469, 5
    %v3471 = vand.u32 %v3469, 31
    %v3472 = vsub.s32 32, %v3471
    %v3473 = vshrl.u32 683565275, %v3472
    %v3474 = vshll.u32 683565275, %v3471
    %v3475 = vshrl.u32 2475754826, %v3472
    %v3476 = vor.u32 %v3474, %v3475
    %v3477 = vshll.u32 2475754826, %v3471
    %v3478 = vshrl.u32 2131351028, %v3472
    %v3479 = vor.u32 %v3477, %v3478
    %v3480 = vshll.u32 2131351028, %v3471
    %v3481 = vshrl.u32 2102212464, %v3472
    %v3482 = vor.u32 %v3480, %v3481
    %v3483 = vshll.u32 2102212464, %v3471
    %v3484 = vshrl.u32 920167782, %v3472
    %v3485 = vor.u32 %v3483, %v3484
    %v3486 = vshll.u32 920167782, %v3471
    %v3487 = vshrl.u32 1326507024, %v3472
    %v3488 = vor.u32 %v3486, %v3487
    %vm3489 = vcmp.lt.s32.totalorder %v3470, 1
    %vm3490 = vcmp.lt.s32.totalorder %v3470, 2
    %vm3491 = vcmp.lt.s32.totalorder %v3470, 3
    %vm3492 = vcmp.lt.s32.totalorder %v3470, 4
    %v3493 = vsel %vm3489, %v3473, %v3476
    %v3494 = vsel %vm3492, %v3482, 2102212464
    %v3495 = vsel %vm3491, %v3479, %v3494
    %v3496 = vsel %vm3490, %v3493, %v3495
    %v3497 = vsel %vm3489, %v3476, %v3479
    %v3498 = vsel %vm3492, %v3485, 920167782
    %v3499 = vsel %vm3491, %v3482, %v3498
    %v3500 = vsel %vm3490, %v3497, %v3499
    %v3501 = vsel %vm3489, %v3479, %v3482
    %v3502 = vsel %vm3492, %v3488, 1326507024
    %v3503 = vsel %vm3491, %v3485, %v3502
    %v3504 = vsel %vm3490, %v3501, %v3503
    %v3505 = vshll.u32 %v3465, 8
    %v3506 = vmul.u32.u64.compose %v3505, %v3504
    %v3507 = vextract.low.u32 %v3506
    %v3508 = vextract.high.u32 %v3506
    %v3509 = vmul.u32.u64.compose %v3505, %v3500
    %v3510 = vextract.low.u32 %v3509
    %v3511 = vextract.high.u32 %v3509
    %v3512 = vmul.u32 %v3505, %v3496
    %v3513 = vadd.s32 %v3508, %v3510
    %vm3514 = vc.u32 %v3508, %v3510
    %v3515 = vadd.s32 %v3511, 1
    %v3516 = vsel %vm3514, %v3515, %v3511
    %v3517 = vadd.s32 %v3512, %v3516
    %v3518 = vadd.s32 %v3517, 536870912
    %v3519 = vshrl.u32 %v3518, 30
    %v3520 = vshll.u32 %v3519, 30
    %v3521 = vsub.s32 %v3517, %v3520
    %vm3522 = vcmp.lt.s32.totalorder %v3521, 0
    %v3523 = vsub.s32 0, %v3521
    %v3524 = vsel %vm3522, %v3523, %v3521
    %v3525 = vclz %v3524
    %v3526 = vsub.s32 %v3525, 2
    %vm3527 = vcmp.gt.s32.totalorder 0, %v3526
    %v3528 = vsel %vm3527, 0, %v3526
    %v3529 = vsub.s32 32, %v3528
    %v3530 = vshll.u32 %v3521, %v3528
    %v3531 = vshrl.u32 %v3513, %v3529
    %v3532 = vor.u32 %v3530, %v3531
    %v3533 = vsub.s32 4294967266, %v3528
    %v3534 = vadd.s32 %v3533, 127
    %v3535 = vshll.u32 %v3534, 23
    %v3536 = vor.u32 4788187, %v3535
    %v3537 = vand.u32 2147483647, %v3536
    %v3539 = vcvt.s32.f32 %v3532
    %v3540 = vmul.f32 %v3539, %v3537
    %v3541 = vxor.u32 %v3540, 2147483648
    %v3542 = vsel %vm3459, %v3541, %v3540
    %v3543 = vsub.s32 4, %v3519
    %v3544 = vsel %vm3459, %v3543, %v3519
    %v3545 = vsel %vm3458, %v2619, %v3542
    %v3546 = vsel %vm3458, 0, %v3544
    %v3547 = vcosq.f32.pop %v3545
    %v3548 = vsinq.f32.pop %v3545
    %vm3549 = vweird.f32 %v2619
    %v3550 = vadd.s32 %v3546, 3
    %v3551 = vand.u32 %v3550, 3
    %vm3552 = vcmp.lt.s32.totalorder %v3551, 2
    %vm3553 = vcmp.eq.s32.totalorder %v3551, 0
    %v3554 = vxor.u32 %v3548, 2147483648
    %v3555 = vsel %vm3553, %v3547, %v3554
    %vm3556 = vcmp.eq.s32.totalorder %v3551, 2
    %v3557 = vxor.u32 %v3547, 2147483648
    %v3558 = vsel %vm3556, %v3557, %v3548
    %v3559 = vsel %vm3552, %v3555, %v3558
    %v3560 = vsel %vm3549, nan, %v3559
    %v3561 = vand.u32 2147483647, %v2622
    %vm3562 = vcmp.le.f32.partialorder %v3561, 0.7853982
    %vm3563 = vcmp.lt.s32.totalorder %v2622, 0
    %v3564 = vand.u32 %v2622, 2139095040
    %v3565 = vshrl.u32 %v3564, 23
    %v3566 = vsub.s32 %v3565, 127
    %v3567 = vand.u32 2147483647, %v2622
    %v3568 = vand.u32 %v3567, 8388607
    %v3569 = vor.u32 %v3568, 8388608
    %v3570 = vsub.s32 0, %v3569
    %v3571 = vadd.s32 %v3566, 1
    %vm3572 = vcmp.gt.s32.totalorder %v3571, 0
    %v3573 = vsel %vm3572, %v3571, 0
    %v3574 = vshrl.u32 %v3573, 5
    %v3575 = vand.u32 %v3573, 31
    %v3576 = vsub.s32 32, %v3575
    %v3577 = vshrl.u32 683565275, %v3576
    %v3578 = vshll.u32 683565275, %v3575
    %v3579 = vshrl.u32 2475754826, %v3576
    %v3580 = vor.u32 %v3578, %v3579
    %v3581 = vshll.u32 2475754826, %v3575
    %v3582 = vshrl.u32 2131351028, %v3576
    %v3583 = vor.u32 %v3581, %v3582
    %v3584 = vshll.u32 2131351028, %v3575
    %v3585 = vshrl.u32 2102212464, %v3576
    %v3586 = vor.u32 %v3584, %v3585
    %v3587 = vshll.u32 2102212464, %v3575
    %v3588 = vshrl.u32 920167782, %v3576
    %v3589 = vor.u32 %v3587, %v3588
    %v3590 = vshll.u32 920167782, %v3575
    %v3591 = vshrl.u32 1326507024, %v3576
    %v3592 = vor.u32 %v3590, %v3591
    %vm3593 = vcmp.lt.s32.totalorder %v3574, 1
    %vm3594 = vcmp.lt.s32.totalorder %v3574, 2
    %vm3595 = vcmp.lt.s32.totalorder %v3574, 3
    %vm3596 = vcmp.lt.s32.totalorder %v3574, 4
    %v3597 = vsel %vm3593, %v3577, %v3580
    %v3598 = vsel %vm3596, %v3586, 2102212464
    %v3599 = vsel %vm3595, %v3583, %v3598
    %v3600 = vsel %vm3594, %v3597, %v3599
    %v3601 = vsel %vm3593, %v3580, %v3583
    %v3602 = vsel %vm3596, %v3589, 920167782
    %v3603 = vsel %vm3595, %v3586, %v3602
    %v3604 = vsel %vm3594, %v3601, %v3603
    %v3605 = vsel %vm3593, %v3583, %v3586
    %v3606 = vsel %vm3596, %v3592, 1326507024
    %v3607 = vsel %vm3595, %v3589, %v3606
    %v3608 = vsel %vm3594, %v3605, %v3607
    %v3609 = vshll.u32 %v3569, 8
    %v3610 = vmul.u32.u64.compose %v3609, %v3608
    %v3611 = vextract.low.u32 %v3610
    %v3612 = vextract.high.u32 %v3610
    %v3613 = vmul.u32.u64.compose %v3609, %v3604
    %v3614 = vextract.low.u32 %v3613
    %v3615 = vextract.high.u32 %v3613
    %v3616 = vmul.u32 %v3609, %v3600
    %v3617 = vadd.s32 %v3612, %v3614
    %vm3618 = vc.u32 %v3612, %v3614
    %v3619 = vadd.s32 %v3615, 1
    %v3620 = vsel %vm3618, %v3619, %v3615
    %v3621 = vadd.s32 %v3616, %v3620
    %v3622 = vadd.s32 %v3621, 536870912
    %v3623 = vshrl.u32 %v3622, 30
    %v3624 = vshll.u32 %v3623, 30
    %v3625 = vsub.s32 %v3621, %v3624
    %vm3626 = vcmp.lt.s32.totalorder %v3625, 0
    %v3627 = vsub.s32 0, %v3625
    %v3628 = vsel %vm3626, %v3627, %v3625
    %v3629 = vclz %v3628
    %v3630 = vsub.s32 %v3629, 2
    %vm3631 = vcmp.gt.s32.totalorder 0, %v3630
    %v3632 = vsel %vm3631, 0, %v3630
    %v3633 = vsub.s32 32, %v3632
    %v3634 = vshll.u32 %v3625, %v3632
    %v3635 = vshrl.u32 %v3617, %v3633
    %v3636 = vor.u32 %v3634, %v3635
    %v3637 = vsub.s32 4294967266, %v3632
    %v3638 = vadd.s32 %v3637, 127
    %v3639 = vshll.u32 %v3638, 23
    %v3640 = vor.u32 4788187, %v3639
    %v3641 = vand.u32 2147483647, %v3640
    %v3643 = vcvt.s32.f32 %v3636
    %v3644 = vmul.f32 %v3643, %v3641
    %v3645 = vxor.u32 %v3644, 2147483648
    %v3646 = vsel %vm3563, %v3645, %v3644
    %v3647 = vsub.s32 4, %v3623
    %v3648 = vsel %vm3563, %v3647, %v3623
    %v3649 = vsel %vm3562, %v2622, %v3646
    %v3650 = vsel %vm3562, 0, %v3648
    %v3651 = vcosq.f32.pop %v3649
    %v3652 = vsinq.f32.pop %v3649
    %vm3653 = vweird.f32 %v2622
    %v3654 = vadd.s32 %v3650, 3
    %v3655 = vand.u32 %v3654, 3
    %vm3656 = vcmp.lt.s32.totalorder %v3655, 2
    %vm3657 = vcmp.eq.s32.totalorder %v3655, 0
    %v3658 = vxor.u32 %v3652, 2147483648
    %v3659 = vsel %vm3657, %v3651, %v3658
    %vm3660 = vcmp.eq.s32.totalorder %v3655, 2
    %v3661 = vxor.u32 %v3651, 2147483648
    %v3662 = vsel %vm3660, %v3661, %v3652
    %v3663 = vsel %vm3656, %v3659, %v3662
    %v3664 = vsel %vm3653, nan, %v3663
    %v3665 = vadd.f32 %v348, %v2728
    %v3666 = vadd.f32 %v452, %v2832
    %v3667 = vadd.f32 %v556, %v2936
    %v3668 = vadd.f32 %v660, %v3040
    %v3669 = vadd.f32 %v764, %v3144
    %v3670 = vadd.f32 %v868, %v3248
    %v3671 = vadd.f32 %v972, %v3352
    %v3672 = vadd.f32 %v1076, %v3456
    %v3673 = vadd.f32 %v1180, %v3560
    %v3674 = vadd.f32 %v1284, %v3664
    %s3675 = scalar_lea.vmem [#allocation3], 128
    %v3676 = vld [vmem:[%s3675] sm:$0xf]
    %v3677 = vld [vmem:[%s3675 + $0x4] sm:$0xf]
    %v3678 = vld [vmem:[%s3675 + $0x8] sm:$0xf]
    %v3679 = vld [vmem:[%s3675 + $0xc] sm:$0xf]
    %v3680 = vld [vmem:[%s3675 + $0x10] sm:$0xf]
    %v3681 = vld [vmem:[%s3675 + $0x14] sm:$0xf]
    %v3682 = vld [vmem:[%s3675 + $0x18] sm:$0xf]
    %v3683 = vld [vmem:[%s3675 + $0x1c] sm:$0xf]
    %v3684 = vld [vmem:[%s3675 + $0x20] sm:$0xf]
    %v3685 = vld [vmem:[%s3675 + $0x24] sm:$0xf]
    %v3686 = vld [vmem:[%s3675 + $0x28] sm:$0xf]
    %v3687 = vld [vmem:[%s3675 + $0x2c] sm:$0xf]
    %v3688 = vld [vmem:[%s3675 + $0x30] sm:$0xf]
    %v3689 = vld [vmem:[%s3675 + $0x34] sm:$0xf]
    %v3690 = vld [vmem:[%s3675 + $0x38] sm:$0xf]
    %v3691 = vld [vmem:[%s3675 + $0x3c] sm:$0xf]
    %s3692 = scalar_lea.vmem %s4, 2
    %v3693 = vld [vmem:[%s3692] sm:$0x1]
    %v3694 = vpack.c.bf16 %v3666, %v3665
    %v3695 = vpack.c.bf16 %v3668, %v3667
    %v3696 = vpack.c.bf16 %v3670, %v3669
    %v3697 = vpack.c.bf16 %v3672, %v3671
    %v3698 = vpack.c.bf16 %v3674, %v3673
    %v3700 = vlaneseq
    %v3701 = vshrl.u32 %v3700, 7
    %v3702 = vsub.s32 0, %v3701
    %v3703 = vrot.slane %v3693, %v3702
    %v3721 = vunpack.c.l.b16 %v3676
    %v3722 = vunpack.c.l.b16 %v3677
    %v3723 = vunpack.c.l.b16 %v3678
    %v3724 = vunpack.c.l.b16 %v3679
    %v3725 = vunpack.c.l.b16 %v3680
    %v3726 = vunpack.c.l.b16 %v3681
    %v3727 = vunpack.c.l.b16 %v3682
    %v3728 = vunpack.c.l.b16 %v3683
    %v3729 = vunpack.c.l.b16 %v3684
    %v3730 = vunpack.c.l.b16 %v3685
    %v3731 = vunpack.c.l.b16 %v3686
    %v3732 = vunpack.c.l.b16 %v3687
    %v3733 = vunpack.c.l.b16 %v3688
    %v3734 = vunpack.c.l.b16 %v3689
    %v3735 = vunpack.c.l.b16 %v3690
    %v3736 = vunpack.c.l.b16 %v3691
    %v3737 = vpack.c.b16 %v3722, %v3721
    %v3738 = vpack.c.b16 %v3724, %v3723
    %v3739 = vpack.c.b16 %v3726, %v3725
    %v3740 = vpack.c.b16 %v3728, %v3727
    %v3741 = vpack.c.b16 %v3730, %v3729
    %v3742 = vpack.c.b16 %v3732, %v3731
    %v3743 = vpack.c.b16 %v3734, %v3733
    %v3744 = vpack.c.b16 %v3736, %v3735
    %3753 = vmatprep.subr.bf16.mxu0 0
    %3754 = vmatpush1.bf16.msra.mxu0 %v3737
    %3755 = vmatprep.subr.bf16.mxu0 0
    %3756 = vmatpush1.bf16.msra.mxu0 %v3738
    %3757 = vmatprep.subr.bf16.mxu0 0
    %3758 = vmatpush1.bf16.msra.mxu0 %v3739
    %3759 = vmatprep.subr.bf16.mxu0 0
    %3760 = vmatpush1.bf16.msra.mxu0 %v3740
    %3761 = vmatprep.subr.bf16.mxu0 0
    %3762 = vmatpush1.bf16.msra.mxu0 %v3741
    %3763 = vmatprep.subr.bf16.mxu0 0
    %3764 = vmatpush1.bf16.msra.mxu0 %v3742
    %3765 = vmatprep.subr.bf16.mxu0 0
    %3766 = vmatpush1.bf16.msra.mxu0 %v3743
    %3767 = vmatprep.subr.bf16.mxu0 0
    %3768 = vmatpush1.bf16.msra.mxu0 %v3744
    %3769 = vmatprep.subr.bf16.mxu0 0
    %3770 = vmatpush1.bf16.msra.mxu0 0
    %3771 = vmatprep.subr.bf16.mxu0 0
    %3772 = vmatpush1.bf16.msra.mxu0 0
    %3773 = vmatprep.subr.bf16.mxu0 0
    %3774 = vmatpush1.bf16.msra.mxu0 0
    %3775 = vmatprep.subr.bf16.mxu0 0
    %3776 = vmatpush1.bf16.msra.mxu0 0
    %3777 = vmatprep.subr.bf16.mxu0 0
    %3778 = vmatpush1.bf16.msra.mxu0 0
    %3779 = vmatprep.subr.bf16.mxu0 0
    %3780 = vmatpush1.bf16.msra.mxu0 0
    %3781 = vmatprep.subr.bf16.mxu0 0
    %3782 = vmatpush1.bf16.msra.mxu0 0
    %3783 = vmatprep.subr.bf16.mxu0 0
    %3784 = vmatpush1.bf16.msra.mxu0 0
    %3785 = vmatprep.mubr.bf16.mxu0 0
    %3786 = vmatmul.mubr.bf16.gmra.mrb[0].mxu0 %v3694
    %v3787 = vpop.f32.mrb[0].mxu0
    %v3788 = vadd.f32 %v3703, %v3787
    %v3789 = vpop.f32.mrb[0].mxu0
    %v3790 = vpop.f32.mrb[0].mxu0
    %v3791 = vadd.f32 %v3703, %v3790
    %v3792 = vpop.f32.mrb[0].mxu0
    %3793 = vmatprep.mubr.bf16.mxu0 0
    %3794 = vmatmul.mubr.bf16.gmra.mrb[0].mxu0 %v3695
    %v3795 = vpop.f32.mrb[0].mxu0
    %v3796 = vadd.f32 %v3703, %v3795
    %v3797 = vpop.f32.mrb[0].mxu0
    %v3798 = vpop.f32.mrb[0].mxu0
    %v3799 = vadd.f32 %v3703, %v3798
    %v3800 = vpop.f32.mrb[0].mxu0
    %3801 = vmatprep.mubr.bf16.mxu0 0
    %3802 = vmatmul.mubr.bf16.gmra.mrb[0].mxu0 %v3696
    %v3803 = vpop.f32.mrb[0].mxu0
    %v3804 = vadd.f32 %v3703, %v3803
    %v3805 = vpop.f32.mrb[0].mxu0
    %v3806 = vpop.f32.mrb[0].mxu0
    %v3807 = vadd.f32 %v3703, %v3806
    %v3808 = vpop.f32.mrb[0].mxu0
    %3809 = vmatprep.mubr.bf16.mxu0 0
    %3810 = vmatmul.mubr.bf16.gmra.mrb[0].mxu0 %v3697
    %v3811 = vpop.f32.mrb[0].mxu0
    %v3812 = vadd.f32 %v3703, %v3811
    %v3813 = vpop.f32.mrb[0].mxu0
    %v3814 = vpop.f32.mrb[0].mxu0
    %v3815 = vadd.f32 %v3703, %v3814
    %v3816 = vpop.f32.mrb[0].mxu0
    %3817 = vmatprep.mubr.bf16.mxu0 0
    %3818 = vmatmul.mubr.bf16.gmra.mrb[0].mxu0 %v3698
    %v3819 = vpop.f32.mrb[0].mxu0
    %v3820 = vadd.f32 %v3703, %v3819
    %v3821 = vpop.f32.mrb[0].mxu0
    %v3822 = vpop.f32.mrb[0].mxu0
    %v3823 = vadd.f32 %v3703, %v3822
    %v3824 = vpop.f32.mrb[0].mxu0
    %3825 = vdwg.mxu0
    %v3826 = vand.u32 2147483647, %v3788
    %vm3827 = vcmp.le.f32.partialorder %v3826, 0.7853982
    %vm3828 = vcmp.lt.s32.totalorder %v3788, 0
    %v3829 = vand.u32 %v3788, 2139095040
    %v3830 = vshrl.u32 %v3829, 23
    %v3831 = vsub.s32 %v3830, 127
    %v3832 = vand.u32 2147483647, %v3788
    %v3833 = vand.u32 %v3832, 8388607
    %v3834 = vor.u32 %v3833, 8388608
    %v3835 = vsub.s32 0, %v3834
    %v3836 = vadd.s32 %v3831, 1
    %vm3837 = vcmp.gt.s32.totalorder %v3836, 0
    %v3838 = vsel %vm3837, %v3836, 0
    %v3839 = vshrl.u32 %v3838, 5
    %v3840 = vand.u32 %v3838, 31
    %v3841 = vsub.s32 32, %v3840
    %v3842 = vshrl.u32 683565275, %v3841
    %v3843 = vshll.u32 683565275, %v3840
    %v3844 = vshrl.u32 2475754826, %v3841
    %v3845 = vor.u32 %v3843, %v3844
    %v3846 = vshll.u32 2475754826, %v3840
    %v3847 = vshrl.u32 2131351028, %v3841
    %v3848 = vor.u32 %v3846, %v3847
    %v3849 = vshll.u32 2131351028, %v3840
    %v3850 = vshrl.u32 2102212464, %v3841
    %v3851 = vor.u32 %v3849, %v3850
    %v3852 = vshll.u32 2102212464, %v3840
    %v3853 = vshrl.u32 920167782, %v3841
    %v3854 = vor.u32 %v3852, %v3853
    %v3855 = vshll.u32 920167782, %v3840
    %v3856 = vshrl.u32 1326507024, %v3841
    %v3857 = vor.u32 %v3855, %v3856
    %vm3858 = vcmp.lt.s32.totalorder %v3839, 1
    %vm3859 = vcmp.lt.s32.totalorder %v3839, 2
    %vm3860 = vcmp.lt.s32.totalorder %v3839, 3
    %vm3861 = vcmp.lt.s32.totalorder %v3839, 4
    %v3862 = vsel %vm3858, %v3842, %v3845
    %v3863 = vsel %vm3861, %v3851, 2102212464
    %v3864 = vsel %vm3860, %v3848, %v3863
    %v3865 = vsel %vm3859, %v3862, %v3864
    %v3866 = vsel %vm3858, %v3845, %v3848
    %v3867 = vsel %vm3861, %v3854, 920167782
    %v3868 = vsel %vm3860, %v3851, %v3867
    %v3869 = vsel %vm3859, %v3866, %v3868
    %v3870 = vsel %vm3858, %v3848, %v3851
    %v3871 = vsel %vm3861, %v3857, 1326507024
    %v3872 = vsel %vm3860, %v3854, %v3871
    %v3873 = vsel %vm3859, %v3870, %v3872
    %v3874 = vshll.u32 %v3834, 8
    %v3875 = vmul.u32.u64.compose %v3874, %v3873
    %v3876 = vextract.low.u32 %v3875
    %v3877 = vextract.high.u32 %v3875
    %v3878 = vmul.u32.u64.compose %v3874, %v3869
    %v3879 = vextract.low.u32 %v3878
    %v3880 = vextract.high.u32 %v3878
    %v3881 = vmul.u32 %v3874, %v3865
    %v3882 = vadd.s32 %v3877, %v3879
    %vm3883 = vc.u32 %v3877, %v3879
    %v3884 = vadd.s32 %v3880, 1
    %v3885 = vsel %vm3883, %v3884, %v3880
    %v3886 = vadd.s32 %v3881, %v3885
    %v3887 = vadd.s32 %v3886, 536870912
    %v3888 = vshrl.u32 %v3887, 30
    %v3889 = vshll.u32 %v3888, 30
    %v3890 = vsub.s32 %v3886, %v3889
    %vm3891 = vcmp.lt.s32.totalorder %v3890, 0
    %v3892 = vsub.s32 0, %v3890
    %v3893 = vsel %vm3891, %v3892, %v3890
    %v3894 = vclz %v3893
    %v3895 = vsub.s32 %v3894, 2
    %vm3896 = vcmp.gt.s32.totalorder 0, %v3895
    %v3897 = vsel %vm3896, 0, %v3895
    %v3898 = vsub.s32 32, %v3897
    %v3899 = vshll.u32 %v3890, %v3897
    %v3900 = vshrl.u32 %v3882, %v3898
    %v3901 = vor.u32 %v3899, %v3900
    %v3902 = vsub.s32 4294967266, %v3897
    %v3903 = vadd.s32 %v3902, 127
    %v3904 = vshll.u32 %v3903, 23
    %v3905 = vor.u32 4788187, %v3904
    %v3906 = vand.u32 2147483647, %v3905
    %v3908 = vcvt.s32.f32 %v3901
    %v3909 = vmul.f32 %v3908, %v3906
    %v3910 = vxor.u32 %v3909, 2147483648
    %v3911 = vsel %vm3828, %v3910, %v3909
    %v3912 = vsub.s32 4, %v3888
    %v3913 = vsel %vm3828, %v3912, %v3888
    %v3914 = vsel %vm3827, %v3788, %v3911
    %v3915 = vsel %vm3827, 0, %v3913
    %v3916 = vcosq.f32.pop %v3914
    %v3917 = vsinq.f32.pop %v3914
    %vm3918 = vweird.f32 %v3788
    %v3919 = vadd.s32 %v3915, 3
    %v3920 = vand.u32 %v3919, 3
    %vm3921 = vcmp.lt.s32.totalorder %v3920, 2
    %vm3922 = vcmp.eq.s32.totalorder %v3920, 0
    %v3923 = vxor.u32 %v3917, 2147483648
    %v3924 = vsel %vm3922, %v3916, %v3923
    %vm3925 = vcmp.eq.s32.totalorder %v3920, 2
    %v3926 = vxor.u32 %v3916, 2147483648
    %v3927 = vsel %vm3925, %v3926, %v3917
    %v3928 = vsel %vm3921, %v3924, %v3927
    %v3929 = vsel %vm3918, nan, %v3928
    %v3930 = vand.u32 2147483647, %v3791
    %vm3931 = vcmp.le.f32.partialorder %v3930, 0.7853982
    %vm3932 = vcmp.lt.s32.totalorder %v3791, 0
    %v3933 = vand.u32 %v3791, 2139095040
    %v3934 = vshrl.u32 %v3933, 23
    %v3935 = vsub.s32 %v3934, 127
    %v3936 = vand.u32 2147483647, %v3791
    %v3937 = vand.u32 %v3936, 8388607
    %v3938 = vor.u32 %v3937, 8388608
    %v3939 = vsub.s32 0, %v3938
    %v3940 = vadd.s32 %v3935, 1
    %vm3941 = vcmp.gt.s32.totalorder %v3940, 0
    %v3942 = vsel %vm3941, %v3940, 0
    %v3943 = vshrl.u32 %v3942, 5
    %v3944 = vand.u32 %v3942, 31
    %v3945 = vsub.s32 32, %v3944
    %v3946 = vshrl.u32 683565275, %v3945
    %v3947 = vshll.u32 683565275, %v3944
    %v3948 = vshrl.u32 2475754826, %v3945
    %v3949 = vor.u32 %v3947, %v3948
    %v3950 = vshll.u32 2475754826, %v3944
    %v3951 = vshrl.u32 2131351028, %v3945
    %v3952 = vor.u32 %v3950, %v3951
    %v3953 = vshll.u32 2131351028, %v3944
    %v3954 = vshrl.u32 2102212464, %v3945
    %v3955 = vor.u32 %v3953, %v3954
    %v3956 = vshll.u32 2102212464, %v3944
    %v3957 = vshrl.u32 920167782, %v3945
    %v3958 = vor.u32 %v3956, %v3957
    %v3959 = vshll.u32 920167782, %v3944
    %v3960 = vshrl.u32 1326507024, %v3945
    %v3961 = vor.u32 %v3959, %v3960
    %vm3962 = vcmp.lt.s32.totalorder %v3943, 1
    %vm3963 = vcmp.lt.s32.totalorder %v3943, 2
    %vm3964 = vcmp.lt.s32.totalorder %v3943, 3
    %vm3965 = vcmp.lt.s32.totalorder %v3943, 4
    %v3966 = vsel %vm3962, %v3946, %v3949
    %v3967 = vsel %vm3965, %v3955, 2102212464
    %v3968 = vsel %vm3964, %v3952, %v3967
    %v3969 = vsel %vm3963, %v3966, %v3968
    %v3970 = vsel %vm3962, %v3949, %v3952
    %v3971 = vsel %vm3965, %v3958, 920167782
    %v3972 = vsel %vm3964, %v3955, %v3971
    %v3973 = vsel %vm3963, %v3970, %v3972
    %v3974 = vsel %vm3962, %v3952, %v3955
    %v3975 = vsel %vm3965, %v3961, 1326507024
    %v3976 = vsel %vm3964, %v3958, %v3975
    %v3977 = vsel %vm3963, %v3974, %v3976
    %v3978 = vshll.u32 %v3938, 8
    %v3979 = vmul.u32.u64.compose %v3978, %v3977
    %v3980 = vextract.low.u32 %v3979
    %v3981 = vextract.high.u32 %v3979
    %v3982 = vmul.u32.u64.compose %v3978, %v3973
    %v3983 = vextract.low.u32 %v3982
    %v3984 = vextract.high.u32 %v3982
    %v3985 = vmul.u32 %v3978, %v3969
    %v3986 = vadd.s32 %v3981, %v3983
    %vm3987 = vc.u32 %v3981, %v3983
    %v3988 = vadd.s32 %v3984, 1
    %v3989 = vsel %vm3987, %v3988, %v3984
    %v3990 = vadd.s32 %v3985, %v3989
    %v3991 = vadd.s32 %v3990, 536870912
    %v3992 = vshrl.u32 %v3991, 30
    %v3993 = vshll.u32 %v3992, 30
    %v3994 = vsub.s32 %v3990, %v3993
    %vm3995 = vcmp.lt.s32.totalorder %v3994, 0
    %v3996 = vsub.s32 0, %v3994
    %v3997 = vsel %vm3995, %v3996, %v3994
    %v3998 = vclz %v3997
    %v3999 = vsub.s32 %v3998, 2
    %vm4000 = vcmp.gt.s32.totalorder 0, %v3999
    %v4001 = vsel %vm4000, 0, %v3999
    %v4002 = vsub.s32 32, %v4001
    %v4003 = vshll.u32 %v3994, %v4001
    %v4004 = vshrl.u32 %v3986, %v4002
    %v4005 = vor.u32 %v4003, %v4004
    %v4006 = vsub.s32 4294967266, %v4001
    %v4007 = vadd.s32 %v4006, 127
    %v4008 = vshll.u32 %v4007, 23
    %v4009 = vor.u32 4788187, %v4008
    %v4010 = vand.u32 2147483647, %v4009
    %v4012 = vcvt.s32.f32 %v4005
    %v4013 = vmul.f32 %v4012, %v4010
    %v4014 = vxor.u32 %v4013, 2147483648
    %v4015 = vsel %vm3932, %v4014, %v4013
    %v4016 = vsub.s32 4, %v3992
    %v4017 = vsel %vm3932, %v4016, %v3992
    %v4018 = vsel %vm3931, %v3791, %v4015
    %v4019 = vsel %vm3931, 0, %v4017
    %v4020 = vcosq.f32.pop %v4018
    %v4021 = vsinq.f32.pop %v4018
    %vm4022 = vweird.f32 %v3791
    %v4023 = vadd.s32 %v4019, 3
    %v4024 = vand.u32 %v4023, 3
    %vm4025 = vcmp.lt.s32.totalorder %v4024, 2
    %vm4026 = vcmp.eq.s32.totalorder %v4024, 0
    %v4027 = vxor.u32 %v4021, 2147483648
    %v4028 = vsel %vm4026, %v4020, %v4027
    %vm4029 = vcmp.eq.s32.totalorder %v4024, 2
    %v4030 = vxor.u32 %v4020, 2147483648
    %v4031 = vsel %vm4029, %v4030, %v4021
    %v4032 = vsel %vm4025, %v4028, %v4031
    %v4033 = vsel %vm4022, nan, %v4032
    %v4034 = vand.u32 2147483647, %v3796
    %vm4035 = vcmp.le.f32.partialorder %v4034, 0.7853982
    %vm4036 = vcmp.lt.s32.totalorder %v3796, 0
    %v4037 = vand.u32 %v3796, 2139095040
    %v4038 = vshrl.u32 %v4037, 23
    %v4039 = vsub.s32 %v4038, 127
    %v4040 = vand.u32 2147483647, %v3796
    %v4041 = vand.u32 %v4040, 8388607
    %v4042 = vor.u32 %v4041, 8388608
    %v4043 = vsub.s32 0, %v4042
    %v4044 = vadd.s32 %v4039, 1
    %vm4045 = vcmp.gt.s32.totalorder %v4044, 0
    %v4046 = vsel %vm4045, %v4044, 0
    %v4047 = vshrl.u32 %v4046, 5
    %v4048 = vand.u32 %v4046, 31
    %v4049 = vsub.s32 32, %v4048
    %v4050 = vshrl.u32 683565275, %v4049
    %v4051 = vshll.u32 683565275, %v4048
    %v4052 = vshrl.u32 2475754826, %v4049
    %v4053 = vor.u32 %v4051, %v4052
    %v4054 = vshll.u32 2475754826, %v4048
    %v4055 = vshrl.u32 2131351028, %v4049
    %v4056 = vor.u32 %v4054, %v4055
    %v4057 = vshll.u32 2131351028, %v4048
    %v4058 = vshrl.u32 2102212464, %v4049
    %v4059 = vor.u32 %v4057, %v4058
    %v4060 = vshll.u32 2102212464, %v4048
    %v4061 = vshrl.u32 920167782, %v4049
    %v4062 = vor.u32 %v4060, %v4061
    %v4063 = vshll.u32 920167782, %v4048
    %v4064 = vshrl.u32 1326507024, %v4049
    %v4065 = vor.u32 %v4063, %v4064
    %vm4066 = vcmp.lt.s32.totalorder %v4047, 1
    %vm4067 = vcmp.lt.s32.totalorder %v4047, 2
    %vm4068 = vcmp.lt.s32.totalorder %v4047, 3
    %vm4069 = vcmp.lt.s32.totalorder %v4047, 4
    %v4070 = vsel %vm4066, %v4050, %v4053
    %v4071 = vsel %vm4069, %v4059, 2102212464
    %v4072 = vsel %vm4068, %v4056, %v4071
    %v4073 = vsel %vm4067, %v4070, %v4072
    %v4074 = vsel %vm4066, %v4053, %v4056
    %v4075 = vsel %vm4069, %v4062, 920167782
    %v4076 = vsel %vm4068, %v4059, %v4075
    %v4077 = vsel %vm4067, %v4074, %v4076
    %v4078 = vsel %vm4066, %v4056, %v4059
    %v4079 = vsel %vm4069, %v4065, 1326507024
    %v4080 = vsel %vm4068, %v4062, %v4079
    %v4081 = vsel %vm4067, %v4078, %v4080
    %v4082 = vshll.u32 %v4042, 8
    %v4083 = vmul.u32.u64.compose %v4082, %v4081
    %v4084 = vextract.low.u32 %v4083
    %v4085 = vextract.high.u32 %v4083
    %v4086 = vmul.u32.u64.compose %v4082, %v4077
    %v4087 = vextract.low.u32 %v4086
    %v4088 = vextract.high.u32 %v4086
    %v4089 = vmul.u32 %v4082, %v4073
    %v4090 = vadd.s32 %v4085, %v4087
    %vm4091 = vc.u32 %v4085, %v4087
    %v4092 = vadd.s32 %v4088, 1
    %v4093 = vsel %vm4091, %v4092, %v4088
    %v4094 = vadd.s32 %v4089, %v4093
    %v4095 = vadd.s32 %v4094, 536870912
    %v4096 = vshrl.u32 %v4095, 30
    %v4097 = vshll.u32 %v4096, 30
    %v4098 = vsub.s32 %v4094, %v4097
    %vm4099 = vcmp.lt.s32.totalorder %v4098, 0
    %v4100 = vsub.s32 0, %v4098
    %v4101 = vsel %vm4099, %v4100, %v4098
    %v4102 = vclz %v4101
    %v4103 = vsub.s32 %v4102, 2
    %vm4104 = vcmp.gt.s32.totalorder 0, %v4103
    %v4105 = vsel %vm4104, 0, %v4103
    %v4106 = vsub.s32 32, %v4105
    %v4107 = vshll.u32 %v4098, %v4105
    %v4108 = vshrl.u32 %v4090, %v4106
    %v4109 = vor.u32 %v4107, %v4108
    %v4110 = vsub.s32 4294967266, %v4105
    %v4111 = vadd.s32 %v4110, 127
    %v4112 = vshll.u32 %v4111, 23
    %v4113 = vor.u32 4788187, %v4112
    %v4114 = vand.u32 2147483647, %v4113
    %v4116 = vcvt.s32.f32 %v4109
    %v4117 = vmul.f32 %v4116, %v4114
    %v4118 = vxor.u32 %v4117, 2147483648
    %v4119 = vsel %vm4036, %v4118, %v4117
    %v4120 = vsub.s32 4, %v4096
    %v4121 = vsel %vm4036, %v4120, %v4096
    %v4122 = vsel %vm4035, %v3796, %v4119
    %v4123 = vsel %vm4035, 0, %v4121
    %v4124 = vcosq.f32.pop %v4122
    %v4125 = vsinq.f32.pop %v4122
    %vm4126 = vweird.f32 %v3796
    %v4127 = vadd.s32 %v4123, 3
    %v4128 = vand.u32 %v4127, 3
    %vm4129 = vcmp.lt.s32.totalorder %v4128, 2
    %vm4130 = vcmp.eq.s32.totalorder %v4128, 0
    %v4131 = vxor.u32 %v4125, 2147483648
    %v4132 = vsel %vm4130, %v4124, %v4131
    %vm4133 = vcmp.eq.s32.totalorder %v4128, 2
    %v4134 = vxor.u32 %v4124, 2147483648
    %v4135 = vsel %vm4133, %v4134, %v4125
    %v4136 = vsel %vm4129, %v4132, %v4135
    %v4137 = vsel %vm4126, nan, %v4136
    %v4138 = vand.u32 2147483647, %v3799
    %vm4139 = vcmp.le.f32.partialorder %v4138, 0.7853982
    %vm4140 = vcmp.lt.s32.totalorder %v3799, 0
    %v4141 = vand.u32 %v3799, 2139095040
    %v4142 = vshrl.u32 %v4141, 23
    %v4143 = vsub.s32 %v4142, 127
    %v4144 = vand.u32 2147483647, %v3799
    %v4145 = vand.u32 %v4144, 8388607
    %v4146 = vor.u32 %v4145, 8388608
    %v4147 = vsub.s32 0, %v4146
    %v4148 = vadd.s32 %v4143, 1
    %vm4149 = vcmp.gt.s32.totalorder %v4148, 0
    %v4150 = vsel %vm4149, %v4148, 0
    %v4151 = vshrl.u32 %v4150, 5
    %v4152 = vand.u32 %v4150, 31
    %v4153 = vsub.s32 32, %v4152
    %v4154 = vshrl.u32 683565275, %v4153
    %v4155 = vshll.u32 683565275, %v4152
    %v4156 = vshrl.u32 2475754826, %v4153
    %v4157 = vor.u32 %v4155, %v4156
    %v4158 = vshll.u32 2475754826, %v4152
    %v4159 = vshrl.u32 2131351028, %v4153
    %v4160 = vor.u32 %v4158, %v4159
    %v4161 = vshll.u32 2131351028, %v4152
    %v4162 = vshrl.u32 2102212464, %v4153
    %v4163 = vor.u32 %v4161, %v4162
    %v4164 = vshll.u32 2102212464, %v4152
    %v4165 = vshrl.u32 920167782, %v4153
    %v4166 = vor.u32 %v4164, %v4165
    %v4167 = vshll.u32 920167782, %v4152
    %v4168 = vshrl.u32 1326507024, %v4153
    %v4169 = vor.u32 %v4167, %v4168
    %vm4170 = vcmp.lt.s32.totalorder %v4151, 1
    %vm4171 = vcmp.lt.s32.totalorder %v4151, 2
    %vm4172 = vcmp.lt.s32.totalorder %v4151, 3
    %vm4173 = vcmp.lt.s32.totalorder %v4151, 4
    %v4174 = vsel %vm4170, %v4154, %v4157
    %v4175 = vsel %vm4173, %v4163, 2102212464
    %v4176 = vsel %vm4172, %v4160, %v4175
    %v4177 = vsel %vm4171, %v4174, %v4176
    %v4178 = vsel %vm4170, %v4157, %v4160
    %v4179 = vsel %vm4173, %v4166, 920167782
    %v4180 = vsel %vm4172, %v4163, %v4179
    %v4181 = vsel %vm4171, %v4178, %v4180
    %v4182 = vsel %vm4170, %v4160, %v4163
    %v4183 = vsel %vm4173, %v4169, 1326507024
    %v4184 = vsel %vm4172, %v4166, %v4183
    %v4185 = vsel %vm4171, %v4182, %v4184
    %v4186 = vshll.u32 %v4146, 8
    %v4187 = vmul.u32.u64.compose %v4186, %v4185
    %v4188 = vextract.low.u32 %v4187
    %v4189 = vextract.high.u32 %v4187
    %v4190 = vmul.u32.u64.compose %v4186, %v4181
    %v4191 = vextract.low.u32 %v4190
    %v4192 = vextract.high.u32 %v4190
    %v4193 = vmul.u32 %v4186, %v4177
    %v4194 = vadd.s32 %v4189, %v4191
    %vm4195 = vc.u32 %v4189, %v4191
    %v4196 = vadd.s32 %v4192, 1
    %v4197 = vsel %vm4195, %v4196, %v4192
    %v4198 = vadd.s32 %v4193, %v4197
    %v4199 = vadd.s32 %v4198, 536870912
    %v4200 = vshrl.u32 %v4199, 30
    %v4201 = vshll.u32 %v4200, 30
    %v4202 = vsub.s32 %v4198, %v4201
    %vm4203 = vcmp.lt.s32.totalorder %v4202, 0
    %v4204 = vsub.s32 0, %v4202
    %v4205 = vsel %vm4203, %v4204, %v4202
    %v4206 = vclz %v4205
    %v4207 = vsub.s32 %v4206, 2
    %vm4208 = vcmp.gt.s32.totalorder 0, %v4207
    %v4209 = vsel %vm4208, 0, %v4207
    %v4210 = vsub.s32 32, %v4209
    %v4211 = vshll.u32 %v4202, %v4209
    %v4212 = vshrl.u32 %v4194, %v4210
    %v4213 = vor.u32 %v4211, %v4212
    %v4214 = vsub.s32 4294967266, %v4209
    %v4215 = vadd.s32 %v4214, 127
    %v4216 = vshll.u32 %v4215, 23
    %v4217 = vor.u32 4788187, %v4216
    %v4218 = vand.u32 2147483647, %v4217
    %v4220 = vcvt.s32.f32 %v4213
    %v4221 = vmul.f32 %v4220, %v4218
    %v4222 = vxor.u32 %v4221, 2147483648
    %v4223 = vsel %vm4140, %v4222, %v4221
    %v4224 = vsub.s32 4, %v4200
    %v4225 = vsel %vm4140, %v4224, %v4200
    %v4226 = vsel %vm4139, %v3799, %v4223
    %v4227 = vsel %vm4139, 0, %v4225
    %v4228 = vcosq.f32.pop %v4226
    %v4229 = vsinq.f32.pop %v4226
    %vm4230 = vweird.f32 %v3799
    %v4231 = vadd.s32 %v4227, 3
    %v4232 = vand.u32 %v4231, 3
    %vm4233 = vcmp.lt.s32.totalorder %v4232, 2
    %vm4234 = vcmp.eq.s32.totalorder %v4232, 0
    %v4235 = vxor.u32 %v4229, 2147483648
    %v4236 = vsel %vm4234, %v4228, %v4235
    %vm4237 = vcmp.eq.s32.totalorder %v4232, 2
    %v4238 = vxor.u32 %v4228, 2147483648
    %v4239 = vsel %vm4237, %v4238, %v4229
    %v4240 = vsel %vm4233, %v4236, %v4239
    %v4241 = vsel %vm4230, nan, %v4240
    %v4242 = vand.u32 2147483647, %v3804
    %vm4243 = vcmp.le.f32.partialorder %v4242, 0.7853982
    %vm4244 = vcmp.lt.s32.totalorder %v3804, 0
    %v4245 = vand.u32 %v3804, 2139095040
    %v4246 = vshrl.u32 %v4245, 23
    %v4247 = vsub.s32 %v4246, 127
    %v4248 = vand.u32 2147483647, %v3804
    %v4249 = vand.u32 %v4248, 8388607
    %v4250 = vor.u32 %v4249, 8388608
    %v4251 = vsub.s32 0, %v4250
    %v4252 = vadd.s32 %v4247, 1
    %vm4253 = vcmp.gt.s32.totalorder %v4252, 0
    %v4254 = vsel %vm4253, %v4252, 0
    %v4255 = vshrl.u32 %v4254, 5
    %v4256 = vand.u32 %v4254, 31
    %v4257 = vsub.s32 32, %v4256
    %v4258 = vshrl.u32 683565275, %v4257
    %v4259 = vshll.u32 683565275, %v4256
    %v4260 = vshrl.u32 2475754826, %v4257
    %v4261 = vor.u32 %v4259, %v4260
    %v4262 = vshll.u32 2475754826, %v4256
    %v4263 = vshrl.u32 2131351028, %v4257
    %v4264 = vor.u32 %v4262, %v4263
    %v4265 = vshll.u32 2131351028, %v4256
    %v4266 = vshrl.u32 2102212464, %v4257
    %v4267 = vor.u32 %v4265, %v4266
    %v4268 = vshll.u32 2102212464, %v4256
    %v4269 = vshrl.u32 920167782, %v4257
    %v4270 = vor.u32 %v4268, %v4269
    %v4271 = vshll.u32 920167782, %v4256
    %v4272 = vshrl.u32 1326507024, %v4257
    %v4273 = vor.u32 %v4271, %v4272
    %vm4274 = vcmp.lt.s32.totalorder %v4255, 1
    %vm4275 = vcmp.lt.s32.totalorder %v4255, 2
    %vm4276 = vcmp.lt.s32.totalorder %v4255, 3
    %vm4277 = vcmp.lt.s32.totalorder %v4255, 4
    %v4278 = vsel %vm4274, %v4258, %v4261
    %v4279 = vsel %vm4277, %v4267, 2102212464
    %v4280 = vsel %vm4276, %v4264, %v4279
    %v4281 = vsel %vm4275, %v4278, %v4280
    %v4282 = vsel %vm4274, %v4261, %v4264
    %v4283 = vsel %vm4277, %v4270, 920167782
    %v4284 = vsel %vm4276, %v4267, %v4283
    %v4285 = vsel %vm4275, %v4282, %v4284
    %v4286 = vsel %vm4274, %v4264, %v4267
    %v4287 = vsel %vm4277, %v4273, 1326507024
    %v4288 = vsel %vm4276, %v4270, %v4287
    %v4289 = vsel %vm4275, %v4286, %v4288
    %v4290 = vshll.u32 %v4250, 8
    %v4291 = vmul.u32.u64.compose %v4290, %v4289
    %v4292 = vextract.low.u32 %v4291
    %v4293 = vextract.high.u32 %v4291
    %v4294 = vmul.u32.u64.compose %v4290, %v4285
    %v4295 = vextract.low.u32 %v4294
    %v4296 = vextract.high.u32 %v4294
    %v4297 = vmul.u32 %v4290, %v4281
    %v4298 = vadd.s32 %v4293, %v4295
    %vm4299 = vc.u32 %v4293, %v4295
    %v4300 = vadd.s32 %v4296, 1
    %v4301 = vsel %vm4299, %v4300, %v4296
    %v4302 = vadd.s32 %v4297, %v4301
    %v4303 = vadd.s32 %v4302, 536870912
    %v4304 = vshrl.u32 %v4303, 30
    %v4305 = vshll.u32 %v4304, 30
    %v4306 = vsub.s32 %v4302, %v4305
    %vm4307 = vcmp.lt.s32.totalorder %v4306, 0
    %v4308 = vsub.s32 0, %v4306
    %v4309 = vsel %vm4307, %v4308, %v4306
    %v4310 = vclz %v4309
    %v4311 = vsub.s32 %v4310, 2
    %vm4312 = vcmp.gt.s32.totalorder 0, %v4311
    %v4313 = vsel %vm4312, 0, %v4311
    %v4314 = vsub.s32 32, %v4313
    %v4315 = vshll.u32 %v4306, %v4313
    %v4316 = vshrl.u32 %v4298, %v4314
    %v4317 = vor.u32 %v4315, %v4316
    %v4318 = vsub.s32 4294967266, %v4313
    %v4319 = vadd.s32 %v4318, 127
    %v4320 = vshll.u32 %v4319, 23
    %v4321 = vor.u32 4788187, %v4320
    %v4322 = vand.u32 2147483647, %v4321
    %v4324 = vcvt.s32.f32 %v4317
    %v4325 = vmul.f32 %v4324, %v4322
    %v4326 = vxor.u32 %v4325, 2147483648
    %v4327 = vsel %vm4244, %v4326, %v4325
    %v4328 = vsub.s32 4, %v4304
    %v4329 = vsel %vm4244, %v4328, %v4304
    %v4330 = vsel %vm4243, %v3804, %v4327
    %v4331 = vsel %vm4243, 0, %v4329
    %v4332 = vcosq.f32.pop %v4330
    %v4333 = vsinq.f32.pop %v4330
    %vm4334 = vweird.f32 %v3804
    %v4335 = vadd.s32 %v4331, 3
    %v4336 = vand.u32 %v4335, 3
    %vm4337 = vcmp.lt.s32.totalorder %v4336, 2
    %vm4338 = vcmp.eq.s32.totalorder %v4336, 0
    %v4339 = vxor.u32 %v4333, 2147483648
    %v4340 = vsel %vm4338, %v4332, %v4339
    %vm4341 = vcmp.eq.s32.totalorder %v4336, 2
    %v4342 = vxor.u32 %v4332, 2147483648
    %v4343 = vsel %vm4341, %v4342, %v4333
    %v4344 = vsel %vm4337, %v4340, %v4343
    %v4345 = vsel %vm4334, nan, %v4344
    %v4346 = vand.u32 2147483647, %v3807
    %vm4347 = vcmp.le.f32.partialorder %v4346, 0.7853982
    %vm4348 = vcmp.lt.s32.totalorder %v3807, 0
    %v4349 = vand.u32 %v3807, 2139095040
    %v4350 = vshrl.u32 %v4349, 23
    %v4351 = vsub.s32 %v4350, 127
    %v4352 = vand.u32 2147483647, %v3807
    %v4353 = vand.u32 %v4352, 8388607
    %v4354 = vor.u32 %v4353, 8388608
    %v4355 = vsub.s32 0, %v4354
    %v4356 = vadd.s32 %v4351, 1
    %vm4357 = vcmp.gt.s32.totalorder %v4356, 0
    %v4358 = vsel %vm4357, %v4356, 0
    %v4359 = vshrl.u32 %v4358, 5
    %v4360 = vand.u32 %v4358, 31
    %v4361 = vsub.s32 32, %v4360
    %v4362 = vshrl.u32 683565275, %v4361
    %v4363 = vshll.u32 683565275, %v4360
    %v4364 = vshrl.u32 2475754826, %v4361
    %v4365 = vor.u32 %v4363, %v4364
    %v4366 = vshll.u32 2475754826, %v4360
    %v4367 = vshrl.u32 2131351028, %v4361
    %v4368 = vor.u32 %v4366, %v4367
    %v4369 = vshll.u32 2131351028, %v4360
    %v4370 = vshrl.u32 2102212464, %v4361
    %v4371 = vor.u32 %v4369, %v4370
    %v4372 = vshll.u32 2102212464, %v4360
    %v4373 = vshrl.u32 920167782, %v4361
    %v4374 = vor.u32 %v4372, %v4373
    %v4375 = vshll.u32 920167782, %v4360
    %v4376 = vshrl.u32 1326507024, %v4361
    %v4377 = vor.u32 %v4375, %v4376
    %vm4378 = vcmp.lt.s32.totalorder %v4359, 1
    %vm4379 = vcmp.lt.s32.totalorder %v4359, 2
    %vm4380 = vcmp.lt.s32.totalorder %v4359, 3
    %vm4381 = vcmp.lt.s32.totalorder %v4359, 4
    %v4382 = vsel %vm4378, %v4362, %v4365
    %v4383 = vsel %vm4381, %v4371, 2102212464
    %v4384 = vsel %vm4380, %v4368, %v4383
    %v4385 = vsel %vm4379, %v4382, %v4384
    %v4386 = vsel %vm4378, %v4365, %v4368
    %v4387 = vsel %vm4381, %v4374, 920167782
    %v4388 = vsel %vm4380, %v4371, %v4387
    %v4389 = vsel %vm4379, %v4386, %v4388
    %v4390 = vsel %vm4378, %v4368, %v4371
    %v4391 = vsel %vm4381, %v4377, 1326507024
    %v4392 = vsel %vm4380, %v4374, %v4391
    %v4393 = vsel %vm4379, %v4390, %v4392
    %v4394 = vshll.u32 %v4354, 8
    %v4395 = vmul.u32.u64.compose %v4394, %v4393
    %v4396 = vextract.low.u32 %v4395
    %v4397 = vextract.high.u32 %v4395
    %v4398 = vmul.u32.u64.compose %v4394, %v4389
    %v4399 = vextract.low.u32 %v4398
    %v4400 = vextract.high.u32 %v4398
    %v4401 = vmul.u32 %v4394, %v4385
    %v4402 = vadd.s32 %v4397, %v4399
    %vm4403 = vc.u32 %v4397, %v4399
    %v4404 = vadd.s32 %v4400, 1
    %v4405 = vsel %vm4403, %v4404, %v4400
    %v4406 = vadd.s32 %v4401, %v4405
    %v4407 = vadd.s32 %v4406, 536870912
    %v4408 = vshrl.u32 %v4407, 30
    %v4409 = vshll.u32 %v4408, 30
    %v4410 = vsub.s32 %v4406, %v4409
    %vm4411 = vcmp.lt.s32.totalorder %v4410, 0
    %v4412 = vsub.s32 0, %v4410
    %v4413 = vsel %vm4411, %v4412, %v4410
    %v4414 = vclz %v4413
    %v4415 = vsub.s32 %v4414, 2
    %vm4416 = vcmp.gt.s32.totalorder 0, %v4415
    %v4417 = vsel %vm4416, 0, %v4415
    %v4418 = vsub.s32 32, %v4417
    %v4419 = vshll.u32 %v4410, %v4417
    %v4420 = vshrl.u32 %v4402, %v4418
    %v4421 = vor.u32 %v4419, %v4420
    %v4422 = vsub.s32 4294967266, %v4417
    %v4423 = vadd.s32 %v4422, 127
    %v4424 = vshll.u32 %v4423, 23
    %v4425 = vor.u32 4788187, %v4424
    %v4426 = vand.u32 2147483647, %v4425
    %v4428 = vcvt.s32.f32 %v4421
    %v4429 = vmul.f32 %v4428, %v4426
    %v4430 = vxor.u32 %v4429, 2147483648
    %v4431 = vsel %vm4348, %v4430, %v4429
    %v4432 = vsub.s32 4, %v4408
    %v4433 = vsel %vm4348, %v4432, %v4408
    %v4434 = vsel %vm4347, %v3807, %v4431
    %v4435 = vsel %vm4347, 0, %v4433
    %v4436 = vcosq.f32.pop %v4434
    %v4437 = vsinq.f32.pop %v4434
    %vm4438 = vweird.f32 %v3807
    %v4439 = vadd.s32 %v4435, 3
    %v4440 = vand.u32 %v4439, 3
    %vm4441 = vcmp.lt.s32.totalorder %v4440, 2
    %vm4442 = vcmp.eq.s32.totalorder %v4440, 0
    %v4443 = vxor.u32 %v4437, 2147483648
    %v4444 = vsel %vm4442, %v4436, %v4443
    %vm4445 = vcmp.eq.s32.totalorder %v4440, 2
    %v4446 = vxor.u32 %v4436, 2147483648
    %v4447 = vsel %vm4445, %v4446, %v4437
    %v4448 = vsel %vm4441, %v4444, %v4447
    %v4449 = vsel %vm4438, nan, %v4448
    %v4450 = vand.u32 2147483647, %v3812
    %vm4451 = vcmp.le.f32.partialorder %v4450, 0.7853982
    %vm4452 = vcmp.lt.s32.totalorder %v3812, 0
    %v4453 = vand.u32 %v3812, 2139095040
    %v4454 = vshrl.u32 %v4453, 23
    %v4455 = vsub.s32 %v4454, 127
    %v4456 = vand.u32 2147483647, %v3812
    %v4457 = vand.u32 %v4456, 8388607
    %v4458 = vor.u32 %v4457, 8388608
    %v4459 = vsub.s32 0, %v4458
    %v4460 = vadd.s32 %v4455, 1
    %vm4461 = vcmp.gt.s32.totalorder %v4460, 0
    %v4462 = vsel %vm4461, %v4460, 0
    %v4463 = vshrl.u32 %v4462, 5
    %v4464 = vand.u32 %v4462, 31
    %v4465 = vsub.s32 32, %v4464
    %v4466 = vshrl.u32 683565275, %v4465
    %v4467 = vshll.u32 683565275, %v4464
    %v4468 = vshrl.u32 2475754826, %v4465
    %v4469 = vor.u32 %v4467, %v4468
    %v4470 = vshll.u32 2475754826, %v4464
    %v4471 = vshrl.u32 2131351028, %v4465
    %v4472 = vor.u32 %v4470, %v4471
    %v4473 = vshll.u32 2131351028, %v4464
    %v4474 = vshrl.u32 2102212464, %v4465
    %v4475 = vor.u32 %v4473, %v4474
    %v4476 = vshll.u32 2102212464, %v4464
    %v4477 = vshrl.u32 920167782, %v4465
    %v4478 = vor.u32 %v4476, %v4477
    %v4479 = vshll.u32 920167782, %v4464
    %v4480 = vshrl.u32 1326507024, %v4465
    %v4481 = vor.u32 %v4479, %v4480
    %vm4482 = vcmp.lt.s32.totalorder %v4463, 1
    %vm4483 = vcmp.lt.s32.totalorder %v4463, 2
    %vm4484 = vcmp.lt.s32.totalorder %v4463, 3
    %vm4485 = vcmp.lt.s32.totalorder %v4463, 4
    %v4486 = vsel %vm4482, %v4466, %v4469
    %v4487 = vsel %vm4485, %v4475, 2102212464
    %v4488 = vsel %vm4484, %v4472, %v4487
    %v4489 = vsel %vm4483, %v4486, %v4488
    %v4490 = vsel %vm4482, %v4469, %v4472
    %v4491 = vsel %vm4485, %v4478, 920167782
    %v4492 = vsel %vm4484, %v4475, %v4491
    %v4493 = vsel %vm4483, %v4490, %v4492
    %v4494 = vsel %vm4482, %v4472, %v4475
    %v4495 = vsel %vm4485, %v4481, 1326507024
    %v4496 = vsel %vm4484, %v4478, %v4495
    %v4497 = vsel %vm4483, %v4494, %v4496
    %v4498 = vshll.u32 %v4458, 8
    %v4499 = vmul.u32.u64.compose %v4498, %v4497
    %v4500 = vextract.low.u32 %v4499
    %v4501 = vextract.high.u32 %v4499
    %v4502 = vmul.u32.u64.compose %v4498, %v4493
    %v4503 = vextract.low.u32 %v4502
    %v4504 = vextract.high.u32 %v4502
    %v4505 = vmul.u32 %v4498, %v4489
    %v4506 = vadd.s32 %v4501, %v4503
    %vm4507 = vc.u32 %v4501, %v4503
    %v4508 = vadd.s32 %v4504, 1
    %v4509 = vsel %vm4507, %v4508, %v4504
    %v4510 = vadd.s32 %v4505, %v4509
    %v4511 = vadd.s32 %v4510, 536870912
    %v4512 = vshrl.u32 %v4511, 30
    %v4513 = vshll.u32 %v4512, 30
    %v4514 = vsub.s32 %v4510, %v4513
    %vm4515 = vcmp.lt.s32.totalorder %v4514, 0
    %v4516 = vsub.s32 0, %v4514
    %v4517 = vsel %vm4515, %v4516, %v4514
    %v4518 = vclz %v4517
    %v4519 = vsub.s32 %v4518, 2
    %vm4520 = vcmp.gt.s32.totalorder 0, %v4519
    %v4521 = vsel %vm4520, 0, %v4519
    %v4522 = vsub.s32 32, %v4521
    %v4523 = vshll.u32 %v4514, %v4521
    %v4524 = vshrl.u32 %v4506, %v4522
    %v4525 = vor.u32 %v4523, %v4524
    %v4526 = vsub.s32 4294967266, %v4521
    %v4527 = vadd.s32 %v4526, 127
    %v4528 = vshll.u32 %v4527, 23
    %v4529 = vor.u32 4788187, %v4528
    %v4530 = vand.u32 2147483647, %v4529
    %v4532 = vcvt.s32.f32 %v4525
    %v4533 = vmul.f32 %v4532, %v4530
    %v4534 = vxor.u32 %v4533, 2147483648
    %v4535 = vsel %vm4452, %v4534, %v4533
    %v4536 = vsub.s32 4, %v4512
    %v4537 = vsel %vm4452, %v4536, %v4512
    %v4538 = vsel %vm4451, %v3812, %v4535
    %v4539 = vsel %vm4451, 0, %v4537
    %v4540 = vcosq.f32.pop %v4538
    %v4541 = vsinq.f32.pop %v4538
    %vm4542 = vweird.f32 %v3812
    %v4543 = vadd.s32 %v4539, 3
    %v4544 = vand.u32 %v4543, 3
    %vm4545 = vcmp.lt.s32.totalorder %v4544, 2
    %vm4546 = vcmp.eq.s32.totalorder %v4544, 0
    %v4547 = vxor.u32 %v4541, 2147483648
    %v4548 = vsel %vm4546, %v4540, %v4547
    %vm4549 = vcmp.eq.s32.totalorder %v4544, 2
    %v4550 = vxor.u32 %v4540, 2147483648
    %v4551 = vsel %vm4549, %v4550, %v4541
    %v4552 = vsel %vm4545, %v4548, %v4551
    %v4553 = vsel %vm4542, nan, %v4552
    %v4554 = vand.u32 2147483647, %v3815
    %vm4555 = vcmp.le.f32.partialorder %v4554, 0.7853982
    %vm4556 = vcmp.lt.s32.totalorder %v3815, 0
    %v4557 = vand.u32 %v3815, 2139095040
    %v4558 = vshrl.u32 %v4557, 23
    %v4559 = vsub.s32 %v4558, 127
    %v4560 = vand.u32 2147483647, %v3815
    %v4561 = vand.u32 %v4560, 8388607
    %v4562 = vor.u32 %v4561, 8388608
    %v4563 = vsub.s32 0, %v4562
    %v4564 = vadd.s32 %v4559, 1
    %vm4565 = vcmp.gt.s32.totalorder %v4564, 0
    %v4566 = vsel %vm4565, %v4564, 0
    %v4567 = vshrl.u32 %v4566, 5
    %v4568 = vand.u32 %v4566, 31
    %v4569 = vsub.s32 32, %v4568
    %v4570 = vshrl.u32 683565275, %v4569
    %v4571 = vshll.u32 683565275, %v4568
    %v4572 = vshrl.u32 2475754826, %v4569
    %v4573 = vor.u32 %v4571, %v4572
    %v4574 = vshll.u32 2475754826, %v4568
    %v4575 = vshrl.u32 2131351028, %v4569
    %v4576 = vor.u32 %v4574, %v4575
    %v4577 = vshll.u32 2131351028, %v4568
    %v4578 = vshrl.u32 2102212464, %v4569
    %v4579 = vor.u32 %v4577, %v4578
    %v4580 = vshll.u32 2102212464, %v4568
    %v4581 = vshrl.u32 920167782, %v4569
    %v4582 = vor.u32 %v4580, %v4581
    %v4583 = vshll.u32 920167782, %v4568
    %v4584 = vshrl.u32 1326507024, %v4569
    %v4585 = vor.u32 %v4583, %v4584
    %vm4586 = vcmp.lt.s32.totalorder %v4567, 1
    %vm4587 = vcmp.lt.s32.totalorder %v4567, 2
    %vm4588 = vcmp.lt.s32.totalorder %v4567, 3
    %vm4589 = vcmp.lt.s32.totalorder %v4567, 4
    %v4590 = vsel %vm4586, %v4570, %v4573
    %v4591 = vsel %vm4589, %v4579, 2102212464
    %v4592 = vsel %vm4588, %v4576, %v4591
    %v4593 = vsel %vm4587, %v4590, %v4592
    %v4594 = vsel %vm4586, %v4573, %v4576
    %v4595 = vsel %vm4589, %v4582, 920167782
    %v4596 = vsel %vm4588, %v4579, %v4595
    %v4597 = vsel %vm4587, %v4594, %v4596
    %v4598 = vsel %vm4586, %v4576, %v4579
    %v4599 = vsel %vm4589, %v4585, 1326507024
    %v4600 = vsel %vm4588, %v4582, %v4599
    %v4601 = vsel %vm4587, %v4598, %v4600
    %v4602 = vshll.u32 %v4562, 8
    %v4603 = vmul.u32.u64.compose %v4602, %v4601
    %v4604 = vextract.low.u32 %v4603
    %v4605 = vextract.high.u32 %v4603
    %v4606 = vmul.u32.u64.compose %v4602, %v4597
    %v4607 = vextract.low.u32 %v4606
    %v4608 = vextract.high.u32 %v4606
    %v4609 = vmul.u32 %v4602, %v4593
    %v4610 = vadd.s32 %v4605, %v4607
    %vm4611 = vc.u32 %v4605, %v4607
    %v4612 = vadd.s32 %v4608, 1
    %v4613 = vsel %vm4611, %v4612, %v4608
    %v4614 = vadd.s32 %v4609, %v4613
    %v4615 = vadd.s32 %v4614, 536870912
    %v4616 = vshrl.u32 %v4615, 30
    %v4617 = vshll.u32 %v4616, 30
    %v4618 = vsub.s32 %v4614, %v4617
    %vm4619 = vcmp.lt.s32.totalorder %v4618, 0
    %v4620 = vsub.s32 0, %v4618
    %v4621 = vsel %vm4619, %v4620, %v4618
    %v4622 = vclz %v4621
    %v4623 = vsub.s32 %v4622, 2
    %vm4624 = vcmp.gt.s32.totalorder 0, %v4623
    %v4625 = vsel %vm4624, 0, %v4623
    %v4626 = vsub.s32 32, %v4625
    %v4627 = vshll.u32 %v4618, %v4625
    %v4628 = vshrl.u32 %v4610, %v4626
    %v4629 = vor.u32 %v4627, %v4628
    %v4630 = vsub.s32 4294967266, %v4625
    %v4631 = vadd.s32 %v4630, 127
    %v4632 = vshll.u32 %v4631, 23
    %v4633 = vor.u32 4788187, %v4632
    %v4634 = vand.u32 2147483647, %v4633
    %v4636 = vcvt.s32.f32 %v4629
    %v4637 = vmul.f32 %v4636, %v4634
    %v4638 = vxor.u32 %v4637, 2147483648
    %v4639 = vsel %vm4556, %v4638, %v4637
    %v4640 = vsub.s32 4, %v4616
    %v4641 = vsel %vm4556, %v4640, %v4616
    %v4642 = vsel %vm4555, %v3815, %v4639
    %v4643 = vsel %vm4555, 0, %v4641
    %v4644 = vcosq.f32.pop %v4642
    %v4645 = vsinq.f32.pop %v4642
    %vm4646 = vweird.f32 %v3815
    %v4647 = vadd.s32 %v4643, 3
    %v4648 = vand.u32 %v4647, 3
    %vm4649 = vcmp.lt.s32.totalorder %v4648, 2
    %vm4650 = vcmp.eq.s32.totalorder %v4648, 0
    %v4651 = vxor.u32 %v4645, 2147483648
    %v4652 = vsel %vm4650, %v4644, %v4651
    %vm4653 = vcmp.eq.s32.totalorder %v4648, 2
    %v4654 = vxor.u32 %v4644, 2147483648
    %v4655 = vsel %vm4653, %v4654, %v4645
    %v4656 = vsel %vm4649, %v4652, %v4655
    %v4657 = vsel %vm4646, nan, %v4656
    %v4658 = vand.u32 2147483647, %v3820
    %vm4659 = vcmp.le.f32.partialorder %v4658, 0.7853982
    %vm4660 = vcmp.lt.s32.totalorder %v3820, 0
    %v4661 = vand.u32 %v3820, 2139095040
    %v4662 = vshrl.u32 %v4661, 23
    %v4663 = vsub.s32 %v4662, 127
    %v4664 = vand.u32 2147483647, %v3820
    %v4665 = vand.u32 %v4664, 8388607
    %v4666 = vor.u32 %v4665, 8388608
    %v4667 = vsub.s32 0, %v4666
    %v4668 = vadd.s32 %v4663, 1
    %vm4669 = vcmp.gt.s32.totalorder %v4668, 0
    %v4670 = vsel %vm4669, %v4668, 0
    %v4671 = vshrl.u32 %v4670, 5
    %v4672 = vand.u32 %v4670, 31
    %v4673 = vsub.s32 32, %v4672
    %v4674 = vshrl.u32 683565275, %v4673
    %v4675 = vshll.u32 683565275, %v4672
    %v4676 = vshrl.u32 2475754826, %v4673
    %v4677 = vor.u32 %v4675, %v4676
    %v4678 = vshll.u32 2475754826, %v4672
    %v4679 = vshrl.u32 2131351028, %v4673
    %v4680 = vor.u32 %v4678, %v4679
    %v4681 = vshll.u32 2131351028, %v4672
    %v4682 = vshrl.u32 2102212464, %v4673
    %v4683 = vor.u32 %v4681, %v4682
    %v4684 = vshll.u32 2102212464, %v4672
    %v4685 = vshrl.u32 920167782, %v4673
    %v4686 = vor.u32 %v4684, %v4685
    %v4687 = vshll.u32 920167782, %v4672
    %v4688 = vshrl.u32 1326507024, %v4673
    %v4689 = vor.u32 %v4687, %v4688
    %vm4690 = vcmp.lt.s32.totalorder %v4671, 1
    %vm4691 = vcmp.lt.s32.totalorder %v4671, 2
    %vm4692 = vcmp.lt.s32.totalorder %v4671, 3
    %vm4693 = vcmp.lt.s32.totalorder %v4671, 4
    %v4694 = vsel %vm4690, %v4674, %v4677
    %v4695 = vsel %vm4693, %v4683, 2102212464
    %v4696 = vsel %vm4692, %v4680, %v4695
    %v4697 = vsel %vm4691, %v4694, %v4696
    %v4698 = vsel %vm4690, %v4677, %v4680
    %v4699 = vsel %vm4693, %v4686, 920167782
    %v4700 = vsel %vm4692, %v4683, %v4699
    %v4701 = vsel %vm4691, %v4698, %v4700
    %v4702 = vsel %vm4690, %v4680, %v4683
    %v4703 = vsel %vm4693, %v4689, 1326507024
    %v4704 = vsel %vm4692, %v4686, %v4703
    %v4705 = vsel %vm4691, %v4702, %v4704
    %v4706 = vshll.u32 %v4666, 8
    %v4707 = vmul.u32.u64.compose %v4706, %v4705
    %v4708 = vextract.low.u32 %v4707
    %v4709 = vextract.high.u32 %v4707
    %v4710 = vmul.u32.u64.compose %v4706, %v4701
    %v4711 = vextract.low.u32 %v4710
    %v4712 = vextract.high.u32 %v4710
    %v4713 = vmul.u32 %v4706, %v4697
    %v4714 = vadd.s32 %v4709, %v4711
    %vm4715 = vc.u32 %v4709, %v4711
    %v4716 = vadd.s32 %v4712, 1
    %v4717 = vsel %vm4715, %v4716, %v4712
    %v4718 = vadd.s32 %v4713, %v4717
    %v4719 = vadd.s32 %v4718, 536870912
    %v4720 = vshrl.u32 %v4719, 30
    %v4721 = vshll.u32 %v4720, 30
    %v4722 = vsub.s32 %v4718, %v4721
    %vm4723 = vcmp.lt.s32.totalorder %v4722, 0
    %v4724 = vsub.s32 0, %v4722
    %v4725 = vsel %vm4723, %v4724, %v4722
    %v4726 = vclz %v4725
    %v4727 = vsub.s32 %v4726, 2
    %vm4728 = vcmp.gt.s32.totalorder 0, %v4727
    %v4729 = vsel %vm4728, 0, %v4727
    %v4730 = vsub.s32 32, %v4729
    %v4731 = vshll.u32 %v4722, %v4729
    %v4732 = vshrl.u32 %v4714, %v4730
    %v4733 = vor.u32 %v4731, %v4732
    %v4734 = vsub.s32 4294967266, %v4729
    %v4735 = vadd.s32 %v4734, 127
    %v4736 = vshll.u32 %v4735, 23
    %v4737 = vor.u32 4788187, %v4736
    %v4738 = vand.u32 2147483647, %v4737
    %v4740 = vcvt.s32.f32 %v4733
    %v4741 = vmul.f32 %v4740, %v4738
    %v4742 = vxor.u32 %v4741, 2147483648
    %v4743 = vsel %vm4660, %v4742, %v4741
    %v4744 = vsub.s32 4, %v4720
    %v4745 = vsel %vm4660, %v4744, %v4720
    %v4746 = vsel %vm4659, %v3820, %v4743
    %v4747 = vsel %vm4659, 0, %v4745
    %v4748 = vcosq.f32.pop %v4746
    %v4749 = vsinq.f32.pop %v4746
    %vm4750 = vweird.f32 %v3820
    %v4751 = vadd.s32 %v4747, 3
    %v4752 = vand.u32 %v4751, 3
    %vm4753 = vcmp.lt.s32.totalorder %v4752, 2
    %vm4754 = vcmp.eq.s32.totalorder %v4752, 0
    %v4755 = vxor.u32 %v4749, 2147483648
    %v4756 = vsel %vm4754, %v4748, %v4755
    %vm4757 = vcmp.eq.s32.totalorder %v4752, 2
    %v4758 = vxor.u32 %v4748, 2147483648
    %v4759 = vsel %vm4757, %v4758, %v4749
    %v4760 = vsel %vm4753, %v4756, %v4759
    %v4761 = vsel %vm4750, nan, %v4760
    %v4762 = vand.u32 2147483647, %v3823
    %vm4763 = vcmp.le.f32.partialorder %v4762, 0.7853982
    %vm4764 = vcmp.lt.s32.totalorder %v3823, 0
    %v4765 = vand.u32 %v3823, 2139095040
    %v4766 = vshrl.u32 %v4765, 23
    %v4767 = vsub.s32 %v4766, 127
    %v4768 = vand.u32 2147483647, %v3823
    %v4769 = vand.u32 %v4768, 8388607
    %v4770 = vor.u32 %v4769, 8388608
    %v4771 = vsub.s32 0, %v4770
    %v4772 = vadd.s32 %v4767, 1
    %vm4773 = vcmp.gt.s32.totalorder %v4772, 0
    %v4774 = vsel %vm4773, %v4772, 0
    %v4775 = vshrl.u32 %v4774, 5
    %v4776 = vand.u32 %v4774, 31
    %v4777 = vsub.s32 32, %v4776
    %v4778 = vshrl.u32 683565275, %v4777
    %v4779 = vshll.u32 683565275, %v4776
    %v4780 = vshrl.u32 2475754826, %v4777
    %v4781 = vor.u32 %v4779, %v4780
    %v4782 = vshll.u32 2475754826, %v4776
    %v4783 = vshrl.u32 2131351028, %v4777
    %v4784 = vor.u32 %v4782, %v4783
    %v4785 = vshll.u32 2131351028, %v4776
    %v4786 = vshrl.u32 2102212464, %v4777
    %v4787 = vor.u32 %v4785, %v4786
    %v4788 = vshll.u32 2102212464, %v4776
    %v4789 = vshrl.u32 920167782, %v4777
    %v4790 = vor.u32 %v4788, %v4789
    %v4791 = vshll.u32 920167782, %v4776
    %v4792 = vshrl.u32 1326507024, %v4777
    %v4793 = vor.u32 %v4791, %v4792
    %vm4794 = vcmp.lt.s32.totalorder %v4775, 1
    %vm4795 = vcmp.lt.s32.totalorder %v4775, 2
    %vm4796 = vcmp.lt.s32.totalorder %v4775, 3
    %vm4797 = vcmp.lt.s32.totalorder %v4775, 4
    %v4798 = vsel %vm4794, %v4778, %v4781
    %v4799 = vsel %vm4797, %v4787, 2102212464
    %v4800 = vsel %vm4796, %v4784, %v4799
    %v4801 = vsel %vm4795, %v4798, %v4800
    %v4802 = vsel %vm4794, %v4781, %v4784
    %v4803 = vsel %vm4797, %v4790, 920167782
    %v4804 = vsel %vm4796, %v4787, %v4803
    %v4805 = vsel %vm4795, %v4802, %v4804
    %v4806 = vsel %vm4794, %v4784, %v4787
    %v4807 = vsel %vm4797, %v4793, 1326507024
    %v4808 = vsel %vm4796, %v4790, %v4807
    %v4809 = vsel %vm4795, %v4806, %v4808
    %v4810 = vshll.u32 %v4770, 8
    %v4811 = vmul.u32.u64.compose %v4810, %v4809
    %v4812 = vextract.low.u32 %v4811
    %v4813 = vextract.high.u32 %v4811
    %v4814 = vmul.u32.u64.compose %v4810, %v4805
    %v4815 = vextract.low.u32 %v4814
    %v4816 = vextract.high.u32 %v4814
    %v4817 = vmul.u32 %v4810, %v4801
    %v4818 = vadd.s32 %v4813, %v4815
    %vm4819 = vc.u32 %v4813, %v4815
    %v4820 = vadd.s32 %v4816, 1
    %v4821 = vsel %vm4819, %v4820, %v4816
    %v4822 = vadd.s32 %v4817, %v4821
    %v4823 = vadd.s32 %v4822, 536870912
    %v4824 = vshrl.u32 %v4823, 30
    %v4825 = vshll.u32 %v4824, 30
    %v4826 = vsub.s32 %v4822, %v4825
    %vm4827 = vcmp.lt.s32.totalorder %v4826, 0
    %v4828 = vsub.s32 0, %v4826
    %v4829 = vsel %vm4827, %v4828, %v4826
    %v4830 = vclz %v4829
    %v4831 = vsub.s32 %v4830, 2
    %vm4832 = vcmp.gt.s32.totalorder 0, %v4831
    %v4833 = vsel %vm4832, 0, %v4831
    %v4834 = vsub.s32 32, %v4833
    %v4835 = vshll.u32 %v4826, %v4833
    %v4836 = vshrl.u32 %v4818, %v4834
    %v4837 = vor.u32 %v4835, %v4836
    %v4838 = vsub.s32 4294967266, %v4833
    %v4839 = vadd.s32 %v4838, 127
    %v4840 = vshll.u32 %v4839, 23
    %v4841 = vor.u32 4788187, %v4840
    %v4842 = vand.u32 2147483647, %v4841
    %v4844 = vcvt.s32.f32 %v4837
    %v4845 = vmul.f32 %v4844, %v4842
    %v4846 = vxor.u32 %v4845, 2147483648
    %v4847 = vsel %vm4764, %v4846, %v4845
    %v4848 = vsub.s32 4, %v4824
    %v4849 = vsel %vm4764, %v4848, %v4824
    %v4850 = vsel %vm4763, %v3823, %v4847
    %v4851 = vsel %vm4763, 0, %v4849
    %v4852 = vcosq.f32.pop %v4850
    %v4853 = vsinq.f32.pop %v4850
    %vm4854 = vweird.f32 %v3823
    %v4855 = vadd.s32 %v4851, 3
    %v4856 = vand.u32 %v4855, 3
    %vm4857 = vcmp.lt.s32.totalorder %v4856, 2
    %vm4858 = vcmp.eq.s32.totalorder %v4856, 0
    %v4859 = vxor.u32 %v4853, 2147483648
    %v4860 = vsel %vm4858, %v4852, %v4859
    %vm4861 = vcmp.eq.s32.totalorder %v4856, 2
    %v4862 = vxor.u32 %v4852, 2147483648
    %v4863 = vsel %vm4861, %v4862, %v4853
    %v4864 = vsel %vm4857, %v4860, %v4863
    %v4865 = vsel %vm4854, nan, %v4864
    %s4866 = scalar_lea.vmem [#allocation3], 192
    %v4867 = vld [vmem:[%s4866] sm:$0xf]
    %v4868 = vld [vmem:[%s4866 + $0x4] sm:$0xf]
    %v4869 = vld [vmem:[%s4866 + $0x8] sm:$0xf]
    %v4870 = vld [vmem:[%s4866 + $0xc] sm:$0xf]
    %v4871 = vld [vmem:[%s4866 + $0x10] sm:$0xf]
    %v4872 = vld [vmem:[%s4866 + $0x14] sm:$0xf]
    %v4873 = vld [vmem:[%s4866 + $0x18] sm:$0xf]
    %v4874 = vld [vmem:[%s4866 + $0x1c] sm:$0xf]
    %v4875 = vld [vmem:[%s4866 + $0x20] sm:$0xf]
    %v4876 = vld [vmem:[%s4866 + $0x24] sm:$0xf]
    %v4877 = vld [vmem:[%s4866 + $0x28] sm:$0xf]
    %v4878 = vld [vmem:[%s4866 + $0x2c] sm:$0xf]
    %v4879 = vld [vmem:[%s4866 + $0x30] sm:$0xf]
    %v4880 = vld [vmem:[%s4866 + $0x34] sm:$0xf]
    %v4881 = vld [vmem:[%s4866 + $0x38] sm:$0xf]
    %v4882 = vld [vmem:[%s4866 + $0x3c] sm:$0xf]
    %s4883 = scalar_lea.vmem %s4, 3
    %v4884 = vld [vmem:[%s4883] sm:$0x1]
    %v4885 = vpack.c.bf16 %v4033, %v3929
    %v4886 = vpack.c.bf16 %v4241, %v4137
    %v4887 = vpack.c.bf16 %v4449, %v4345
    %v4888 = vpack.c.bf16 %v4657, %v4553
    %v4889 = vpack.c.bf16 %v4865, %v4761
    %v4891 = vlaneseq
    %v4892 = vshrl.u32 %v4891, 7
    %v4893 = vsub.s32 0, %v4892
    %v4894 = vrot.slane %v4884, %v4893
    %v4912 = vunpack.c.l.b16 %v4867
    %v4913 = vunpack.c.l.b16 %v4868
    %v4914 = vunpack.c.l.b16 %v4869
    %v4915 = vunpack.c.l.b16 %v4870
    %v4916 = vunpack.c.l.b16 %v4871
    %v4917 = vunpack.c.l.b16 %v4872
    %v4918 = vunpack.c.l.b16 %v4873
    %v4919 = vunpack.c.l.b16 %v4874
    %v4920 = vunpack.c.l.b16 %v4875
    %v4921 = vunpack.c.l.b16 %v4876
    %v4922 = vunpack.c.l.b16 %v4877
    %v4923 = vunpack.c.l.b16 %v4878
    %v4924 = vunpack.c.l.b16 %v4879
    %v4925 = vunpack.c.l.b16 %v4880
    %v4926 = vunpack.c.l.b16 %v4881
    %v4927 = vunpack.c.l.b16 %v4882
    %v4928 = vpack.c.b16 %v4913, %v4912
    %v4929 = vpack.c.b16 %v4915, %v4914
    %v4930 = vpack.c.b16 %v4917, %v4916
    %v4931 = vpack.c.b16 %v4919, %v4918
    %v4932 = vpack.c.b16 %v4921, %v4920
    %v4933 = vpack.c.b16 %v4923, %v4922
    %v4934 = vpack.c.b16 %v4925, %v4924
    %v4935 = vpack.c.b16 %v4927, %v4926
    %4944 = vmatprep.subr.bf16.mxu0 0
    %4945 = vmatpush1.bf16.msra.mxu0 %v4928
    %4946 = vmatprep.subr.bf16.mxu0 0
    %4947 = vmatpush1.bf16.msra.mxu0 %v4929
    %4948 = vmatprep.subr.bf16.mxu0 0
    %4949 = vmatpush1.bf16.msra.mxu0 %v4930
    %4950 = vmatprep.subr.bf16.mxu0 0
    %4951 = vmatpush1.bf16.msra.mxu0 %v4931
    %4952 = vmatprep.subr.bf16.mxu0 0
    %4953 = vmatpush1.bf16.msra.mxu0 %v4932
    %4954 = vmatprep.subr.bf16.mxu0 0
    %4955 = vmatpush1.bf16.msra.mxu0 %v4933
    %4956 = vmatprep.subr.bf16.mxu0 0
    %4957 = vmatpush1.bf16.msra.mxu0 %v4934
    %4958 = vmatprep.subr.bf16.mxu0 0
    %4959 = vmatpush1.bf16.msra.mxu0 %v4935
    %4960 = vmatprep.subr.bf16.mxu0 0
    %4961 = vmatpush1.bf16.msra.mxu0 0
    %4962 = vmatprep.subr.bf16.mxu0 0
    %4963 = vmatpush1.bf16.msra.mxu0 0
    %4964 = vmatprep.subr.bf16.mxu0 0
    %4965 = vmatpush1.bf16.msra.mxu0 0
    %4966 = vmatprep.subr.bf16.mxu0 0
    %4967 = vmatpush1.bf16.msra.mxu0 0
    %4968 = vmatprep.subr.bf16.mxu0 0
    %4969 = vmatpush1.bf16.msra.mxu0 0
    %4970 = vmatprep.subr.bf16.mxu0 0
    %4971 = vmatpush1.bf16.msra.mxu0 0
    %4972 = vmatprep.subr.bf16.mxu0 0
    %4973 = vmatpush1.bf16.msra.mxu0 0
    %4974 = vmatprep.subr.bf16.mxu0 0
    %4975 = vmatpush1.bf16.msra.mxu0 0
    %4976 = vmatprep.mubr.bf16.mxu0 0
    %4977 = vmatmul.mubr.bf16.gmra.mrb[0].mxu0 %v4885
    %v4978 = vpop.f32.mrb[0].mxu0
    %v4979 = vadd.f32 %v4894, %v4978
    %v4980 = vpop.f32.mrb[0].mxu0
    %v4981 = vpop.f32.mrb[0].mxu0
    %v4982 = vadd.f32 %v4894, %v4981
    %v4983 = vpop.f32.mrb[0].mxu0
    %4984 = vmatprep.mubr.bf16.mxu0 0
    %4985 = vmatmul.mubr.bf16.gmra.mrb[0].mxu0 %v4886
    %v4986 = vpop.f32.mrb[0].mxu0
    %v4987 = vadd.f32 %v4894, %v4986
    %v4988 = vpop.f32.mrb[0].mxu0
    %v4989 = vpop.f32.mrb[0].mxu0
    %v4990 = vadd.f32 %v4894, %v4989
    %v4991 = vpop.f32.mrb[0].mxu0
    %4992 = vmatprep.mubr.bf16.mxu0 0
    %4993 = vmatmul.mubr.bf16.gmra.mrb[0].mxu0 %v4887
    %v4994 = vpop.f32.mrb[0].mxu0
    %v4995 = vadd.f32 %v4894, %v4994
    %v4996 = vpop.f32.mrb[0].mxu0
    %v4997 = vpop.f32.mrb[0].mxu0
    %v4998 = vadd.f32 %v4894, %v4997
    %v4999 = vpop.f32.mrb[0].mxu0
    %5000 = vmatprep.mubr.bf16.mxu0 0
    %5001 = vmatmul.mubr.bf16.gmra.mrb[0].mxu0 %v4888
    %v5002 = vpop.f32.mrb[0].mxu0
    %v5003 = vadd.f32 %v4894, %v5002
    %v5004 = vpop.f32.mrb[0].mxu0
    %v5005 = vpop.f32.mrb[0].mxu0
    %v5006 = vadd.f32 %v4894, %v5005
    %v5007 = vpop.f32.mrb[0].mxu0
    %5008 = vmatprep.mubr.bf16.mxu0 0
    %5009 = vmatmul.mubr.bf16.gmra.mrb[0].mxu0 %v4889
    %v5010 = vpop.f32.mrb[0].mxu0
    %v5011 = vadd.f32 %v4894, %v5010
    %v5012 = vpop.f32.mrb[0].mxu0
    %v5013 = vpop.f32.mrb[0].mxu0
    %v5014 = vadd.f32 %v4894, %v5013
    %v5015 = vpop.f32.mrb[0].mxu0
    %5016 = vdwg.mxu0
    %v5017 = vand.u32 2147483647, %v4979
    %vm5018 = vcmp.le.f32.partialorder %v5017, 0.7853982
    %vm5019 = vcmp.lt.s32.totalorder %v4979, 0
    %v5020 = vand.u32 %v4979, 2139095040
    %v5021 = vshrl.u32 %v5020, 23
    %v5022 = vsub.s32 %v5021, 127
    %v5023 = vand.u32 2147483647, %v4979
    %v5024 = vand.u32 %v5023, 8388607
    %v5025 = vor.u32 %v5024, 8388608
    %v5026 = vsub.s32 0, %v5025
    %v5027 = vadd.s32 %v5022, 1
    %vm5028 = vcmp.gt.s32.totalorder %v5027, 0
    %v5029 = vsel %vm5028, %v5027, 0
    %v5030 = vshrl.u32 %v5029, 5
    %v5031 = vand.u32 %v5029, 31
    %v5032 = vsub.s32 32, %v5031
    %v5033 = vshrl.u32 683565275, %v5032
    %v5034 = vshll.u32 683565275, %v5031
    %v5035 = vshrl.u32 2475754826, %v5032
    %v5036 = vor.u32 %v5034, %v5035
    %v5037 = vshll.u32 2475754826, %v5031
    %v5038 = vshrl.u32 2131351028, %v5032
    %v5039 = vor.u32 %v5037, %v5038
    %v5040 = vshll.u32 2131351028, %v5031
    %v5041 = vshrl.u32 2102212464, %v5032
    %v5042 = vor.u32 %v5040, %v5041
    %v5043 = vshll.u32 2102212464, %v5031
    %v5044 = vshrl.u32 920167782, %v5032
    %v5045 = vor.u32 %v5043, %v5044
    %v5046 = vshll.u32 920167782, %v5031
    %v5047 = vshrl.u32 1326507024, %v5032
    %v5048 = vor.u32 %v5046, %v5047
    %vm5049 = vcmp.lt.s32.totalorder %v5030, 1
    %vm5050 = vcmp.lt.s32.totalorder %v5030, 2
    %vm5051 = vcmp.lt.s32.totalorder %v5030, 3
    %vm5052 = vcmp.lt.s32.totalorder %v5030, 4
    %v5053 = vsel %vm5049, %v5033, %v5036
    %v5054 = vsel %vm5052, %v5042, 2102212464
    %v5055 = vsel %vm5051, %v5039, %v5054
    %v5056 = vsel %vm5050, %v5053, %v5055
    %v5057 = vsel %vm5049, %v5036, %v5039
    %v5058 = vsel %vm5052, %v5045, 920167782
    %v5059 = vsel %vm5051, %v5042, %v5058
    %v5060 = vsel %vm5050, %v5057, %v5059
    %v5061 = vsel %vm5049, %v5039, %v5042
    %v5062 = vsel %vm5052, %v5048, 1326507024
    %v5063 = vsel %vm5051, %v5045, %v5062
    %v5064 = vsel %vm5050, %v5061, %v5063
    %v5065 = vshll.u32 %v5025, 8
    %v5066 = vmul.u32.u64.compose %v5065, %v5064
    %v5067 = vextract.low.u32 %v5066
    %v5068 = vextract.high.u32 %v5066
    %v5069 = vmul.u32.u64.compose %v5065, %v5060
    %v5070 = vextract.low.u32 %v5069
    %v5071 = vextract.high.u32 %v5069
    %v5072 = vmul.u32 %v5065, %v5056
    %v5073 = vadd.s32 %v5068, %v5070
    %vm5074 = vc.u32 %v5068, %v5070
    %v5075 = vadd.s32 %v5071, 1
    %v5076 = vsel %vm5074, %v5075, %v5071
    %v5077 = vadd.s32 %v5072, %v5076
    %v5078 = vadd.s32 %v5077, 536870912
    %v5079 = vshrl.u32 %v5078, 30
    %v5080 = vshll.u32 %v5079, 30
    %v5081 = vsub.s32 %v5077, %v5080
    %vm5082 = vcmp.lt.s32.totalorder %v5081, 0
    %v5083 = vsub.s32 0, %v5081
    %v5084 = vsel %vm5082, %v5083, %v5081
    %v5085 = vclz %v5084
    %v5086 = vsub.s32 %v5085, 2
    %vm5087 = vcmp.gt.s32.totalorder 0, %v5086
    %v5088 = vsel %vm5087, 0, %v5086
    %v5089 = vsub.s32 32, %v5088
    %v5090 = vshll.u32 %v5081, %v5088
    %v5091 = vshrl.u32 %v5073, %v5089
    %v5092 = vor.u32 %v5090, %v5091
    %v5093 = vsub.s32 4294967266, %v5088
    %v5094 = vadd.s32 %v5093, 127
    %v5095 = vshll.u32 %v5094, 23
    %v5096 = vor.u32 4788187, %v5095
    %v5097 = vand.u32 2147483647, %v5096
    %v5099 = vcvt.s32.f32 %v5092
    %v5100 = vmul.f32 %v5099, %v5097
    %v5101 = vxor.u32 %v5100, 2147483648
    %v5102 = vsel %vm5019, %v5101, %v5100
    %v5103 = vsub.s32 4, %v5079
    %v5104 = vsel %vm5019, %v5103, %v5079
    %v5105 = vsel %vm5018, %v4979, %v5102
    %v5106 = vsel %vm5018, 0, %v5104
    %v5107 = vcosq.f32.pop %v5105
    %v5108 = vsinq.f32.pop %v5105
    %vm5109 = vweird.f32 %v4979
    %v5110 = vadd.s32 %v5106, 3
    %v5111 = vand.u32 %v5110, 3
    %vm5112 = vcmp.lt.s32.totalorder %v5111, 2
    %vm5113 = vcmp.eq.s32.totalorder %v5111, 0
    %v5114 = vxor.u32 %v5108, 2147483648
    %v5115 = vsel %vm5113, %v5107, %v5114
    %vm5116 = vcmp.eq.s32.totalorder %v5111, 2
    %v5117 = vxor.u32 %v5107, 2147483648
    %v5118 = vsel %vm5116, %v5117, %v5108
    %v5119 = vsel %vm5112, %v5115, %v5118
    %v5120 = vsel %vm5109, nan, %v5119
    %v5121 = vand.u32 2147483647, %v4982
    %vm5122 = vcmp.le.f32.partialorder %v5121, 0.7853982
    %vm5123 = vcmp.lt.s32.totalorder %v4982, 0
    %v5124 = vand.u32 %v4982, 2139095040
    %v5125 = vshrl.u32 %v5124, 23
    %v5126 = vsub.s32 %v5125, 127
    %v5127 = vand.u32 2147483647, %v4982
    %v5128 = vand.u32 %v5127, 8388607
    %v5129 = vor.u32 %v5128, 8388608
    %v5130 = vsub.s32 0, %v5129
    %v5131 = vadd.s32 %v5126, 1
    %vm5132 = vcmp.gt.s32.totalorder %v5131, 0
    %v5133 = vsel %vm5132, %v5131, 0
    %v5134 = vshrl.u32 %v5133, 5
    %v5135 = vand.u32 %v5133, 31
    %v5136 = vsub.s32 32, %v5135
    %v5137 = vshrl.u32 683565275, %v5136
    %v5138 = vshll.u32 683565275, %v5135
    %v5139 = vshrl.u32 2475754826, %v5136
    %v5140 = vor.u32 %v5138, %v5139
    %v5141 = vshll.u32 2475754826, %v5135
    %v5142 = vshrl.u32 2131351028, %v5136
    %v5143 = vor.u32 %v5141, %v5142
    %v5144 = vshll.u32 2131351028, %v5135
    %v5145 = vshrl.u32 2102212464, %v5136
    %v5146 = vor.u32 %v5144, %v5145
    %v5147 = vshll.u32 2102212464, %v5135
    %v5148 = vshrl.u32 920167782, %v5136
    %v5149 = vor.u32 %v5147, %v5148
    %v5150 = vshll.u32 920167782, %v5135
    %v5151 = vshrl.u32 1326507024, %v5136
    %v5152 = vor.u32 %v5150, %v5151
    %vm5153 = vcmp.lt.s32.totalorder %v5134, 1
    %vm5154 = vcmp.lt.s32.totalorder %v5134, 2
    %vm5155 = vcmp.lt.s32.totalorder %v5134, 3
    %vm5156 = vcmp.lt.s32.totalorder %v5134, 4
    %v5157 = vsel %vm5153, %v5137, %v5140
    %v5158 = vsel %vm5156, %v5146, 2102212464
    %v5159 = vsel %vm5155, %v5143, %v5158
    %v5160 = vsel %vm5154, %v5157, %v5159
    %v5161 = vsel %vm5153, %v5140, %v5143
    %v5162 = vsel %vm5156, %v5149, 920167782
    %v5163 = vsel %vm5155, %v5146, %v5162
    %v5164 = vsel %vm5154, %v5161, %v5163
    %v5165 = vsel %vm5153, %v5143, %v5146
    %v5166 = vsel %vm5156, %v5152, 1326507024
    %v5167 = vsel %vm5155, %v5149, %v5166
    %v5168 = vsel %vm5154, %v5165, %v5167
    %v5169 = vshll.u32 %v5129, 8
    %v5170 = vmul.u32.u64.compose %v5169, %v5168
    %v5171 = vextract.low.u32 %v5170
    %v5172 = vextract.high.u32 %v5170
    %v5173 = vmul.u32.u64.compose %v5169, %v5164
    %v5174 = vextract.low.u32 %v5173
    %v5175 = vextract.high.u32 %v5173
    %v5176 = vmul.u32 %v5169, %v5160
    %v5177 = vadd.s32 %v5172, %v5174
    %vm5178 = vc.u32 %v5172, %v5174
    %v5179 = vadd.s32 %v5175, 1
    %v5180 = vsel %vm5178, %v5179, %v5175
    %v5181 = vadd.s32 %v5176, %v5180
    %v5182 = vadd.s32 %v5181, 536870912
    %v5183 = vshrl.u32 %v5182, 30
    %v5184 = vshll.u32 %v5183, 30
    %v5185 = vsub.s32 %v5181, %v5184
    %vm5186 = vcmp.lt.s32.totalorder %v5185, 0
    %v5187 = vsub.s32 0, %v5185
    %v5188 = vsel %vm5186, %v5187, %v5185
    %v5189 = vclz %v5188
    %v5190 = vsub.s32 %v5189, 2
    %vm5191 = vcmp.gt.s32.totalorder 0, %v5190
    %v5192 = vsel %vm5191, 0, %v5190
    %v5193 = vsub.s32 32, %v5192
    %v5194 = vshll.u32 %v5185, %v5192
    %v5195 = vshrl.u32 %v5177, %v5193
    %v5196 = vor.u32 %v5194, %v5195
    %v5197 = vsub.s32 4294967266, %v5192
    %v5198 = vadd.s32 %v5197, 127
    %v5199 = vshll.u32 %v5198, 23
    %v5200 = vor.u32 4788187, %v5199
    %v5201 = vand.u32 2147483647, %v5200
    %v5203 = vcvt.s32.f32 %v5196
    %v5204 = vmul.f32 %v5203, %v5201
    %v5205 = vxor.u32 %v5204, 2147483648
    %v5206 = vsel %vm5123, %v5205, %v5204
    %v5207 = vsub.s32 4, %v5183
    %v5208 = vsel %vm5123, %v5207, %v5183
    %v5209 = vsel %vm5122, %v4982, %v5206
    %v5210 = vsel %vm5122, 0, %v5208
    %v5211 = vcosq.f32.pop %v5209
    %v5212 = vsinq.f32.pop %v5209
    %vm5213 = vweird.f32 %v4982
    %v5214 = vadd.s32 %v5210, 3
    %v5215 = vand.u32 %v5214, 3
    %vm5216 = vcmp.lt.s32.totalorder %v5215, 2
    %vm5217 = vcmp.eq.s32.totalorder %v5215, 0
    %v5218 = vxor.u32 %v5212, 2147483648
    %v5219 = vsel %vm5217, %v5211, %v5218
    %vm5220 = vcmp.eq.s32.totalorder %v5215, 2
    %v5221 = vxor.u32 %v5211, 2147483648
    %v5222 = vsel %vm5220, %v5221, %v5212
    %v5223 = vsel %vm5216, %v5219, %v5222
    %v5224 = vsel %vm5213, nan, %v5223
    %v5225 = vand.u32 2147483647, %v4987
    %vm5226 = vcmp.le.f32.partialorder %v5225, 0.7853982
    %vm5227 = vcmp.lt.s32.totalorder %v4987, 0
    %v5228 = vand.u32 %v4987, 2139095040
    %v5229 = vshrl.u32 %v5228, 23
    %v5230 = vsub.s32 %v5229, 127
    %v5231 = vand.u32 2147483647, %v4987
    %v5232 = vand.u32 %v5231, 8388607
    %v5233 = vor.u32 %v5232, 8388608
    %v5234 = vsub.s32 0, %v5233
    %v5235 = vadd.s32 %v5230, 1
    %vm5236 = vcmp.gt.s32.totalorder %v5235, 0
    %v5237 = vsel %vm5236, %v5235, 0
    %v5238 = vshrl.u32 %v5237, 5
    %v5239 = vand.u32 %v5237, 31
    %v5240 = vsub.s32 32, %v5239
    %v5241 = vshrl.u32 683565275, %v5240
    %v5242 = vshll.u32 683565275, %v5239
    %v5243 = vshrl.u32 2475754826, %v5240
    %v5244 = vor.u32 %v5242, %v5243
    %v5245 = vshll.u32 2475754826, %v5239
    %v5246 = vshrl.u32 2131351028, %v5240
    %v5247 = vor.u32 %v5245, %v5246
    %v5248 = vshll.u32 2131351028, %v5239
    %v5249 = vshrl.u32 2102212464, %v5240
    %v5250 = vor.u32 %v5248, %v5249
    %v5251 = vshll.u32 2102212464, %v5239
    %v5252 = vshrl.u32 920167782, %v5240
    %v5253 = vor.u32 %v5251, %v5252
    %v5254 = vshll.u32 920167782, %v5239
    %v5255 = vshrl.u32 1326507024, %v5240
    %v5256 = vor.u32 %v5254, %v5255
    %vm5257 = vcmp.lt.s32.totalorder %v5238, 1
    %vm5258 = vcmp.lt.s32.totalorder %v5238, 2
    %vm5259 = vcmp.lt.s32.totalorder %v5238, 3
    %vm5260 = vcmp.lt.s32.totalorder %v5238, 4
    %v5261 = vsel %vm5257, %v5241, %v5244
    %v5262 = vsel %vm5260, %v5250, 2102212464
    %v5263 = vsel %vm5259, %v5247, %v5262
    %v5264 = vsel %vm5258, %v5261, %v5263
    %v5265 = vsel %vm5257, %v5244, %v5247
    %v5266 = vsel %vm5260, %v5253, 920167782
    %v5267 = vsel %vm5259, %v5250, %v5266
    %v5268 = vsel %vm5258, %v5265, %v5267
    %v5269 = vsel %vm5257, %v5247, %v5250
    %v5270 = vsel %vm5260, %v5256, 1326507024
    %v5271 = vsel %vm5259, %v5253, %v5270
    %v5272 = vsel %vm5258, %v5269, %v5271
    %v5273 = vshll.u32 %v5233, 8
    %v5274 = vmul.u32.u64.compose %v5273, %v5272
    %v5275 = vextract.low.u32 %v5274
    %v5276 = vextract.high.u32 %v5274
    %v5277 = vmul.u32.u64.compose %v5273, %v5268
    %v5278 = vextract.low.u32 %v5277
    %v5279 = vextract.high.u32 %v5277
    %v5280 = vmul.u32 %v5273, %v5264
    %v5281 = vadd.s32 %v5276, %v5278
    %vm5282 = vc.u32 %v5276, %v5278
    %v5283 = vadd.s32 %v5279, 1
    %v5284 = vsel %vm5282, %v5283, %v5279
    %v5285 = vadd.s32 %v5280, %v5284
    %v5286 = vadd.s32 %v5285, 536870912
    %v5287 = vshrl.u32 %v5286, 30
    %v5288 = vshll.u32 %v5287, 30
    %v5289 = vsub.s32 %v5285, %v5288
    %vm5290 = vcmp.lt.s32.totalorder %v5289, 0
    %v5291 = vsub.s32 0, %v5289
    %v5292 = vsel %vm5290, %v5291, %v5289
    %v5293 = vclz %v5292
    %v5294 = vsub.s32 %v5293, 2
    %vm5295 = vcmp.gt.s32.totalorder 0, %v5294
    %v5296 = vsel %vm5295, 0, %v5294
    %v5297 = vsub.s32 32, %v5296
    %v5298 = vshll.u32 %v5289, %v5296
    %v5299 = vshrl.u32 %v5281, %v5297
    %v5300 = vor.u32 %v5298, %v5299
    %v5301 = vsub.s32 4294967266, %v5296
    %v5302 = vadd.s32 %v5301, 127
    %v5303 = vshll.u32 %v5302, 23
    %v5304 = vor.u32 4788187, %v5303
    %v5305 = vand.u32 2147483647, %v5304
    %v5307 = vcvt.s32.f32 %v5300
    %v5308 = vmul.f32 %v5307, %v5305
    %v5309 = vxor.u32 %v5308, 2147483648
    %v5310 = vsel %vm5227, %v5309, %v5308
    %v5311 = vsub.s32 4, %v5287
    %v5312 = vsel %vm5227, %v5311, %v5287
    %v5313 = vsel %vm5226, %v4987, %v5310
    %v5314 = vsel %vm5226, 0, %v5312
    %v5315 = vcosq.f32.pop %v5313
    %v5316 = vsinq.f32.pop %v5313
    %vm5317 = vweird.f32 %v4987
    %v5318 = vadd.s32 %v5314, 3
    %v5319 = vand.u32 %v5318, 3
    %vm5320 = vcmp.lt.s32.totalorder %v5319, 2
    %vm5321 = vcmp.eq.s32.totalorder %v5319, 0
    %v5322 = vxor.u32 %v5316, 2147483648
    %v5323 = vsel %vm5321, %v5315, %v5322
    %vm5324 = vcmp.eq.s32.totalorder %v5319, 2
    %v5325 = vxor.u32 %v5315, 2147483648
    %v5326 = vsel %vm5324, %v5325, %v5316
    %v5327 = vsel %vm5320, %v5323, %v5326
    %v5328 = vsel %vm5317, nan, %v5327
    %v5329 = vand.u32 2147483647, %v4990
    %vm5330 = vcmp.le.f32.partialorder %v5329, 0.7853982
    %vm5331 = vcmp.lt.s32.totalorder %v4990, 0
    %v5332 = vand.u32 %v4990, 2139095040
    %v5333 = vshrl.u32 %v5332, 23
    %v5334 = vsub.s32 %v5333, 127
    %v5335 = vand.u32 2147483647, %v4990
    %v5336 = vand.u32 %v5335, 8388607
    %v5337 = vor.u32 %v5336, 8388608
    %v5338 = vsub.s32 0, %v5337
    %v5339 = vadd.s32 %v5334, 1
    %vm5340 = vcmp.gt.s32.totalorder %v5339, 0
    %v5341 = vsel %vm5340, %v5339, 0
    %v5342 = vshrl.u32 %v5341, 5
    %v5343 = vand.u32 %v5341, 31
    %v5344 = vsub.s32 32, %v5343
    %v5345 = vshrl.u32 683565275, %v5344
    %v5346 = vshll.u32 683565275, %v5343
    %v5347 = vshrl.u32 2475754826, %v5344
    %v5348 = vor.u32 %v5346, %v5347
    %v5349 = vshll.u32 2475754826, %v5343
    %v5350 = vshrl.u32 2131351028, %v5344
    %v5351 = vor.u32 %v5349, %v5350
    %v5352 = vshll.u32 2131351028, %v5343
    %v5353 = vshrl.u32 2102212464, %v5344
    %v5354 = vor.u32 %v5352, %v5353
    %v5355 = vshll.u32 2102212464, %v5343
    %v5356 = vshrl.u32 920167782, %v5344
    %v5357 = vor.u32 %v5355, %v5356
    %v5358 = vshll.u32 920167782, %v5343
    %v5359 = vshrl.u32 1326507024, %v5344
    %v5360 = vor.u32 %v5358, %v5359
    %vm5361 = vcmp.lt.s32.totalorder %v5342, 1
    %vm5362 = vcmp.lt.s32.totalorder %v5342, 2
    %vm5363 = vcmp.lt.s32.totalorder %v5342, 3
    %vm5364 = vcmp.lt.s32.totalorder %v5342, 4
    %v5365 = vsel %vm5361, %v5345, %v5348
    %v5366 = vsel %vm5364, %v5354, 2102212464
    %v5367 = vsel %vm5363, %v5351, %v5366
    %v5368 = vsel %vm5362, %v5365, %v5367
    %v5369 = vsel %vm5361, %v5348, %v5351
    %v5370 = vsel %vm5364, %v5357, 920167782
    %v5371 = vsel %vm5363, %v5354, %v5370
    %v5372 = vsel %vm5362, %v5369, %v5371
    %v5373 = vsel %vm5361, %v5351, %v5354
    %v5374 = vsel %vm5364, %v5360, 1326507024
    %v5375 = vsel %vm5363, %v5357, %v5374
    %v5376 = vsel %vm5362, %v5373, %v5375
    %v5377 = vshll.u32 %v5337, 8
    %v5378 = vmul.u32.u64.compose %v5377, %v5376
    %v5379 = vextract.low.u32 %v5378
    %v5380 = vextract.high.u32 %v5378
    %v5381 = vmul.u32.u64.compose %v5377, %v5372
    %v5382 = vextract.low.u32 %v5381
    %v5383 = vextract.high.u32 %v5381
    %v5384 = vmul.u32 %v5377, %v5368
    %v5385 = vadd.s32 %v5380, %v5382
    %vm5386 = vc.u32 %v5380, %v5382
    %v5387 = vadd.s32 %v5383, 1
    %v5388 = vsel %vm5386, %v5387, %v5383
    %v5389 = vadd.s32 %v5384, %v5388
    %v5390 = vadd.s32 %v5389, 536870912
    %v5391 = vshrl.u32 %v5390, 30
    %v5392 = vshll.u32 %v5391, 30
    %v5393 = vsub.s32 %v5389, %v5392
    %vm5394 = vcmp.lt.s32.totalorder %v5393, 0
    %v5395 = vsub.s32 0, %v5393
    %v5396 = vsel %vm5394, %v5395, %v5393
    %v5397 = vclz %v5396
    %v5398 = vsub.s32 %v5397, 2
    %vm5399 = vcmp.gt.s32.totalorder 0, %v5398
    %v5400 = vsel %vm5399, 0, %v5398
    %v5401 = vsub.s32 32, %v5400
    %v5402 = vshll.u32 %v5393, %v5400
    %v5403 = vshrl.u32 %v5385, %v5401
    %v5404 = vor.u32 %v5402, %v5403
    %v5405 = vsub.s32 4294967266, %v5400
    %v5406 = vadd.s32 %v5405, 127
    %v5407 = vshll.u32 %v5406, 23
    %v5408 = vor.u32 4788187, %v5407
    %v5409 = vand.u32 2147483647, %v5408
    %v5411 = vcvt.s32.f32 %v5404
    %v5412 = vmul.f32 %v5411, %v5409
    %v5413 = vxor.u32 %v5412, 2147483648
    %v5414 = vsel %vm5331, %v5413, %v5412
    %v5415 = vsub.s32 4, %v5391
    %v5416 = vsel %vm5331, %v5415, %v5391
    %v5417 = vsel %vm5330, %v4990, %v5414
    %v5418 = vsel %vm5330, 0, %v5416
    %v5419 = vcosq.f32.pop %v5417
    %v5420 = vsinq.f32.pop %v5417
    %vm5421 = vweird.f32 %v4990
    %v5422 = vadd.s32 %v5418, 3
    %v5423 = vand.u32 %v5422, 3
    %vm5424 = vcmp.lt.s32.totalorder %v5423, 2
    %vm5425 = vcmp.eq.s32.totalorder %v5423, 0
    %v5426 = vxor.u32 %v5420, 2147483648
    %v5427 = vsel %vm5425, %v5419, %v5426
    %vm5428 = vcmp.eq.s32.totalorder %v5423, 2
    %v5429 = vxor.u32 %v5419, 2147483648
    %v5430 = vsel %vm5428, %v5429, %v5420
    %v5431 = vsel %vm5424, %v5427, %v5430
    %v5432 = vsel %vm5421, nan, %v5431
    %v5433 = vand.u32 2147483647, %v4995
    %vm5434 = vcmp.le.f32.partialorder %v5433, 0.7853982
    %vm5435 = vcmp.lt.s32.totalorder %v4995, 0
    %v5436 = vand.u32 %v4995, 2139095040
    %v5437 = vshrl.u32 %v5436, 23
    %v5438 = vsub.s32 %v5437, 127
    %v5439 = vand.u32 2147483647, %v4995
    %v5440 = vand.u32 %v5439, 8388607
    %v5441 = vor.u32 %v5440, 8388608
    %v5442 = vsub.s32 0, %v5441
    %v5443 = vadd.s32 %v5438, 1
    %vm5444 = vcmp.gt.s32.totalorder %v5443, 0
    %v5445 = vsel %vm5444, %v5443, 0
    %v5446 = vshrl.u32 %v5445, 5
    %v5447 = vand.u32 %v5445, 31
    %v5448 = vsub.s32 32, %v5447
    %v5449 = vshrl.u32 683565275, %v5448
    %v5450 = vshll.u32 683565275, %v5447
    %v5451 = vshrl.u32 2475754826, %v5448
    %v5452 = vor.u32 %v5450, %v5451
    %v5453 = vshll.u32 2475754826, %v5447
    %v5454 = vshrl.u32 2131351028, %v5448
    %v5455 = vor.u32 %v5453, %v5454
    %v5456 = vshll.u32 2131351028, %v5447
    %v5457 = vshrl.u32 2102212464, %v5448
    %v5458 = vor.u32 %v5456, %v5457
    %v5459 = vshll.u32 2102212464, %v5447
    %v5460 = vshrl.u32 920167782, %v5448
    %v5461 = vor.u32 %v5459, %v5460
    %v5462 = vshll.u32 920167782, %v5447
    %v5463 = vshrl.u32 1326507024, %v5448
    %v5464 = vor.u32 %v5462, %v5463
    %vm5465 = vcmp.lt.s32.totalorder %v5446, 1
    %vm5466 = vcmp.lt.s32.totalorder %v5446, 2
    %vm5467 = vcmp.lt.s32.totalorder %v5446, 3
    %vm5468 = vcmp.lt.s32.totalorder %v5446, 4
    %v5469 = vsel %vm5465, %v5449, %v5452
    %v5470 = vsel %vm5468, %v5458, 2102212464
    %v5471 = vsel %vm5467, %v5455, %v5470
    %v5472 = vsel %vm5466, %v5469, %v5471
    %v5473 = vsel %vm5465, %v5452, %v5455
    %v5474 = vsel %vm5468, %v5461, 920167782
    %v5475 = vsel %vm5467, %v5458, %v5474
    %v5476 = vsel %vm5466, %v5473, %v5475
    %v5477 = vsel %vm5465, %v5455, %v5458
    %v5478 = vsel %vm5468, %v5464, 1326507024
    %v5479 = vsel %vm5467, %v5461, %v5478
    %v5480 = vsel %vm5466, %v5477, %v5479
    %v5481 = vshll.u32 %v5441, 8
    %v5482 = vmul.u32.u64.compose %v5481, %v5480
    %v5483 = vextract.low.u32 %v5482
    %v5484 = vextract.high.u32 %v5482
    %v5485 = vmul.u32.u64.compose %v5481, %v5476
    %v5486 = vextract.low.u32 %v5485
    %v5487 = vextract.high.u32 %v5485
    %v5488 = vmul.u32 %v5481, %v5472
    %v5489 = vadd.s32 %v5484, %v5486
    %vm5490 = vc.u32 %v5484, %v5486
    %v5491 = vadd.s32 %v5487, 1
    %v5492 = vsel %vm5490, %v5491, %v5487
    %v5493 = vadd.s32 %v5488, %v5492
    %v5494 = vadd.s32 %v5493, 536870912
    %v5495 = vshrl.u32 %v5494, 30
    %v5496 = vshll.u32 %v5495, 30
    %v5497 = vsub.s32 %v5493, %v5496
    %vm5498 = vcmp.lt.s32.totalorder %v5497, 0
    %v5499 = vsub.s32 0, %v5497
    %v5500 = vsel %vm5498, %v5499, %v5497
    %v5501 = vclz %v5500
    %v5502 = vsub.s32 %v5501, 2
    %vm5503 = vcmp.gt.s32.totalorder 0, %v5502
    %v5504 = vsel %vm5503, 0, %v5502
    %v5505 = vsub.s32 32, %v5504
    %v5506 = vshll.u32 %v5497, %v5504
    %v5507 = vshrl.u32 %v5489, %v5505
    %v5508 = vor.u32 %v5506, %v5507
    %v5509 = vsub.s32 4294967266, %v5504
    %v5510 = vadd.s32 %v5509, 127
    %v5511 = vshll.u32 %v5510, 23
    %v5512 = vor.u32 4788187, %v5511
    %v5513 = vand.u32 2147483647, %v5512
    %v5515 = vcvt.s32.f32 %v5508
    %v5516 = vmul.f32 %v5515, %v5513
    %v5517 = vxor.u32 %v5516, 2147483648
    %v5518 = vsel %vm5435, %v5517, %v5516
    %v5519 = vsub.s32 4, %v5495
    %v5520 = vsel %vm5435, %v5519, %v5495
    %v5521 = vsel %vm5434, %v4995, %v5518
    %v5522 = vsel %vm5434, 0, %v5520
    %v5523 = vcosq.f32.pop %v5521
    %v5524 = vsinq.f32.pop %v5521
    %vm5525 = vweird.f32 %v4995
    %v5526 = vadd.s32 %v5522, 3
    %v5527 = vand.u32 %v5526, 3
    %vm5528 = vcmp.lt.s32.totalorder %v5527, 2
    %vm5529 = vcmp.eq.s32.totalorder %v5527, 0
    %v5530 = vxor.u32 %v5524, 2147483648
    %v5531 = vsel %vm5529, %v5523, %v5530
    %vm5532 = vcmp.eq.s32.totalorder %v5527, 2
    %v5533 = vxor.u32 %v5523, 2147483648
    %v5534 = vsel %vm5532, %v5533, %v5524
    %v5535 = vsel %vm5528, %v5531, %v5534
    %v5536 = vsel %vm5525, nan, %v5535
    %v5537 = vand.u32 2147483647, %v4998
    %vm5538 = vcmp.le.f32.partialorder %v5537, 0.7853982
    %vm5539 = vcmp.lt.s32.totalorder %v4998, 0
    %v5540 = vand.u32 %v4998, 2139095040
    %v5541 = vshrl.u32 %v5540, 23
    %v5542 = vsub.s32 %v5541, 127
    %v5543 = vand.u32 2147483647, %v4998
    %v5544 = vand.u32 %v5543, 8388607
    %v5545 = vor.u32 %v5544, 8388608
    %v5546 = vsub.s32 0, %v5545
    %v5547 = vadd.s32 %v5542, 1
    %vm5548 = vcmp.gt.s32.totalorder %v5547, 0
    %v5549 = vsel %vm5548, %v5547, 0
    %v5550 = vshrl.u32 %v5549, 5
    %v5551 = vand.u32 %v5549, 31
    %v5552 = vsub.s32 32, %v5551
    %v5553 = vshrl.u32 683565275, %v5552
    %v5554 = vshll.u32 683565275, %v5551
    %v5555 = vshrl.u32 2475754826, %v5552
    %v5556 = vor.u32 %v5554, %v5555
    %v5557 = vshll.u32 2475754826, %v5551
    %v5558 = vshrl.u32 2131351028, %v5552
    %v5559 = vor.u32 %v5557, %v5558
    %v5560 = vshll.u32 2131351028, %v5551
    %v5561 = vshrl.u32 2102212464, %v5552
    %v5562 = vor.u32 %v5560, %v5561
    %v5563 = vshll.u32 2102212464, %v5551
    %v5564 = vshrl.u32 920167782, %v5552
    %v5565 = vor.u32 %v5563, %v5564
    %v5566 = vshll.u32 920167782, %v5551
    %v5567 = vshrl.u32 1326507024, %v5552
    %v5568 = vor.u32 %v5566, %v5567
    %vm5569 = vcmp.lt.s32.totalorder %v5550, 1
    %vm5570 = vcmp.lt.s32.totalorder %v5550, 2
    %vm5571 = vcmp.lt.s32.totalorder %v5550, 3
    %vm5572 = vcmp.lt.s32.totalorder %v5550, 4
    %v5573 = vsel %vm5569, %v5553, %v5556
    %v5574 = vsel %vm5572, %v5562, 2102212464
    %v5575 = vsel %vm5571, %v5559, %v5574
    %v5576 = vsel %vm5570, %v5573, %v5575
    %v5577 = vsel %vm5569, %v5556, %v5559
    %v5578 = vsel %vm5572, %v5565, 920167782
    %v5579 = vsel %vm5571, %v5562, %v5578
    %v5580 = vsel %vm5570, %v5577, %v5579
    %v5581 = vsel %vm5569, %v5559, %v5562
    %v5582 = vsel %vm5572, %v5568, 1326507024
    %v5583 = vsel %vm5571, %v5565, %v5582
    %v5584 = vsel %vm5570, %v5581, %v5583
    %v5585 = vshll.u32 %v5545, 8
    %v5586 = vmul.u32.u64.compose %v5585, %v5584
    %v5587 = vextract.low.u32 %v5586
    %v5588 = vextract.high.u32 %v5586
    %v5589 = vmul.u32.u64.compose %v5585, %v5580
    %v5590 = vextract.low.u32 %v5589
    %v5591 = vextract.high.u32 %v5589
    %v5592 = vmul.u32 %v5585, %v5576
    %v5593 = vadd.s32 %v5588, %v5590
    %vm5594 = vc.u32 %v5588, %v5590
    %v5595 = vadd.s32 %v5591, 1
    %v5596 = vsel %vm5594, %v5595, %v5591
    %v5597 = vadd.s32 %v5592, %v5596
    %v5598 = vadd.s32 %v5597, 536870912
    %v5599 = vshrl.u32 %v5598, 30
    %v5600 = vshll.u32 %v5599, 30
    %v5601 = vsub.s32 %v5597, %v5600
    %vm5602 = vcmp.lt.s32.totalorder %v5601, 0
    %v5603 = vsub.s32 0, %v5601
    %v5604 = vsel %vm5602, %v5603, %v5601
    %v5605 = vclz %v5604
    %v5606 = vsub.s32 %v5605, 2
    %vm5607 = vcmp.gt.s32.totalorder 0, %v5606
    %v5608 = vsel %vm5607, 0, %v5606
    %v5609 = vsub.s32 32, %v5608
    %v5610 = vshll.u32 %v5601, %v5608
    %v5611 = vshrl.u32 %v5593, %v5609
    %v5612 = vor.u32 %v5610, %v5611
    %v5613 = vsub.s32 4294967266, %v5608
    %v5614 = vadd.s32 %v5613, 127
    %v5615 = vshll.u32 %v5614, 23
    %v5616 = vor.u32 4788187, %v5615
    %v5617 = vand.u32 2147483647, %v5616
    %v5619 = vcvt.s32.f32 %v5612
    %v5620 = vmul.f32 %v5619, %v5617
    %v5621 = vxor.u32 %v5620, 2147483648
    %v5622 = vsel %vm5539, %v5621, %v5620
    %v5623 = vsub.s32 4, %v5599
    %v5624 = vsel %vm5539, %v5623, %v5599
    %v5625 = vsel %vm5538, %v4998, %v5622
    %v5626 = vsel %vm5538, 0, %v5624
    %v5627 = vcosq.f32.pop %v5625
    %v5628 = vsinq.f32.pop %v5625
    %vm5629 = vweird.f32 %v4998
    %v5630 = vadd.s32 %v5626, 3
    %v5631 = vand.u32 %v5630, 3
    %vm5632 = vcmp.lt.s32.totalorder %v5631, 2
    %vm5633 = vcmp.eq.s32.totalorder %v5631, 0
    %v5634 = vxor.u32 %v5628, 2147483648
    %v5635 = vsel %vm5633, %v5627, %v5634
    %vm5636 = vcmp.eq.s32.totalorder %v5631, 2
    %v5637 = vxor.u32 %v5627, 2147483648
    %v5638 = vsel %vm5636, %v5637, %v5628
    %v5639 = vsel %vm5632, %v5635, %v5638
    %v5640 = vsel %vm5629, nan, %v5639
    %v5641 = vand.u32 2147483647, %v5003
    %vm5642 = vcmp.le.f32.partialorder %v5641, 0.7853982
    %vm5643 = vcmp.lt.s32.totalorder %v5003, 0
    %v5644 = vand.u32 %v5003, 2139095040
    %v5645 = vshrl.u32 %v5644, 23
    %v5646 = vsub.s32 %v5645, 127
    %v5647 = vand.u32 2147483647, %v5003
    %v5648 = vand.u32 %v5647, 8388607
    %v5649 = vor.u32 %v5648, 8388608
    %v5650 = vsub.s32 0, %v5649
    %v5651 = vadd.s32 %v5646, 1
    %vm5652 = vcmp.gt.s32.totalorder %v5651, 0
    %v5653 = vsel %vm5652, %v5651, 0
    %v5654 = vshrl.u32 %v5653, 5
    %v5655 = vand.u32 %v5653, 31
    %v5656 = vsub.s32 32, %v5655
    %v5657 = vshrl.u32 683565275, %v5656
    %v5658 = vshll.u32 683565275, %v5655
    %v5659 = vshrl.u32 2475754826, %v5656
    %v5660 = vor.u32 %v5658, %v5659
    %v5661 = vshll.u32 2475754826, %v5655
    %v5662 = vshrl.u32 2131351028, %v5656
    %v5663 = vor.u32 %v5661, %v5662
    %v5664 = vshll.u32 2131351028, %v5655
    %v5665 = vshrl.u32 2102212464, %v5656
    %v5666 = vor.u32 %v5664, %v5665
    %v5667 = vshll.u32 2102212464, %v5655
    %v5668 = vshrl.u32 920167782, %v5656
    %v5669 = vor.u32 %v5667, %v5668
    %v5670 = vshll.u32 920167782, %v5655
    %v5671 = vshrl.u32 1326507024, %v5656
    %v5672 = vor.u32 %v5670, %v5671
    %vm5673 = vcmp.lt.s32.totalorder %v5654, 1
    %vm5674 = vcmp.lt.s32.totalorder %v5654, 2
    %vm5675 = vcmp.lt.s32.totalorder %v5654, 3
    %vm5676 = vcmp.lt.s32.totalorder %v5654, 4
    %v5677 = vsel %vm5673, %v5657, %v5660
    %v5678 = vsel %vm5676, %v5666, 2102212464
    %v5679 = vsel %vm5675, %v5663, %v5678
    %v5680 = vsel %vm5674, %v5677, %v5679
    %v5681 = vsel %vm5673, %v5660, %v5663
    %v5682 = vsel %vm5676, %v5669, 920167782
    %v5683 = vsel %vm5675, %v5666, %v5682
    %v5684 = vsel %vm5674, %v5681, %v5683
    %v5685 = vsel %vm5673, %v5663, %v5666
    %v5686 = vsel %vm5676, %v5672, 1326507024
    %v5687 = vsel %vm5675, %v5669, %v5686
    %v5688 = vsel %vm5674, %v5685, %v5687
    %v5689 = vshll.u32 %v5649, 8
    %v5690 = vmul.u32.u64.compose %v5689, %v5688
    %v5691 = vextract.low.u32 %v5690
    %v5692 = vextract.high.u32 %v5690
    %v5693 = vmul.u32.u64.compose %v5689, %v5684
    %v5694 = vextract.low.u32 %v5693
    %v5695 = vextract.high.u32 %v5693
    %v5696 = vmul.u32 %v5689, %v5680
    %v5697 = vadd.s32 %v5692, %v5694
    %vm5698 = vc.u32 %v5692, %v5694
    %v5699 = vadd.s32 %v5695, 1
    %v5700 = vsel %vm5698, %v5699, %v5695
    %v5701 = vadd.s32 %v5696, %v5700
    %v5702 = vadd.s32 %v5701, 536870912
    %v5703 = vshrl.u32 %v5702, 30
    %v5704 = vshll.u32 %v5703, 30
    %v5705 = vsub.s32 %v5701, %v5704
    %vm5706 = vcmp.lt.s32.totalorder %v5705, 0
    %v5707 = vsub.s32 0, %v5705
    %v5708 = vsel %vm5706, %v5707, %v5705
    %v5709 = vclz %v5708
    %v5710 = vsub.s32 %v5709, 2
    %vm5711 = vcmp.gt.s32.totalorder 0, %v5710
    %v5712 = vsel %vm5711, 0, %v5710
    %v5713 = vsub.s32 32, %v5712
    %v5714 = vshll.u32 %v5705, %v5712
    %v5715 = vshrl.u32 %v5697, %v5713
    %v5716 = vor.u32 %v5714, %v5715
    %v5717 = vsub.s32 4294967266, %v5712
    %v5718 = vadd.s32 %v5717, 127
    %v5719 = vshll.u32 %v5718, 23
    %v5720 = vor.u32 4788187, %v5719
    %v5721 = vand.u32 2147483647, %v5720
    %v5723 = vcvt.s32.f32 %v5716
    %v5724 = vmul.f32 %v5723, %v5721
    %v5725 = vxor.u32 %v5724, 2147483648
    %v5726 = vsel %vm5643, %v5725, %v5724
    %v5727 = vsub.s32 4, %v5703
    %v5728 = vsel %vm5643, %v5727, %v5703
    %v5729 = vsel %vm5642, %v5003, %v5726
    %v5730 = vsel %vm5642, 0, %v5728
    %v5731 = vcosq.f32.pop %v5729
    %v5732 = vsinq.f32.pop %v5729
    %vm5733 = vweird.f32 %v5003
    %v5734 = vadd.s32 %v5730, 3
    %v5735 = vand.u32 %v5734, 3
    %vm5736 = vcmp.lt.s32.totalorder %v5735, 2
    %vm5737 = vcmp.eq.s32.totalorder %v5735, 0
    %v5738 = vxor.u32 %v5732, 2147483648
    %v5739 = vsel %vm5737, %v5731, %v5738
    %vm5740 = vcmp.eq.s32.totalorder %v5735, 2
    %v5741 = vxor.u32 %v5731, 2147483648
    %v5742 = vsel %vm5740, %v5741, %v5732
    %v5743 = vsel %vm5736, %v5739, %v5742
    %v5744 = vsel %vm5733, nan, %v5743
    %v5745 = vand.u32 2147483647, %v5006
    %vm5746 = vcmp.le.f32.partialorder %v5745, 0.7853982
    %vm5747 = vcmp.lt.s32.totalorder %v5006, 0
    %v5748 = vand.u32 %v5006, 2139095040
    %v5749 = vshrl.u32 %v5748, 23
    %v5750 = vsub.s32 %v5749, 127
    %v5751 = vand.u32 2147483647, %v5006
    %v5752 = vand.u32 %v5751, 8388607
    %v5753 = vor.u32 %v5752, 8388608
    %v5754 = vsub.s32 0, %v5753
    %v5755 = vadd.s32 %v5750, 1
    %vm5756 = vcmp.gt.s32.totalorder %v5755, 0
    %v5757 = vsel %vm5756, %v5755, 0
    %v5758 = vshrl.u32 %v5757, 5
    %v5759 = vand.u32 %v5757, 31
    %v5760 = vsub.s32 32, %v5759
    %v5761 = vshrl.u32 683565275, %v5760
    %v5762 = vshll.u32 683565275, %v5759
    %v5763 = vshrl.u32 2475754826, %v5760
    %v5764 = vor.u32 %v5762, %v5763
    %v5765 = vshll.u32 2475754826, %v5759
    %v5766 = vshrl.u32 2131351028, %v5760
    %v5767 = vor.u32 %v5765, %v5766
    %v5768 = vshll.u32 2131351028, %v5759
    %v5769 = vshrl.u32 2102212464, %v5760
    %v5770 = vor.u32 %v5768, %v5769
    %v5771 = vshll.u32 2102212464, %v5759
    %v5772 = vshrl.u32 920167782, %v5760
    %v5773 = vor.u32 %v5771, %v5772
    %v5774 = vshll.u32 920167782, %v5759
    %v5775 = vshrl.u32 1326507024, %v5760
    %v5776 = vor.u32 %v5774, %v5775
    %vm5777 = vcmp.lt.s32.totalorder %v5758, 1
    %vm5778 = vcmp.lt.s32.totalorder %v5758, 2
    %vm5779 = vcmp.lt.s32.totalorder %v5758, 3
    %vm5780 = vcmp.lt.s32.totalorder %v5758, 4
    %v5781 = vsel %vm5777, %v5761, %v5764
    %v5782 = vsel %vm5780, %v5770, 2102212464
    %v5783 = vsel %vm5779, %v5767, %v5782
    %v5784 = vsel %vm5778, %v5781, %v5783
    %v5785 = vsel %vm5777, %v5764, %v5767
    %v5786 = vsel %vm5780, %v5773, 920167782
    %v5787 = vsel %vm5779, %v5770, %v5786
    %v5788 = vsel %vm5778, %v5785, %v5787
    %v5789 = vsel %vm5777, %v5767, %v5770
    %v5790 = vsel %vm5780, %v5776, 1326507024
    %v5791 = vsel %vm5779, %v5773, %v5790
    %v5792 = vsel %vm5778, %v5789, %v5791
    %v5793 = vshll.u32 %v5753, 8
    %v5794 = vmul.u32.u64.compose %v5793, %v5792
    %v5795 = vextract.low.u32 %v5794
    %v5796 = vextract.high.u32 %v5794
    %v5797 = vmul.u32.u64.compose %v5793, %v5788
    %v5798 = vextract.low.u32 %v5797
    %v5799 = vextract.high.u32 %v5797
    %v5800 = vmul.u32 %v5793, %v5784
    %v5801 = vadd.s32 %v5796, %v5798
    %vm5802 = vc.u32 %v5796, %v5798
    %v5803 = vadd.s32 %v5799, 1
    %v5804 = vsel %vm5802, %v5803, %v5799
    %v5805 = vadd.s32 %v5800, %v5804
    %v5806 = vadd.s32 %v5805, 536870912
    %v5807 = vshrl.u32 %v5806, 30
    %v5808 = vshll.u32 %v5807, 30
    %v5809 = vsub.s32 %v5805, %v5808
    %vm5810 = vcmp.lt.s32.totalorder %v5809, 0
    %v5811 = vsub.s32 0, %v5809
    %v5812 = vsel %vm5810, %v5811, %v5809
    %v5813 = vclz %v5812
    %v5814 = vsub.s32 %v5813, 2
    %vm5815 = vcmp.gt.s32.totalorder 0, %v5814
    %v5816 = vsel %vm5815, 0, %v5814
    %v5817 = vsub.s32 32, %v5816
    %v5818 = vshll.u32 %v5809, %v5816
    %v5819 = vshrl.u32 %v5801, %v5817
    %v5820 = vor.u32 %v5818, %v5819
    %v5821 = vsub.s32 4294967266, %v5816
    %v5822 = vadd.s32 %v5821, 127
    %v5823 = vshll.u32 %v5822, 23
    %v5824 = vor.u32 4788187, %v5823
    %v5825 = vand.u32 2147483647, %v5824
    %v5827 = vcvt.s32.f32 %v5820
    %v5828 = vmul.f32 %v5827, %v5825
    %v5829 = vxor.u32 %v5828, 2147483648
    %v5830 = vsel %vm5747, %v5829, %v5828
    %v5831 = vsub.s32 4, %v5807
    %v5832 = vsel %vm5747, %v5831, %v5807
    %v5833 = vsel %vm5746, %v5006, %v5830
    %v5834 = vsel %vm5746, 0, %v5832
    %v5835 = vcosq.f32.pop %v5833
    %v5836 = vsinq.f32.pop %v5833
    %vm5837 = vweird.f32 %v5006
    %v5838 = vadd.s32 %v5834, 3
    %v5839 = vand.u32 %v5838, 3
    %vm5840 = vcmp.lt.s32.totalorder %v5839, 2
    %vm5841 = vcmp.eq.s32.totalorder %v5839, 0
    %v5842 = vxor.u32 %v5836, 2147483648
    %v5843 = vsel %vm5841, %v5835, %v5842
    %vm5844 = vcmp.eq.s32.totalorder %v5839, 2
    %v5845 = vxor.u32 %v5835, 2147483648
    %v5846 = vsel %vm5844, %v5845, %v5836
    %v5847 = vsel %vm5840, %v5843, %v5846
    %v5848 = vsel %vm5837, nan, %v5847
    %v5849 = vand.u32 2147483647, %v5011
    %vm5850 = vcmp.le.f32.partialorder %v5849, 0.7853982
    %vm5851 = vcmp.lt.s32.totalorder %v5011, 0
    %v5852 = vand.u32 %v5011, 2139095040
    %v5853 = vshrl.u32 %v5852, 23
    %v5854 = vsub.s32 %v5853, 127
    %v5855 = vand.u32 2147483647, %v5011
    %v5856 = vand.u32 %v5855, 8388607
    %v5857 = vor.u32 %v5856, 8388608
    %v5858 = vsub.s32 0, %v5857
    %v5859 = vadd.s32 %v5854, 1
    %vm5860 = vcmp.gt.s32.totalorder %v5859, 0
    %v5861 = vsel %vm5860, %v5859, 0
    %v5862 = vshrl.u32 %v5861, 5
    %v5863 = vand.u32 %v5861, 31
    %v5864 = vsub.s32 32, %v5863
    %v5865 = vshrl.u32 683565275, %v5864
    %v5866 = vshll.u32 683565275, %v5863
    %v5867 = vshrl.u32 2475754826, %v5864
    %v5868 = vor.u32 %v5866, %v5867
    %v5869 = vshll.u32 2475754826, %v5863
    %v5870 = vshrl.u32 2131351028, %v5864
    %v5871 = vor.u32 %v5869, %v5870
    %v5872 = vshll.u32 2131351028, %v5863
    %v5873 = vshrl.u32 2102212464, %v5864
    %v5874 = vor.u32 %v5872, %v5873
    %v5875 = vshll.u32 2102212464, %v5863
    %v5876 = vshrl.u32 920167782, %v5864
    %v5877 = vor.u32 %v5875, %v5876
    %v5878 = vshll.u32 920167782, %v5863
    %v5879 = vshrl.u32 1326507024, %v5864
    %v5880 = vor.u32 %v5878, %v5879
    %vm5881 = vcmp.lt.s32.totalorder %v5862, 1
    %vm5882 = vcmp.lt.s32.totalorder %v5862, 2
    %vm5883 = vcmp.lt.s32.totalorder %v5862, 3
    %vm5884 = vcmp.lt.s32.totalorder %v5862, 4
    %v5885 = vsel %vm5881, %v5865, %v5868
    %v5886 = vsel %vm5884, %v5874, 2102212464
    %v5887 = vsel %vm5883, %v5871, %v5886
    %v5888 = vsel %vm5882, %v5885, %v5887
    %v5889 = vsel %vm5881, %v5868, %v5871
    %v5890 = vsel %vm5884, %v5877, 920167782
    %v5891 = vsel %vm5883, %v5874, %v5890
    %v5892 = vsel %vm5882, %v5889, %v5891
    %v5893 = vsel %vm5881, %v5871, %v5874
    %v5894 = vsel %vm5884, %v5880, 1326507024
    %v5895 = vsel %vm5883, %v5877, %v5894
    %v5896 = vsel %vm5882, %v5893, %v5895
    %v5897 = vshll.u32 %v5857, 8
    %v5898 = vmul.u32.u64.compose %v5897, %v5896
    %v5899 = vextract.low.u32 %v5898
    %v5900 = vextract.high.u32 %v5898
    %v5901 = vmul.u32.u64.compose %v5897, %v5892
    %v5902 = vextract.low.u32 %v5901
    %v5903 = vextract.high.u32 %v5901
    %v5904 = vmul.u32 %v5897, %v5888
    %v5905 = vadd.s32 %v5900, %v5902
    %vm5906 = vc.u32 %v5900, %v5902
    %v5907 = vadd.s32 %v5903, 1
    %v5908 = vsel %vm5906, %v5907, %v5903
    %v5909 = vadd.s32 %v5904, %v5908
    %v5910 = vadd.s32 %v5909, 536870912
    %v5911 = vshrl.u32 %v5910, 30
    %v5912 = vshll.u32 %v5911, 30
    %v5913 = vsub.s32 %v5909, %v5912
    %vm5914 = vcmp.lt.s32.totalorder %v5913, 0
    %v5915 = vsub.s32 0, %v5913
    %v5916 = vsel %vm5914, %v5915, %v5913
    %v5917 = vclz %v5916
    %v5918 = vsub.s32 %v5917, 2
    %vm5919 = vcmp.gt.s32.totalorder 0, %v5918
    %v5920 = vsel %vm5919, 0, %v5918
    %v5921 = vsub.s32 32, %v5920
    %v5922 = vshll.u32 %v5913, %v5920
    %v5923 = vshrl.u32 %v5905, %v5921
    %v5924 = vor.u32 %v5922, %v5923
    %v5925 = vsub.s32 4294967266, %v5920
    %v5926 = vadd.s32 %v5925, 127
    %v5927 = vshll.u32 %v5926, 23
    %v5928 = vor.u32 4788187, %v5927
    %v5929 = vand.u32 2147483647, %v5928
    %v5931 = vcvt.s32.f32 %v5924
    %v5932 = vmul.f32 %v5931, %v5929
    %v5933 = vxor.u32 %v5932, 2147483648
    %v5934 = vsel %vm5851, %v5933, %v5932
    %v5935 = vsub.s32 4, %v5911
    %v5936 = vsel %vm5851, %v5935, %v5911
    %v5937 = vsel %vm5850, %v5011, %v5934
    %v5938 = vsel %vm5850, 0, %v5936
    %v5939 = vcosq.f32.pop %v5937
    %v5940 = vsinq.f32.pop %v5937
    %vm5941 = vweird.f32 %v5011
    %v5942 = vadd.s32 %v5938, 3
    %v5943 = vand.u32 %v5942, 3
    %vm5944 = vcmp.lt.s32.totalorder %v5943, 2
    %vm5945 = vcmp.eq.s32.totalorder %v5943, 0
    %v5946 = vxor.u32 %v5940, 2147483648
    %v5947 = vsel %vm5945, %v5939, %v5946
    %vm5948 = vcmp.eq.s32.totalorder %v5943, 2
    %v5949 = vxor.u32 %v5939, 2147483648
    %v5950 = vsel %vm5948, %v5949, %v5940
    %v5951 = vsel %vm5944, %v5947, %v5950
    %v5952 = vsel %vm5941, nan, %v5951
    %v5953 = vand.u32 2147483647, %v5014
    %vm5954 = vcmp.le.f32.partialorder %v5953, 0.7853982
    %vm5955 = vcmp.lt.s32.totalorder %v5014, 0
    %v5956 = vand.u32 %v5014, 2139095040
    %v5957 = vshrl.u32 %v5956, 23
    %v5958 = vsub.s32 %v5957, 127
    %v5959 = vand.u32 2147483647, %v5014
    %v5960 = vand.u32 %v5959, 8388607
    %v5961 = vor.u32 %v5960, 8388608
    %v5962 = vsub.s32 0, %v5961
    %v5963 = vadd.s32 %v5958, 1
    %vm5964 = vcmp.gt.s32.totalorder %v5963, 0
    %v5965 = vsel %vm5964, %v5963, 0
    %v5966 = vshrl.u32 %v5965, 5
    %v5967 = vand.u32 %v5965, 31
    %v5968 = vsub.s32 32, %v5967
    %v5969 = vshrl.u32 683565275, %v5968
    %v5970 = vshll.u32 683565275, %v5967
    %v5971 = vshrl.u32 2475754826, %v5968
    %v5972 = vor.u32 %v5970, %v5971
    %v5973 = vshll.u32 2475754826, %v5967
    %v5974 = vshrl.u32 2131351028, %v5968
    %v5975 = vor.u32 %v5973, %v5974
    %v5976 = vshll.u32 2131351028, %v5967
    %v5977 = vshrl.u32 2102212464, %v5968
    %v5978 = vor.u32 %v5976, %v5977
    %v5979 = vshll.u32 2102212464, %v5967
    %v5980 = vshrl.u32 920167782, %v5968
    %v5981 = vor.u32 %v5979, %v5980
    %v5982 = vshll.u32 920167782, %v5967
    %v5983 = vshrl.u32 1326507024, %v5968
    %v5984 = vor.u32 %v5982, %v5983
    %vm5985 = vcmp.lt.s32.totalorder %v5966, 1
    %vm5986 = vcmp.lt.s32.totalorder %v5966, 2
    %vm5987 = vcmp.lt.s32.totalorder %v5966, 3
    %vm5988 = vcmp.lt.s32.totalorder %v5966, 4
    %v5989 = vsel %vm5985, %v5969, %v5972
    %v5990 = vsel %vm5988, %v5978, 2102212464
    %v5991 = vsel %vm5987, %v5975, %v5990
    %v5992 = vsel %vm5986, %v5989, %v5991
    %v5993 = vsel %vm5985, %v5972, %v5975
    %v5994 = vsel %vm5988, %v5981, 920167782
    %v5995 = vsel %vm5987, %v5978, %v5994
    %v5996 = vsel %vm5986, %v5993, %v5995
    %v5997 = vsel %vm5985, %v5975, %v5978
    %v5998 = vsel %vm5988, %v5984, 1326507024
    %v5999 = vsel %vm5987, %v5981, %v5998
    %v6000 = vsel %vm5986, %v5997, %v5999
    %v6001 = vshll.u32 %v5961, 8
    %v6002 = vmul.u32.u64.compose %v6001, %v6000
    %v6003 = vextract.low.u32 %v6002
    %v6004 = vextract.high.u32 %v6002
    %v6005 = vmul.u32.u64.compose %v6001, %v5996
    %v6006 = vextract.low.u32 %v6005
    %v6007 = vextract.high.u32 %v6005
    %v6008 = vmul.u32 %v6001, %v5992
    %v6009 = vadd.s32 %v6004, %v6006
    %vm6010 = vc.u32 %v6004, %v6006
    %v6011 = vadd.s32 %v6007, 1
    %v6012 = vsel %vm6010, %v6011, %v6007
    %v6013 = vadd.s32 %v6008, %v6012
    %v6014 = vadd.s32 %v6013, 536870912
    %v6015 = vshrl.u32 %v6014, 30
    %v6016 = vshll.u32 %v6015, 30
    %v6017 = vsub.s32 %v6013, %v6016
    %vm6018 = vcmp.lt.s32.totalorder %v6017, 0
    %v6019 = vsub.s32 0, %v6017
    %v6020 = vsel %vm6018, %v6019, %v6017
    %v6021 = vclz %v6020
    %v6022 = vsub.s32 %v6021, 2
    %vm6023 = vcmp.gt.s32.totalorder 0, %v6022
    %v6024 = vsel %vm6023, 0, %v6022
    %v6025 = vsub.s32 32, %v6024
    %v6026 = vshll.u32 %v6017, %v6024
    %v6027 = vshrl.u32 %v6009, %v6025
    %v6028 = vor.u32 %v6026, %v6027
    %v6029 = vsub.s32 4294967266, %v6024
    %v6030 = vadd.s32 %v6029, 127
    %v6031 = vshll.u32 %v6030, 23
    %v6032 = vor.u32 4788187, %v6031
    %v6033 = vand.u32 2147483647, %v6032
    %v6035 = vcvt.s32.f32 %v6028
    %v6036 = vmul.f32 %v6035, %v6033
    %v6037 = vxor.u32 %v6036, 2147483648
    %v6038 = vsel %vm5955, %v6037, %v6036
    %v6039 = vsub.s32 4, %v6015
    %v6040 = vsel %vm5955, %v6039, %v6015
    %v6041 = vsel %vm5954, %v5014, %v6038
    %v6042 = vsel %vm5954, 0, %v6040
    %v6043 = vcosq.f32.pop %v6041
    %v6044 = vsinq.f32.pop %v6041
    %vm6045 = vweird.f32 %v5014
    %v6046 = vadd.s32 %v6042, 3
    %v6047 = vand.u32 %v6046, 3
    %vm6048 = vcmp.lt.s32.totalorder %v6047, 2
    %vm6049 = vcmp.eq.s32.totalorder %v6047, 0
    %v6050 = vxor.u32 %v6044, 2147483648
    %v6051 = vsel %vm6049, %v6043, %v6050
    %vm6052 = vcmp.eq.s32.totalorder %v6047, 2
    %v6053 = vxor.u32 %v6043, 2147483648
    %v6054 = vsel %vm6052, %v6053, %v6044
    %v6055 = vsel %vm6048, %v6051, %v6054
    %v6056 = vsel %vm6045, nan, %v6055
    %v6057 = vadd.f32 %v3665, %v5120
    %v6058 = vadd.f32 %v3666, %v5224
    %v6059 = vadd.f32 %v3667, %v5328
    %v6060 = vadd.f32 %v3668, %v5432
    %v6061 = vadd.f32 %v3669, %v5536
    %v6062 = vadd.f32 %v3670, %v5640
    %v6063 = vadd.f32 %v3671, %v5744
    %v6064 = vadd.f32 %v3672, %v5848
    %v6065 = vadd.f32 %v3673, %v5952
    %v6066 = vadd.f32 %v3674, %v6056
    %v6067 = vld [vmem:[#allocation5] sm:$0xf]
    %v6068 = vld [vmem:[#allocation5 + $0x4] sm:$0xf]
    %v6069 = vld [vmem:[#allocation5 + $0x8] sm:$0xf]
    %v6070 = vld [vmem:[#allocation5 + $0xc] sm:$0xf]
    %v6071 = vld [vmem:[#allocation5 + $0x10] sm:$0xf]
    %v6072 = vld [vmem:[#allocation5 + $0x14] sm:$0xf]
    %v6073 = vld [vmem:[#allocation5 + $0x18] sm:$0xf]
    %v6074 = vld [vmem:[#allocation5 + $0x1c] sm:$0xf]
    %v6075 = vld [vmem:[#allocation5 + $0x20] sm:$0xf]
    %v6076 = vld [vmem:[#allocation5 + $0x24] sm:$0xf]
    %v6077 = vld [vmem:[#allocation5 + $0x28] sm:$0xf]
    %v6078 = vld [vmem:[#allocation5 + $0x2c] sm:$0xf]
    %v6079 = vld [vmem:[#allocation5 + $0x30] sm:$0xf]
    %v6080 = vld [vmem:[#allocation5 + $0x34] sm:$0xf]
    %v6081 = vld [vmem:[#allocation5 + $0x38] sm:$0xf]
    %v6082 = vld [vmem:[#allocation5 + $0x3c] sm:$0xf]
    %v6083 = vld [vmem:[%s6] sm:$0x1]
    %v6084 = vpack.c.bf16 %v6058, %v6057
    %v6085 = vpack.c.bf16 %v6060, %v6059
    %v6086 = vpack.c.bf16 %v6062, %v6061
    %v6087 = vpack.c.bf16 %v6064, %v6063
    %v6088 = vpack.c.bf16 %v6066, %v6065
    %v6090 = vlaneseq
    %v6091 = vshrl.u32 %v6090, 7
    %v6092 = vsub.s32 0, %v6091
    %v6093 = vrot.slane %v6083, %v6092
    %v6111 = vunpack.c.l.b16 %v6067
    %v6112 = vunpack.c.l.b16 %v6068
    %v6113 = vunpack.c.l.b16 %v6069
    %v6114 = vunpack.c.l.b16 %v6070
    %v6115 = vunpack.c.l.b16 %v6071
    %v6116 = vunpack.c.l.b16 %v6072
    %v6117 = vunpack.c.l.b16 %v6073
    %v6118 = vunpack.c.l.b16 %v6074
    %v6119 = vunpack.c.l.b16 %v6075
    %v6120 = vunpack.c.l.b16 %v6076
    %v6121 = vunpack.c.l.b16 %v6077
    %v6122 = vunpack.c.l.b16 %v6078
    %v6123 = vunpack.c.l.b16 %v6079
    %v6124 = vunpack.c.l.b16 %v6080
    %v6125 = vunpack.c.l.b16 %v6081
    %v6126 = vunpack.c.l.b16 %v6082
    %v6127 = vpack.c.b16 %v6112, %v6111
    %v6128 = vpack.c.b16 %v6114, %v6113
    %v6129 = vpack.c.b16 %v6116, %v6115
    %v6130 = vpack.c.b16 %v6118, %v6117
    %v6131 = vpack.c.b16 %v6120, %v6119
    %v6132 = vpack.c.b16 %v6122, %v6121
    %v6133 = vpack.c.b16 %v6124, %v6123
    %v6134 = vpack.c.b16 %v6126, %v6125
    %6143 = vmatprep.subr.bf16.mxu0 0
    %6144 = vmatpush1.bf16.msra.mxu0 %v6127
    %6145 = vmatprep.subr.bf16.mxu0 0
    %6146 = vmatpush1.bf16.msra.mxu0 %v6128
    %6147 = vmatprep.subr.bf16.mxu0 0
    %6148 = vmatpush1.bf16.msra.mxu0 %v6129
    %6149 = vmatprep.subr.bf16.mxu0 0
    %6150 = vmatpush1.bf16.msra.mxu0 %v6130
    %6151 = vmatprep.subr.bf16.mxu0 0
    %6152 = vmatpush1.bf16.msra.mxu0 %v6131
    %6153 = vmatprep.subr.bf16.mxu0 0
    %6154 = vmatpush1.bf16.msra.mxu0 %v6132
    %6155 = vmatprep.subr.bf16.mxu0 0
    %6156 = vmatpush1.bf16.msra.mxu0 %v6133
    %6157 = vmatprep.subr.bf16.mxu0 0
    %6158 = vmatpush1.bf16.msra.mxu0 %v6134
    %6159 = vmatprep.subr.bf16.mxu0 0
    %6160 = vmatpush1.bf16.msra.mxu0 0
    %6161 = vmatprep.subr.bf16.mxu0 0
    %6162 = vmatpush1.bf16.msra.mxu0 0
    %6163 = vmatprep.subr.bf16.mxu0 0
    %6164 = vmatpush1.bf16.msra.mxu0 0
    %6165 = vmatprep.subr.bf16.mxu0 0
    %6166 = vmatpush1.bf16.msra.mxu0 0
    %6167 = vmatprep.subr.bf16.mxu0 0
    %6168 = vmatpush1.bf16.msra.mxu0 0
    %6169 = vmatprep.subr.bf16.mxu0 0
    %6170 = vmatpush1.bf16.msra.mxu0 0
    %6171 = vmatprep.subr.bf16.mxu0 0
    %6172 = vmatpush1.bf16.msra.mxu0 0
    %6173 = vmatprep.subr.bf16.mxu0 0
    %6174 = vmatpush1.bf16.msra.mxu0 0
    %6175 = vmatprep.mubr.bf16.mxu0 0
    %6176 = vmatmul.mubr.bf16.gmra.mrb[0].mxu0 %v6084
    %v6177 = vpop.f32.mrb[0].mxu0
    %v6178 = vadd.f32 %v6093, %v6177
    %v6179 = vpop.f32.mrb[0].mxu0
    %v6180 = vpop.f32.mrb[0].mxu0
    %v6181 = vadd.f32 %v6093, %v6180
    %v6182 = vpop.f32.mrb[0].mxu0
    %6183 = vmatprep.mubr.bf16.mxu0 0
    %6184 = vmatmul.mubr.bf16.gmra.mrb[0].mxu0 %v6085
    %v6185 = vpop.f32.mrb[0].mxu0
    %v6186 = vadd.f32 %v6093, %v6185
    %v6187 = vpop.f32.mrb[0].mxu0
    %v6188 = vpop.f32.mrb[0].mxu0
    %v6189 = vadd.f32 %v6093, %v6188
    %v6190 = vpop.f32.mrb[0].mxu0
    %6191 = vmatprep.mubr.bf16.mxu0 0
    %6192 = vmatmul.mubr.bf16.gmra.mrb[0].mxu0 %v6086
    %v6193 = vpop.f32.mrb[0].mxu0
    %v6194 = vadd.f32 %v6093, %v6193
    %v6195 = vpop.f32.mrb[0].mxu0
    %v6196 = vpop.f32.mrb[0].mxu0
    %v6197 = vadd.f32 %v6093, %v6196
    %v6198 = vpop.f32.mrb[0].mxu0
    %6199 = vmatprep.mubr.bf16.mxu0 0
    %6200 = vmatmul.mubr.bf16.gmra.mrb[0].mxu0 %v6087
    %v6201 = vpop.f32.mrb[0].mxu0
    %v6202 = vadd.f32 %v6093, %v6201
    %v6203 = vpop.f32.mrb[0].mxu0
    %v6204 = vpop.f32.mrb[0].mxu0
    %v6205 = vadd.f32 %v6093, %v6204
    %v6206 = vpop.f32.mrb[0].mxu0
    %6207 = vmatprep.mubr.bf16.mxu0 0
    %6208 = vmatmul.mubr.bf16.gmra.mrb[0].mxu0 %v6088
    %v6209 = vpop.f32.mrb[0].mxu0
    %v6210 = vadd.f32 %v6093, %v6209
    %v6211 = vpop.f32.mrb[0].mxu0
    %v6212 = vpop.f32.mrb[0].mxu0
    %v6213 = vadd.f32 %v6093, %v6212
    %v6214 = vpop.f32.mrb[0].mxu0
    %6215 = vdwg.mxu0
    %vm6216 = vcmask 31744
    %6217 = vst.msk [vmem:[%s7] sm:$0xff] %vm6216, %v6178
    %6218 = vst.msk [vmem:[%s7 + $0x8] sm:$0xff] %vm6216, %v6181
    %6219 = vst.msk [vmem:[%s7 + $0x10] sm:$0xff] %vm6216, %v6186
    %6220 = vst.msk [vmem:[%s7 + $0x18] sm:$0xff] %vm6216, %v6189
    %6221 = vst.msk [vmem:[%s7 + $0x20] sm:$0xff] %vm6216, %v6194
    %6222 = vst.msk [vmem:[%s7 + $0x28] sm:$0xff] %vm6216, %v6197
    %6223 = vst.msk [vmem:[%s7 + $0x30] sm:$0xff] %vm6216, %v6202
    %6224 = vst.msk [vmem:[%s7 + $0x38] sm:$0xff] %vm6216, %v6205
    %6225 = vst.msk [vmem:[%s7 + $0x40] sm:$0xff] %vm6216, %v6210
    %6226 = vst.msk [vmem:[%s7 + $0x48] sm:$0xff] %vm6216, %v6213
    // Predicated region
    $region38: #{tpu_custom_call.1} parent=1 // pred_check
      _
    $region39: #{tpu_custom_call.1} parent=1 // pred_check_branch
      %6228 = sbr.rel (0) target = $region41
    $region40: #{tpu_custom_call.1} parent=1 // pred_region
      _
    $region41: #{tpu_custom_call.1} parent=1 // pred_fallthru
      _
    // Predicated region
    $region42: #{tpu_custom_call.1} parent=1 // pred_check
      _
    $region43: #{tpu_custom_call.1} parent=1 // pred_check_branch
      %6230 = sbr.rel (0) target = $region45
    $region44: #{tpu_custom_call.1} parent=1 // pred_region
      _
    $region45: #{tpu_custom_call.1} parent=1 // pred_fallthru
      _
    %6231 = vsyncpa [#allocation4], 1
    %6232 = vsyncpa [#allocation6], 1

</llo_original>
